<compile_context>
chip_gen: v5e
topology: v5e:2x2
jax: 0.10.0
libtpu: 0.0.40
codegen_flags: <defaults>
</compile_context>

<pallas_src>
import functools

import jax
import jax.numpy as jnp
from jax import lax
from jax.experimental import pallas as pl
from jax.experimental.pallas import tpu as pltpu

EVAL_STEPS = 7      # _MatrixDecompositionBase.eval_steps default
INV_T = 1.0         # NMF overrides inv_t = 1
EPS_NMF = 1e-6
EPS_BN = 1e-5


def _coef_update(z_bf, bases_t, coef_t):
    """One multiplicative coef update in the transposed (R, L) layout.

    z_bf is the (C, L) NMF input pre-cast to bf16; bases_t/coef_t are f32 and
    are cast to bf16 only at their matmul uses (elementwise math stays f32).
    """
    bases_bf = bases_t.astype(jnp.bfloat16)
    # numer[r, l] = sum_c bases[c, r] * z[c, l]
    numer = lax.dot_general(bases_bf, z_bf, (((1,), (0,)), ((), ())),
                            preferred_element_type=jnp.float32)            # (R, L)
    # btb[r, s] = sum_c bases[c, r] * bases[c, s]   (exactly symmetric)
    btb = lax.dot_general(bases_bf, bases_bf, (((1,), (1,)), ((), ())),
                          preferred_element_type=jnp.float32)              # (R, R)
    denom = jnp.dot(btb.astype(jnp.bfloat16), coef_t.astype(jnp.bfloat16),
                    preferred_element_type=jnp.float32)                    # (R, L)
    return coef_t * numer * pl.reciprocal(denom + EPS_NMF, approx=True)


def _hamburger_kernel(x_ref, w_ref, bases_ref, out_ref):
    nb = bases_ref.shape[0]          # batch elements in this block
    C = out_ref.shape[0]
    L = out_ref.shape[1] // nb

    # --- BN + conv + bias, all folded: one wide matmul for the whole block ---
    # w_ref: (C, C+1) = [w_eff | b_eff];  x_ref: (C+1, nb*L) = [x_flat ; ones]
    z_all = jnp.dot(w_ref[...], x_ref[...], preferred_element_type=jnp.float32)
    z_all = jnp.maximum(z_all, 0.0)                        # (C, nb*L)

    # Statically unrolled independent per-batch NMF chains: the scheduler can
    # interleave their tiny dependent matmuls to hide MXU result latency.
    for b in range(nb):
        z = z_all[:, b * L:(b + 1) * L]                    # 128-lane aligned view
        z_bf = z.astype(jnp.bfloat16)
        bases_t = bases_ref[b]                             # (R, C) f32 per-batch init

        # --- local_inference: coef = softmax(inv_t * z^T @ bases, dim=R) ---
        logits = jnp.dot(bases_t.astype(jnp.bfloat16), z_bf,
                         preferred_element_type=jnp.float32)              # (R, L)
        if INV_T != 1.0:
            logits = logits * INV_T
        logits = logits - jnp.max(logits, axis=0, keepdims=True)
        e = jnp.exp(logits)
        coef_t = e * pl.reciprocal(jnp.sum(e, axis=0, keepdims=True), approx=True)

        # --- NMF multiplicative updates (eval_steps iterations) ---
        for _ in range(EVAL_STEPS):
            coef_t = _coef_update(z_bf, bases_t, coef_t)
            coef_bf = coef_t.astype(jnp.bfloat16)
            bases_bf = bases_t.astype(jnp.bfloat16)
            # numer_b[r, c] = sum_l coef[l, r] * z[c, l]
            numer_b = lax.dot_general(coef_bf, z_bf, (((1,), (1,)), ((), ())),
                                      preferred_element_type=jnp.float32)   # (R, C)
            # ctc[r, s] = sum_l coef[l, r] * coef[l, s]  (exactly symmetric)
            ctc = lax.dot_general(coef_bf, coef_bf, (((1,), (1,)), ((), ())),
                                  preferred_element_type=jnp.float32)       # (R, R)
            denom_b = jnp.dot(ctc.astype(jnp.bfloat16), bases_bf,
                              preferred_element_type=jnp.float32)           # (R, C)
            bases_t = bases_t * numer_b * pl.reciprocal(denom_b + EPS_NMF,
                                                        approx=True)

        # --- compute_coef: one final coef multiplicative update ---
        coef_t = _coef_update(z_bf, bases_t, coef_t)

        # --- reconstruct: ham[c, l] = sum_r bases[c, r] * coef[l, r] ---
        ham = lax.dot_general(bases_t.astype(jnp.bfloat16),
                              coef_t.astype(jnp.bfloat16),
                              (((0,), (0,)), ((), ())),
                              preferred_element_type=jnp.float32)           # (C, L)

        # --- residual + ReLU (x re-read from VMEM late: keeps it off the
        #     live vreg set during the NMF chain) ---
        x_res = x_ref[pl.ds(0, C), pl.ds(b * L, L)]
        out_ref[:, pl.ds(b * L, L)] = jnp.maximum(x_res + ham, 0.0).astype(out_ref.dtype)


def _pick_batch_block(B):
    """v5e/v6e (1 TC): unroll up to 4 chains per step (grid may collapse to 1).
    v7x (2 TCs): keep >=2 parallel grid steps so both cores get work."""
    try:
        kind = jax.devices()[0].device_kind.lower()
    except Exception:  # pragma: no cover
        kind = ""
    two_tc = "7" in kind            # v7x-family chips have 2 TensorCores/chip
    max_chains = 4                  # each chain keeps ~10-12 vregs live; cap unroll
    if two_tc and B >= 2:
        target = min(max_chains, max(1, B // 2))
    else:
        target = min(max_chains, B)
    bb = max(1, target)
    while bb > 1 and B % bb != 0:
        bb -= 1
    return bb


@functools.partial(jax.jit, static_argnames=("batch_block",))
def _hamburger_forward_jit(x, w_eff, b_eff, bases0_t, batch_block):
    B, C, L = x.shape
    R = bases0_t.shape[1]
    bb = batch_block
    assert B % bb == 0, "batch must be divisible by batch_block"
    grid = (B // bb,)

    # Host-side (XLA) layout prep:
    #   * fold the conv bias into the matmul: w_aug = [w_eff | b_eff]
    #   * present x as a lane-dense (C, B*L) slab with an appended ones row.
    w_aug = jnp.concatenate([w_eff, b_eff], axis=1)                    # (C, C+1)
    x_flat = jnp.transpose(x, (1, 0, 2)).reshape(C, B * L)             # (C, B*L)
    x_aug = jnp.concatenate(
        [x_flat, jnp.ones((1, B * L), dtype=x.dtype)], axis=0)         # (C+1, B*L)

    # Advisory cost estimate (latency-dominated tiny kernel).
    mm = 2 * C * (C + 1) * L
    mm += (EVAL_STEPS + 2) * (2 * R * C * L + 2 * R * R * C + 2 * R * R * L)
    mm += EVAL_STEPS * (2 * R * C * L + 2 * R * R * L + 2 * R * R * C)
    mm += 2 * R * C * L
    cost = pl.CostEstimate(
        flops=B * mm,
        transcendentals=B * R * L * (EVAL_STEPS + 3),
        bytes_accessed=4 * (B * (C + 1) * L + B * C * L + C * (C + 1) + B * R * C),
    )

    out_flat = pl.pallas_call(
        _hamburger_kernel,
        out_shape=jax.ShapeDtypeStruct((C, B * L), x.dtype),
        grid_spec=pltpu.PrefetchScalarGridSpec(
            num_scalar_prefetch=0,
            grid=grid,
            in_specs=[
                pl.BlockSpec((C + 1, bb * L), lambda i: (0, i)),       # [x ; ones]
                pl.BlockSpec((C, C + 1), lambda i: (0, 0)),            # [w_eff | b_eff]
                pl.BlockSpec((bb, R, C), lambda i: (i, 0, 0)),         # bases init (R, C)
            ],
            out_specs=pl.BlockSpec((C, bb * L), lambda i: (0, i)),
        ),
        compiler_params=pltpu.CompilerParams(dimension_semantics=("parallel",)),
        cost_estimate=cost,
    )(x_aug, w_aug, bases0_t)

    # (C, B*L) -> (B, C, L)
    return jnp.transpose(out_flat.reshape(C, B, L), (1, 0, 2))


def hamburger_forward(x, w_eff, b_eff, bases0_t, batch_block=None):
    if batch_block is None:
        batch_block = _pick_batch_block(x.shape[0])
    return _hamburger_forward_jit(x, w_eff, b_eff, bases0_t, batch_block)


def hamburger_reference(x, bn_scale, bn_shift, w_conv, b_conv, bases0):
    """Pure-JAX reference mirroring the PyTorch forward (eval mode)."""
    z = x * bn_scale[None] + bn_shift[None]
    z = jnp.einsum('oc,bcl->bol', w_conv, z) + b_conv[None]
    z = jnp.maximum(z, 0.0)

    bases = bases0
    zT = jnp.swapaxes(z, 1, 2)
    coef = jax.nn.softmax(INV_T * jnp.einsum('blc,bcr->blr', zT, bases), axis=-1)
    for _ in range(EVAL_STEPS):
        numer = jnp.einsum('blc,bcr->blr', zT, bases)
        denom = jnp.einsum('blr,brs->bls', coef,
                           jnp.einsum('bcr,bcs->brs', bases, bases))
        coef = coef * numer / (denom + EPS_NMF)
        numer_b = jnp.einsum('bcl,blr->bcr', z, coef)
        denom_b = jnp.einsum('bcr,brs->bcs', bases,
                             jnp.einsum('blr,bls->brs', coef, coef))
        bases = bases * numer_b / (denom_b + EPS_NMF)
    numer = jnp.einsum('blc,bcr->blr', zT, bases)
    denom = jnp.einsum('blr,brs->bls', coef,
                       jnp.einsum('bcr,bcs->brs', bases, bases))
    coef = coef * numer / (denom + EPS_NMF)
    ham = jnp.einsum('bcr,blr->bcl', bases, coef)
    return jnp.maximum(x + ham, 0.0)


if __name__ == "__main__":
    B, C, L, R = 4, 32, 128, 8   # batch, channels (in_c), sequence length, NMF rank
    key = jax.random.PRNGKey(0)
    k_x, k_g, k_b, k_m, k_v, k_w, k_wb, k_bases = jax.random.split(key, 8)

    x = jax.random.normal(k_x, (B, C, L), dtype=jnp.float32)

    # BatchNorm1d (inference) parameters, deterministically initialized.
    gamma = 1.0 + 0.1 * jax.random.normal(k_g, (C,), dtype=jnp.float32)
    beta = 0.1 * jax.random.normal(k_b, (C,), dtype=jnp.float32)
    running_mean = 0.1 * jax.random.normal(k_m, (C,), dtype=jnp.float32)
    running_var = 1.0 + 0.1 * jax.random.uniform(k_v, (C,), dtype=jnp.float32)
    bn_scale = (gamma / jnp.sqrt(running_var + EPS_BN)).reshape(C, 1)
    bn_shift = (beta - running_mean * gamma / jnp.sqrt(running_var + EPS_BN)).reshape(C, 1)

    # lower_bread Conv1d(C, C, 1) weight/bias (PyTorch-style fan-in uniform init).
    bound = 1.0 / jnp.sqrt(jnp.float32(C))
    w_conv = jax.random.uniform(k_w, (C, C), dtype=jnp.float32, minval=-bound, maxval=bound)
    b_conv = jax.random.uniform(k_wb, (C, 1), dtype=jnp.float32, minval=-bound, maxval=bound)

    # NMF bases init: uniform[0,1) then L2-normalize over D (dim=1), per batch (S=1).
    bases0 = jax.random.uniform(k_bases, (B, C, R), dtype=jnp.float32)
    bases0 = bases0 / jnp.linalg.norm(bases0, axis=1, keepdims=True)

    # Host-side prep for the kernel:
    #  * fold BatchNorm into the 1x1 conv: w' = w * scale^T, b' = w @ shift + b
    #  * pass bases pre-transposed as (B, R, C)
    w_eff = w_conv * bn_scale.reshape(1, C)
    b_eff = jnp.dot(w_conv, bn_shift) + b_conv
    bases0_t = jnp.swapaxes(bases0, 1, 2)

    out = hamburger_forward(x, w_eff, b_eff, bases0_t)
    out = jax.block_until_ready(out)

    ref = hamburger_reference(x, bn_scale, bn_shift, w_conv, b_conv, bases0)
    ref = jax.block_until_ready(ref)

    assert out.shape == (B, C, L) and out.dtype == jnp.float32
    assert bool(jnp.all(jnp.isfinite(out)))
    max_diff = float(jnp.max(jnp.abs(out - ref)))
    assert max_diff < 1e-1, f"mismatch vs reference: {max_diff}"

    print("KERNEL_OK")
</pallas_src>

<mosaic_0001>
module attributes {stable_mosaic.version = 11 : i64} {
  func.func @_hamburger_kernel(%arg0: i32, %arg1: memref<33x512xf32, #tpu.memory_space<vmem>>, %arg2: memref<32x33xf32, #tpu.memory_space<vmem>>, %arg3: memref<4x8x32xf32, #tpu.memory_space<vmem>>, %arg4: memref<32x512xf32, #tpu.memory_space<vmem>>) attributes {dimension_semantics = [#tpu.dimension_semantics<parallel>], iteration_bounds = array<i64: 1>, scalar_prefetch = 0 : i64, scratch_operands = 0 : i64, tpu.core_type = #tpu.core_type<tc>, window_params = [{transform_indices = @transform_0, window_bounds = array<i64: 33, 512>}, {pipeline_mode = #tpu.pipeline_mode<synchronous>, transform_indices = @transform_1, window_bounds = array<i64: 32, 33>}, {transform_indices = @transform_2, window_bounds = array<i64: 4, 8, 32>}, {transform_indices = @transform_3, window_bounds = array<i64: 32, 512>}]} {
    %c0 = arith.constant 0 : index
    %c0_0 = arith.constant 0 : index
    %0 = vector.load %arg2[%c0, %c0_0] : memref<32x33xf32, #tpu.memory_space<vmem>>, vector<32x33xf32>
    %c0_1 = arith.constant 0 : index
    %c0_2 = arith.constant 0 : index
    %1 = vector.load %arg1[%c0_1, %c0_2] : memref<33x512xf32, #tpu.memory_space<vmem>>, vector<33x512xf32>
    %cst = arith.constant dense<0.000000e+00> : vector<32x512xf32>
    %2 = tpu.matmul %0, %1, %cst {dimension_numbers = #tpu.dot_dimension_numbers<[1], [0], [0], [1], [0, 0, 1, 1], [], []>} : vector<32x33xf32>, vector<33x512xf32>, vector<32x512xf32> -> vector<32x512xf32>
    %cst_3 = arith.constant 0.000000e+00 : f32
    %3 = vector.broadcast %cst_3 : f32 to vector<32x512xf32>
    %4 = arith.maximumf %2, %3 : vector<32x512xf32>
    %5 = vector.extract_strided_slice %4 {offsets = [0, 0], sizes = [32, 128], strides = [1, 1]} : vector<32x512xf32> to vector<32x128xf32>
    %6 = arith.truncf %5 : vector<32x128xf32> to vector<32x128xbf16>
    %c0_4 = arith.constant 0 : index
    %c0_5 = arith.constant 0 : index
    %c0_6 = arith.constant 0 : index
    %7 = vector.load %arg3[%c0_4, %c0_5, %c0_6] : memref<4x8x32xf32, #tpu.memory_space<vmem>>, vector<1x8x32xf32>
    %8 = vector.shape_cast %7 : vector<1x8x32xf32> to vector<8x32xf32>
    %9 = arith.truncf %8 : vector<8x32xf32> to vector<8x32xbf16>
    %cst_7 = arith.constant dense<0.000000e+00> : vector<8x128xf32>
    %10 = tpu.matmul %9, %6, %cst_7 {dimension_numbers = #tpu.dot_dimension_numbers<[1], [0], [0], [1], [0, 0, 1, 1], [], []>} : vector<8x32xbf16>, vector<32x128xbf16>, vector<8x128xf32> -> vector<8x128xf32>
    %cst_8 = arith.constant dense<0xFF800000> : vector<128xf32>
    %11 = vector.multi_reduction <maximumf>, %10, %cst_8 [0] : vector<8x128xf32> to vector<128xf32>
    %12 = vector.shape_cast %11 : vector<128xf32> to vector<1x128xf32>
    %13 = vector.broadcast %12 : vector<1x128xf32> to vector<8x128xf32>
    %14 = arith.subf %10, %13 : vector<8x128xf32>
    %15 = math.exp %14 : vector<8x128xf32>
    %cst_9 = arith.constant dense<0.000000e+00> : vector<128xf32>
    %16 = vector.multi_reduction <add>, %15, %cst_9 [0] : vector<8x128xf32> to vector<128xf32>
    %17 = vector.shape_cast %16 : vector<128xf32> to vector<1x128xf32>
    %18 = tpu.reciprocal %17 {approx = true} : vector<1x128xf32> -> vector<1x128xf32>
    %19 = vector.broadcast %18 : vector<1x128xf32> to vector<8x128xf32>
    %20 = arith.mulf %15, %19 : vector<8x128xf32>
    %21 = arith.truncf %8 : vector<8x32xf32> to vector<8x32xbf16>
    %cst_10 = arith.constant dense<0.000000e+00> : vector<8x128xf32>
    %22 = tpu.matmul %21, %6, %cst_10 {dimension_numbers = #tpu.dot_dimension_numbers<[1], [0], [0], [1], [0, 0, 1, 1], [], []>} : vector<8x32xbf16>, vector<32x128xbf16>, vector<8x128xf32> -> vector<8x128xf32>
    %cst_11 = arith.constant dense<0.000000e+00> : vector<8x8xf32>
    %23 = tpu.matmul %21, %21, %cst_11 {dimension_numbers = #tpu.dot_dimension_numbers<[1], [1], [0], [0], [0, 0, 1, 0], [], []>} : vector<8x32xbf16>, vector<8x32xbf16>, vector<8x8xf32> -> vector<8x8xf32>
    %24 = arith.truncf %23 : vector<8x8xf32> to vector<8x8xbf16>
    %25 = arith.truncf %20 : vector<8x128xf32> to vector<8x128xbf16>
    %cst_12 = arith.constant dense<0.000000e+00> : vector<8x128xf32>
    %26 = tpu.matmul %24, %25, %cst_12 {dimension_numbers = #tpu.dot_dimension_numbers<[1], [0], [0], [1], [0, 0, 1, 1], [], []>} : vector<8x8xbf16>, vector<8x128xbf16>, vector<8x128xf32> -> vector<8x128xf32>
    %27 = arith.mulf %20, %22 : vector<8x128xf32>
    %cst_13 = arith.constant 9.99999997E-7 : f32
    %28 = vector.broadcast %cst_13 : f32 to vector<8x128xf32>
    %29 = arith.addf %26, %28 : vector<8x128xf32>
    %30 = tpu.reciprocal %29 {approx = true} : vector<8x128xf32> -> vector<8x128xf32>
    %31 = arith.mulf %27, %30 : vector<8x128xf32>
    %32 = arith.truncf %31 : vector<8x128xf32> to vector<8x128xbf16>
    %33 = arith.truncf %8 : vector<8x32xf32> to vector<8x32xbf16>
    %cst_14 = arith.constant dense<0.000000e+00> : vector<8x32xf32>
    %34 = tpu.matmul %32, %6, %cst_14 {dimension_numbers = #tpu.dot_dimension_numbers<[1], [1], [0], [0], [0, 0, 1, 0], [], []>} : vector<8x128xbf16>, vector<32x128xbf16>, vector<8x32xf32> -> vector<8x32xf32>
    %cst_15 = arith.constant dense<0.000000e+00> : vector<8x8xf32>
    %35 = tpu.matmul %32, %32, %cst_15 {dimension_numbers = #tpu.dot_dimension_numbers<[1], [1], [0], [0], [0, 0, 1, 0], [], []>} : vector<8x128xbf16>, vector<8x128xbf16>, vector<8x8xf32> -> vector<8x8xf32>
    %36 = arith.truncf %35 : vector<8x8xf32> to vector<8x8xbf16>
    %cst_16 = arith.constant dense<0.000000e+00> : vector<8x32xf32>
    %37 = tpu.matmul %36, %33, %cst_16 {dimension_numbers = #tpu.dot_dimension_numbers<[1], [0], [0], [1], [0, 0, 1, 1], [], []>} : vector<8x8xbf16>, vector<8x32xbf16>, vector<8x32xf32> -> vector<8x32xf32>
    %38 = arith.mulf %8, %34 : vector<8x32xf32>
    %cst_17 = arith.constant 9.99999997E-7 : f32
    %39 = vector.broadcast %cst_17 : f32 to vector<8x32xf32>
    %40 = arith.addf %37, %39 : vector<8x32xf32>
    %41 = tpu.reciprocal %40 {approx = true} : vector<8x32xf32> -> vector<8x32xf32>
    %42 = arith.mulf %38, %41 : vector<8x32xf32>
    %43 = arith.truncf %42 : vector<8x32xf32> to vector<8x32xbf16>
    %cst_18 = arith.constant dense<0.000000e+00> : vector<8x128xf32>
    %44 = tpu.matmul %43, %6, %cst_18 {dimension_numbers = #tpu.dot_dimension_numbers<[1], [0], [0], [1], [0, 0, 1, 1], [], []>} : vector<8x32xbf16>, vector<32x128xbf16>, vector<8x128xf32> -> vector<8x128xf32>
    %cst_19 = arith.constant dense<0.000000e+00> : vector<8x8xf32>
    %45 = tpu.matmul %43, %43, %cst_19 {dimension_numbers = #tpu.dot_dimension_numbers<[1], [1], [0], [0], [0, 0, 1, 0], [], []>} : vector<8x32xbf16>, vector<8x32xbf16>, vector<8x8xf32> -> vector<8x8xf32>
    %46 = arith.truncf %45 : vector<8x8xf32> to vector<8x8xbf16>
    %47 = arith.truncf %31 : vector<8x128xf32> to vector<8x128xbf16>
    %cst_20 = arith.constant dense<0.000000e+00> : vector<8x128xf32>
    %48 = tpu.matmul %46, %47, %cst_20 {dimension_numbers = #tpu.dot_dimension_numbers<[1], [0], [0], [1], [0, 0, 1, 1], [], []>} : vector<8x8xbf16>, vector<8x128xbf16>, vector<8x128xf32> -> vector<8x128xf32>
    %49 = arith.mulf %31, %44 : vector<8x128xf32>
    %cst_21 = arith.constant 9.99999997E-7 : f32
    %50 = vector.broadcast %cst_21 : f32 to vector<8x128xf32>
    %51 = arith.addf %48, %50 : vector<8x128xf32>
    %52 = tpu.reciprocal %51 {approx = true} : vector<8x128xf32> -> vector<8x128xf32>
    %53 = arith.mulf %49, %52 : vector<8x128xf32>
    %54 = arith.truncf %53 : vector<8x128xf32> to vector<8x128xbf16>
    %55 = arith.truncf %42 : vector<8x32xf32> to vector<8x32xbf16>
    %cst_22 = arith.constant dense<0.000000e+00> : vector<8x32xf32>
    %56 = tpu.matmul %54, %6, %cst_22 {dimension_numbers = #tpu.dot_dimension_numbers<[1], [1], [0], [0], [0, 0, 1, 0], [], []>} : vector<8x128xbf16>, vector<32x128xbf16>, vector<8x32xf32> -> vector<8x32xf32>
    %cst_23 = arith.constant dense<0.000000e+00> : vector<8x8xf32>
    %57 = tpu.matmul %54, %54, %cst_23 {dimension_numbers = #tpu.dot_dimension_numbers<[1], [1], [0], [0], [0, 0, 1, 0], [], []>} : vector<8x128xbf16>, vector<8x128xbf16>, vector<8x8xf32> -> vector<8x8xf32>
    %58 = arith.truncf %57 : vector<8x8xf32> to vector<8x8xbf16>
    %cst_24 = arith.constant dense<0.000000e+00> : vector<8x32xf32>
    %59 = tpu.matmul %58, %55, %cst_24 {dimension_numbers = #tpu.dot_dimension_numbers<[1], [0], [0], [1], [0, 0, 1, 1], [], []>} : vector<8x8xbf16>, vector<8x32xbf16>, vector<8x32xf32> -> vector<8x32xf32>
    %60 = arith.mulf %42, %56 : vector<8x32xf32>
    %cst_25 = arith.constant 9.99999997E-7 : f32
    %61 = vector.broadcast %cst_25 : f32 to vector<8x32xf32>
    %62 = arith.addf %59, %61 : vector<8x32xf32>
    %63 = tpu.reciprocal %62 {approx = true} : vector<8x32xf32> -> vector<8x32xf32>
    %64 = arith.mulf %60, %63 : vector<8x32xf32>
    %65 = arith.truncf %64 : vector<8x32xf32> to vector<8x32xbf16>
    %cst_26 = arith.constant dense<0.000000e+00> : vector<8x128xf32>
    %66 = tpu.matmul %65, %6, %cst_26 {dimension_numbers = #tpu.dot_dimension_numbers<[1], [0], [0], [1], [0, 0, 1, 1], [], []>} : vector<8x32xbf16>, vector<32x128xbf16>, vector<8x128xf32> -> vector<8x128xf32>
    %cst_27 = arith.constant dense<0.000000e+00> : vector<8x8xf32>
    %67 = tpu.matmul %65, %65, %cst_27 {dimension_numbers = #tpu.dot_dimension_numbers<[1], [1], [0], [0], [0, 0, 1, 0], [], []>} : vector<8x32xbf16>, vector<8x32xbf16>, vector<8x8xf32> -> vector<8x8xf32>
    %68 = arith.truncf %67 : vector<8x8xf32> to vector<8x8xbf16>
    %69 = arith.truncf %53 : vector<8x128xf32> to vector<8x128xbf16>
    %cst_28 = arith.constant dense<0.000000e+00> : vector<8x128xf32>
    %70 = tpu.matmul %68, %69, %cst_28 {dimension_numbers = #tpu.dot_dimension_numbers<[1], [0], [0], [1], [0, 0, 1, 1], [], []>} : vector<8x8xbf16>, vector<8x128xbf16>, vector<8x128xf32> -> vector<8x128xf32>
    %71 = arith.mulf %53, %66 : vector<8x128xf32>
    %cst_29 = arith.constant 9.99999997E-7 : f32
    %72 = vector.broadcast %cst_29 : f32 to vector<8x128xf32>
    %73 = arith.addf %70, %72 : vector<8x128xf32>
    %74 = tpu.reciprocal %73 {approx = true} : vector<8x128xf32> -> vector<8x128xf32>
    %75 = arith.mulf %71, %74 : vector<8x128xf32>
    %76 = arith.truncf %75 : vector<8x128xf32> to vector<8x128xbf16>
    %77 = arith.truncf %64 : vector<8x32xf32> to vector<8x32xbf16>
    %cst_30 = arith.constant dense<0.000000e+00> : vector<8x32xf32>
    %78 = tpu.matmul %76, %6, %cst_30 {dimension_numbers = #tpu.dot_dimension_numbers<[1], [1], [0], [0], [0, 0, 1, 0], [], []>} : vector<8x128xbf16>, vector<32x128xbf16>, vector<8x32xf32> -> vector<8x32xf32>
    %cst_31 = arith.constant dense<0.000000e+00> : vector<8x8xf32>
    %79 = tpu.matmul %76, %76, %cst_31 {dimension_numbers = #tpu.dot_dimension_numbers<[1], [1], [0], [0], [0, 0, 1, 0], [], []>} : vector<8x128xbf16>, vector<8x128xbf16>, vector<8x8xf32> -> vector<8x8xf32>
    %80 = arith.truncf %79 : vector<8x8xf32> to vector<8x8xbf16>
    %cst_32 = arith.constant dense<0.000000e+00> : vector<8x32xf32>
    %81 = tpu.matmul %80, %77, %cst_32 {dimension_numbers = #tpu.dot_dimension_numbers<[1], [0], [0], [1], [0, 0, 1, 1], [], []>} : vector<8x8xbf16>, vector<8x32xbf16>, vector<8x32xf32> -> vector<8x32xf32>
    %82 = arith.mulf %64, %78 : vector<8x32xf32>
    %cst_33 = arith.constant 9.99999997E-7 : f32
    %83 = vector.broadcast %cst_33 : f32 to vector<8x32xf32>
    %84 = arith.addf %81, %83 : vector<8x32xf32>
    %85 = tpu.reciprocal %84 {approx = true} : vector<8x32xf32> -> vector<8x32xf32>
    %86 = arith.mulf %82, %85 : vector<8x32xf32>
    %87 = arith.truncf %86 : vector<8x32xf32> to vector<8x32xbf16>
    %cst_34 = arith.constant dense<0.000000e+00> : vector<8x128xf32>
    %88 = tpu.matmul %87, %6, %cst_34 {dimension_numbers = #tpu.dot_dimension_numbers<[1], [0], [0], [1], [0, 0, 1, 1], [], []>} : vector<8x32xbf16>, vector<32x128xbf16>, vector<8x128xf32> -> vector<8x128xf32>
    %cst_35 = arith.constant dense<0.000000e+00> : vector<8x8xf32>
    %89 = tpu.matmul %87, %87, %cst_35 {dimension_numbers = #tpu.dot_dimension_numbers<[1], [1], [0], [0], [0, 0, 1, 0], [], []>} : vector<8x32xbf16>, vector<8x32xbf16>, vector<8x8xf32> -> vector<8x8xf32>
    %90 = arith.truncf %89 : vector<8x8xf32> to vector<8x8xbf16>
    %91 = arith.truncf %75 : vector<8x128xf32> to vector<8x128xbf16>
    %cst_36 = arith.constant dense<0.000000e+00> : vector<8x128xf32>
    %92 = tpu.matmul %90, %91, %cst_36 {dimension_numbers = #tpu.dot_dimension_numbers<[1], [0], [0], [1], [0, 0, 1, 1], [], []>} : vector<8x8xbf16>, vector<8x128xbf16>, vector<8x128xf32> -> vector<8x128xf32>
    %93 = arith.mulf %75, %88 : vector<8x128xf32>
    %cst_37 = arith.constant 9.99999997E-7 : f32
    %94 = vector.broadcast %cst_37 : f32 to vector<8x128xf32>
    %95 = arith.addf %92, %94 : vector<8x128xf32>
    %96 = tpu.reciprocal %95 {approx = true} : vector<8x128xf32> -> vector<8x128xf32>
    %97 = arith.mulf %93, %96 : vector<8x128xf32>
    %98 = arith.truncf %97 : vector<8x128xf32> to vector<8x128xbf16>
    %99 = arith.truncf %86 : vector<8x32xf32> to vector<8x32xbf16>
    %cst_38 = arith.constant dense<0.000000e+00> : vector<8x32xf32>
    %100 = tpu.matmul %98, %6, %cst_38 {dimension_numbers = #tpu.dot_dimension_numbers<[1], [1], [0], [0], [0, 0, 1, 0], [], []>} : vector<8x128xbf16>, vector<32x128xbf16>, vector<8x32xf32> -> vector<8x32xf32>
    %cst_39 = arith.constant dense<0.000000e+00> : vector<8x8xf32>
    %101 = tpu.matmul %98, %98, %cst_39 {dimension_numbers = #tpu.dot_dimension_numbers<[1], [1], [0], [0], [0, 0, 1, 0], [], []>} : vector<8x128xbf16>, vector<8x128xbf16>, vector<8x8xf32> -> vector<8x8xf32>
    %102 = arith.truncf %101 : vector<8x8xf32> to vector<8x8xbf16>
    %cst_40 = arith.constant dense<0.000000e+00> : vector<8x32xf32>
    %103 = tpu.matmul %102, %99, %cst_40 {dimension_numbers = #tpu.dot_dimension_numbers<[1], [0], [0], [1], [0, 0, 1, 1], [], []>} : vector<8x8xbf16>, vector<8x32xbf16>, vector<8x32xf32> -> vector<8x32xf32>
    %104 = arith.mulf %86, %100 : vector<8x32xf32>
    %cst_41 = arith.constant 9.99999997E-7 : f32
    %105 = vector.broadcast %cst_41 : f32 to vector<8x32xf32>
    %106 = arith.addf %103, %105 : vector<8x32xf32>
    %107 = tpu.reciprocal %106 {approx = true} : vector<8x32xf32> -> vector<8x32xf32>
    %108 = arith.mulf %104, %107 : vector<8x32xf32>
    %109 = arith.truncf %108 : vector<8x32xf32> to vector<8x32xbf16>
    %cst_42 = arith.constant dense<0.000000e+00> : vector<8x128xf32>
    %110 = tpu.matmul %109, %6, %cst_42 {dimension_numbers = #tpu.dot_dimension_numbers<[1], [0], [0], [1], [0, 0, 1, 1], [], []>} : vector<8x32xbf16>, vector<32x128xbf16>, vector<8x128xf32> -> vector<8x128xf32>
    %cst_43 = arith.constant dense<0.000000e+00> : vector<8x8xf32>
    %111 = tpu.matmul %109, %109, %cst_43 {dimension_numbers = #tpu.dot_dimension_numbers<[1], [1], [0], [0], [0, 0, 1, 0], [], []>} : vector<8x32xbf16>, vector<8x32xbf16>, vector<8x8xf32> -> vector<8x8xf32>
    %112 = arith.truncf %111 : vector<8x8xf32> to vector<8x8xbf16>
    %113 = arith.truncf %97 : vector<8x128xf32> to vector<8x128xbf16>
    %cst_44 = arith.constant dense<0.000000e+00> : vector<8x128xf32>
    %114 = tpu.matmul %112, %113, %cst_44 {dimension_numbers = #tpu.dot_dimension_numbers<[1], [0], [0], [1], [0, 0, 1, 1], [], []>} : vector<8x8xbf16>, vector<8x128xbf16>, vector<8x128xf32> -> vector<8x128xf32>
    %115 = arith.mulf %97, %110 : vector<8x128xf32>
    %cst_45 = arith.constant 9.99999997E-7 : f32
    %116 = vector.broadcast %cst_45 : f32 to vector<8x128xf32>
    %117 = arith.addf %114, %116 : vector<8x128xf32>
    %118 = tpu.reciprocal %117 {approx = true} : vector<8x128xf32> -> vector<8x128xf32>
    %119 = arith.mulf %115, %118 : vector<8x128xf32>
    %120 = arith.truncf %119 : vector<8x128xf32> to vector<8x128xbf16>
    %121 = arith.truncf %108 : vector<8x32xf32> to vector<8x32xbf16>
    %cst_46 = arith.constant dense<0.000000e+00> : vector<8x32xf32>
    %122 = tpu.matmul %120, %6, %cst_46 {dimension_numbers = #tpu.dot_dimension_numbers<[1], [1], [0], [0], [0, 0, 1, 0], [], []>} : vector<8x128xbf16>, vector<32x128xbf16>, vector<8x32xf32> -> vector<8x32xf32>
    %cst_47 = arith.constant dense<0.000000e+00> : vector<8x8xf32>
    %123 = tpu.matmul %120, %120, %cst_47 {dimension_numbers = #tpu.dot_dimension_numbers<[1], [1], [0], [0], [0, 0, 1, 0], [], []>} : vector<8x128xbf16>, vector<8x128xbf16>, vector<8x8xf32> -> vector<8x8xf32>
    %124 = arith.truncf %123 : vector<8x8xf32> to vector<8x8xbf16>
    %cst_48 = arith.constant dense<0.000000e+00> : vector<8x32xf32>
    %125 = tpu.matmul %124, %121, %cst_48 {dimension_numbers = #tpu.dot_dimension_numbers<[1], [0], [0], [1], [0, 0, 1, 1], [], []>} : vector<8x8xbf16>, vector<8x32xbf16>, vector<8x32xf32> -> vector<8x32xf32>
    %126 = arith.mulf %108, %122 : vector<8x32xf32>
    %cst_49 = arith.constant 9.99999997E-7 : f32
    %127 = vector.broadcast %cst_49 : f32 to vector<8x32xf32>
    %128 = arith.addf %125, %127 : vector<8x32xf32>
    %129 = tpu.reciprocal %128 {approx = true} : vector<8x32xf32> -> vector<8x32xf32>
    %130 = arith.mulf %126, %129 : vector<8x32xf32>
    %131 = arith.truncf %130 : vector<8x32xf32> to vector<8x32xbf16>
    %cst_50 = arith.constant dense<0.000000e+00> : vector<8x128xf32>
    %132 = tpu.matmul %131, %6, %cst_50 {dimension_numbers = #tpu.dot_dimension_numbers<[1], [0], [0], [1], [0, 0, 1, 1], [], []>} : vector<8x32xbf16>, vector<32x128xbf16>, vector<8x128xf32> -> vector<8x128xf32>
    %cst_51 = arith.constant dense<0.000000e+00> : vector<8x8xf32>
    %133 = tpu.matmul %131, %131, %cst_51 {dimension_numbers = #tpu.dot_dimension_numbers<[1], [1], [0], [0], [0, 0, 1, 0], [], []>} : vector<8x32xbf16>, vector<8x32xbf16>, vector<8x8xf32> -> vector<8x8xf32>
    %134 = arith.truncf %133 : vector<8x8xf32> to vector<8x8xbf16>
    %135 = arith.truncf %119 : vector<8x128xf32> to vector<8x128xbf16>
    %cst_52 = arith.constant dense<0.000000e+00> : vector<8x128xf32>
    %136 = tpu.matmul %134, %135, %cst_52 {dimension_numbers = #tpu.dot_dimension_numbers<[1], [0], [0], [1], [0, 0, 1, 1], [], []>} : vector<8x8xbf16>, vector<8x128xbf16>, vector<8x128xf32> -> vector<8x128xf32>
    %137 = arith.mulf %119, %132 : vector<8x128xf32>
    %cst_53 = arith.constant 9.99999997E-7 : f32
    %138 = vector.broadcast %cst_53 : f32 to vector<8x128xf32>
    %139 = arith.addf %136, %138 : vector<8x128xf32>
    %140 = tpu.reciprocal %139 {approx = true} : vector<8x128xf32> -> vector<8x128xf32>
    %141 = arith.mulf %137, %140 : vector<8x128xf32>
    %142 = arith.truncf %141 : vector<8x128xf32> to vector<8x128xbf16>
    %143 = arith.truncf %130 : vector<8x32xf32> to vector<8x32xbf16>
    %cst_54 = arith.constant dense<0.000000e+00> : vector<8x32xf32>
    %144 = tpu.matmul %142, %6, %cst_54 {dimension_numbers = #tpu.dot_dimension_numbers<[1], [1], [0], [0], [0, 0, 1, 0], [], []>} : vector<8x128xbf16>, vector<32x128xbf16>, vector<8x32xf32> -> vector<8x32xf32>
    %cst_55 = arith.constant dense<0.000000e+00> : vector<8x8xf32>
    %145 = tpu.matmul %142, %142, %cst_55 {dimension_numbers = #tpu.dot_dimension_numbers<[1], [1], [0], [0], [0, 0, 1, 0], [], []>} : vector<8x128xbf16>, vector<8x128xbf16>, vector<8x8xf32> -> vector<8x8xf32>
    %146 = arith.truncf %145 : vector<8x8xf32> to vector<8x8xbf16>
    %cst_56 = arith.constant dense<0.000000e+00> : vector<8x32xf32>
    %147 = tpu.matmul %146, %143, %cst_56 {dimension_numbers = #tpu.dot_dimension_numbers<[1], [0], [0], [1], [0, 0, 1, 1], [], []>} : vector<8x8xbf16>, vector<8x32xbf16>, vector<8x32xf32> -> vector<8x32xf32>
    %148 = arith.mulf %130, %144 : vector<8x32xf32>
    %cst_57 = arith.constant 9.99999997E-7 : f32
    %149 = vector.broadcast %cst_57 : f32 to vector<8x32xf32>
    %150 = arith.addf %147, %149 : vector<8x32xf32>
    %151 = tpu.reciprocal %150 {approx = true} : vector<8x32xf32> -> vector<8x32xf32>
    %152 = arith.mulf %148, %151 : vector<8x32xf32>
    %153 = arith.truncf %152 : vector<8x32xf32> to vector<8x32xbf16>
    %cst_58 = arith.constant dense<0.000000e+00> : vector<8x128xf32>
    %154 = tpu.matmul %153, %6, %cst_58 {dimension_numbers = #tpu.dot_dimension_numbers<[1], [0], [0], [1], [0, 0, 1, 1], [], []>} : vector<8x32xbf16>, vector<32x128xbf16>, vector<8x128xf32> -> vector<8x128xf32>
    %cst_59 = arith.constant dense<0.000000e+00> : vector<8x8xf32>
    %155 = tpu.matmul %153, %153, %cst_59 {dimension_numbers = #tpu.dot_dimension_numbers<[1], [1], [0], [0], [0, 0, 1, 0], [], []>} : vector<8x32xbf16>, vector<8x32xbf16>, vector<8x8xf32> -> vector<8x8xf32>
    %156 = arith.truncf %155 : vector<8x8xf32> to vector<8x8xbf16>
    %157 = arith.truncf %141 : vector<8x128xf32> to vector<8x128xbf16>
    %cst_60 = arith.constant dense<0.000000e+00> : vector<8x128xf32>
    %158 = tpu.matmul %156, %157, %cst_60 {dimension_numbers = #tpu.dot_dimension_numbers<[1], [0], [0], [1], [0, 0, 1, 1], [], []>} : vector<8x8xbf16>, vector<8x128xbf16>, vector<8x128xf32> -> vector<8x128xf32>
    %159 = arith.mulf %141, %154 : vector<8x128xf32>
    %cst_61 = arith.constant 9.99999997E-7 : f32
    %160 = vector.broadcast %cst_61 : f32 to vector<8x128xf32>
    %161 = arith.addf %158, %160 : vector<8x128xf32>
    %162 = tpu.reciprocal %161 {approx = true} : vector<8x128xf32> -> vector<8x128xf32>
    %163 = arith.mulf %159, %162 : vector<8x128xf32>
    %164 = arith.truncf %163 : vector<8x128xf32> to vector<8x128xbf16>
    %165 = arith.truncf %152 : vector<8x32xf32> to vector<8x32xbf16>
    %cst_62 = arith.constant dense<0.000000e+00> : vector<8x32xf32>
    %166 = tpu.matmul %164, %6, %cst_62 {dimension_numbers = #tpu.dot_dimension_numbers<[1], [1], [0], [0], [0, 0, 1, 0], [], []>} : vector<8x128xbf16>, vector<32x128xbf16>, vector<8x32xf32> -> vector<8x32xf32>
    %cst_63 = arith.constant dense<0.000000e+00> : vector<8x8xf32>
    %167 = tpu.matmul %164, %164, %cst_63 {dimension_numbers = #tpu.dot_dimension_numbers<[1], [1], [0], [0], [0, 0, 1, 0], [], []>} : vector<8x128xbf16>, vector<8x128xbf16>, vector<8x8xf32> -> vector<8x8xf32>
    %168 = arith.truncf %167 : vector<8x8xf32> to vector<8x8xbf16>
    %cst_64 = arith.constant dense<0.000000e+00> : vector<8x32xf32>
    %169 = tpu.matmul %168, %165, %cst_64 {dimension_numbers = #tpu.dot_dimension_numbers<[1], [0], [0], [1], [0, 0, 1, 1], [], []>} : vector<8x8xbf16>, vector<8x32xbf16>, vector<8x32xf32> -> vector<8x32xf32>
    %170 = arith.mulf %152, %166 : vector<8x32xf32>
    %cst_65 = arith.constant 9.99999997E-7 : f32
    %171 = vector.broadcast %cst_65 : f32 to vector<8x32xf32>
    %172 = arith.addf %169, %171 : vector<8x32xf32>
    %173 = tpu.reciprocal %172 {approx = true} : vector<8x32xf32> -> vector<8x32xf32>
    %174 = arith.mulf %170, %173 : vector<8x32xf32>
    %175 = arith.truncf %174 : vector<8x32xf32> to vector<8x32xbf16>
    %cst_66 = arith.constant dense<0.000000e+00> : vector<8x128xf32>
    %176 = tpu.matmul %175, %6, %cst_66 {dimension_numbers = #tpu.dot_dimension_numbers<[1], [0], [0], [1], [0, 0, 1, 1], [], []>} : vector<8x32xbf16>, vector<32x128xbf16>, vector<8x128xf32> -> vector<8x128xf32>
    %cst_67 = arith.constant dense<0.000000e+00> : vector<8x8xf32>
    %177 = tpu.matmul %175, %175, %cst_67 {dimension_numbers = #tpu.dot_dimension_numbers<[1], [1], [0], [0], [0, 0, 1, 0], [], []>} : vector<8x32xbf16>, vector<8x32xbf16>, vector<8x8xf32> -> vector<8x8xf32>
    %178 = arith.truncf %177 : vector<8x8xf32> to vector<8x8xbf16>
    %179 = arith.truncf %163 : vector<8x128xf32> to vector<8x128xbf16>
    %cst_68 = arith.constant dense<0.000000e+00> : vector<8x128xf32>
    %180 = tpu.matmul %178, %179, %cst_68 {dimension_numbers = #tpu.dot_dimension_numbers<[1], [0], [0], [1], [0, 0, 1, 1], [], []>} : vector<8x8xbf16>, vector<8x128xbf16>, vector<8x128xf32> -> vector<8x128xf32>
    %181 = arith.mulf %163, %176 : vector<8x128xf32>
    %cst_69 = arith.constant 9.99999997E-7 : f32
    %182 = vector.broadcast %cst_69 : f32 to vector<8x128xf32>
    %183 = arith.addf %180, %182 : vector<8x128xf32>
    %184 = tpu.reciprocal %183 {approx = true} : vector<8x128xf32> -> vector<8x128xf32>
    %185 = arith.mulf %181, %184 : vector<8x128xf32>
    %186 = arith.truncf %174 : vector<8x32xf32> to vector<8x32xbf16>
    %187 = arith.truncf %185 : vector<8x128xf32> to vector<8x128xbf16>
    %cst_70 = arith.constant dense<0.000000e+00> : vector<32x128xf32>
    %188 = tpu.matmul %186, %187, %cst_70 {dimension_numbers = #tpu.dot_dimension_numbers<[0], [0], [1], [1], [0, 1, 1, 1], [], []>} : vector<8x32xbf16>, vector<8x128xbf16>, vector<32x128xf32> -> vector<32x128xf32>
    %c0_71 = arith.constant 0 : index
    %c0_72 = arith.constant 0 : index
    %189 = vector.load %arg1[%c0_71, %c0_72] : memref<33x512xf32, #tpu.memory_space<vmem>>, vector<32x128xf32>
    %190 = arith.addf %189, %188 : vector<32x128xf32>
    %cst_73 = arith.constant 0.000000e+00 : f32
    %191 = vector.broadcast %cst_73 : f32 to vector<32x128xf32>
    %192 = arith.maximumf %190, %191 : vector<32x128xf32>
    %c0_74 = arith.constant 0 : index
    %c0_75 = arith.constant 0 : index
    %193 = vector.load %arg4[%c0_74, %c0_75] : memref<32x512xf32, #tpu.memory_space<vmem>>, vector<32x128xf32>
    tpu.vector_store %arg4[%c0_74, %c0_75], %192 {strides = array<i32>} : memref<32x512xf32, #tpu.memory_space<vmem>>, vector<32x128xf32>,
    %194 = vector.extract_strided_slice %4 {offsets = [0, 128], sizes = [32, 128], strides = [1, 1]} : vector<32x512xf32> to vector<32x128xf32>
    %195 = arith.truncf %194 : vector<32x128xf32> to vector<32x128xbf16>
    %c1 = arith.constant 1 : index
    %c0_76 = arith.constant 0 : index
    %c0_77 = arith.constant 0 : index
    %196 = vector.load %arg3[%c1, %c0_76, %c0_77] : memref<4x8x32xf32, #tpu.memory_space<vmem>>, vector<1x8x32xf32>
    %197 = vector.shape_cast %196 : vector<1x8x32xf32> to vector<8x32xf32>
    %198 = arith.truncf %197 : vector<8x32xf32> to vector<8x32xbf16>
    %cst_78 = arith.constant dense<0.000000e+00> : vector<8x128xf32>
    %199 = tpu.matmul %198, %195, %cst_78 {dimension_numbers = #tpu.dot_dimension_numbers<[1], [0], [0], [1], [0, 0, 1, 1], [], []>} : vector<8x32xbf16>, vector<32x128xbf16>, vector<8x128xf32> -> vector<8x128xf32>
    %cst_79 = arith.constant dense<0xFF800000> : vector<128xf32>
    %200 = vector.multi_reduction <maximumf>, %199, %cst_79 [0] : vector<8x128xf32> to vector<128xf32>
    %201 = vector.shape_cast %200 : vector<128xf32> to vector<1x128xf32>
    %202 = vector.broadcast %201 : vector<1x128xf32> to vector<8x128xf32>
    %203 = arith.subf %199, %202 : vector<8x128xf32>
    %204 = math.exp %203 : vector<8x128xf32>
    %cst_80 = arith.constant dense<0.000000e+00> : vector<128xf32>
    %205 = vector.multi_reduction <add>, %204, %cst_80 [0] : vector<8x128xf32> to vector<128xf32>
    %206 = vector.shape_cast %205 : vector<128xf32> to vector<1x128xf32>
    %207 = tpu.reciprocal %206 {approx = true} : vector<1x128xf32> -> vector<1x128xf32>
    %208 = vector.broadcast %207 : vector<1x128xf32> to vector<8x128xf32>
    %209 = arith.mulf %204, %208 : vector<8x128xf32>
    %210 = arith.truncf %197 : vector<8x32xf32> to vector<8x32xbf16>
    %cst_81 = arith.constant dense<0.000000e+00> : vector<8x128xf32>
    %211 = tpu.matmul %210, %195, %cst_81 {dimension_numbers = #tpu.dot_dimension_numbers<[1], [0], [0], [1], [0, 0, 1, 1], [], []>} : vector<8x32xbf16>, vector<32x128xbf16>, vector<8x128xf32> -> vector<8x128xf32>
    %cst_82 = arith.constant dense<0.000000e+00> : vector<8x8xf32>
    %212 = tpu.matmul %210, %210, %cst_82 {dimension_numbers = #tpu.dot_dimension_numbers<[1], [1], [0], [0], [0, 0, 1, 0], [], []>} : vector<8x32xbf16>, vector<8x32xbf16>, vector<8x8xf32> -> vector<8x8xf32>
    %213 = arith.truncf %212 : vector<8x8xf32> to vector<8x8xbf16>
    %214 = arith.truncf %209 : vector<8x128xf32> to vector<8x128xbf16>
    %cst_83 = arith.constant dense<0.000000e+00> : vector<8x128xf32>
    %215 = tpu.matmul %213, %214, %cst_83 {dimension_numbers = #tpu.dot_dimension_numbers<[1], [0], [0], [1], [0, 0, 1, 1], [], []>} : vector<8x8xbf16>, vector<8x128xbf16>, vector<8x128xf32> -> vector<8x128xf32>
    %216 = arith.mulf %209, %211 : vector<8x128xf32>
    %cst_84 = arith.constant 9.99999997E-7 : f32
    %217 = vector.broadcast %cst_84 : f32 to vector<8x128xf32>
    %218 = arith.addf %215, %217 : vector<8x128xf32>
    %219 = tpu.reciprocal %218 {approx = true} : vector<8x128xf32> -> vector<8x128xf32>
    %220 = arith.mulf %216, %219 : vector<8x128xf32>
    %221 = arith.truncf %220 : vector<8x128xf32> to vector<8x128xbf16>
    %222 = arith.truncf %197 : vector<8x32xf32> to vector<8x32xbf16>
    %cst_85 = arith.constant dense<0.000000e+00> : vector<8x32xf32>
    %223 = tpu.matmul %221, %195, %cst_85 {dimension_numbers = #tpu.dot_dimension_numbers<[1], [1], [0], [0], [0, 0, 1, 0], [], []>} : vector<8x128xbf16>, vector<32x128xbf16>, vector<8x32xf32> -> vector<8x32xf32>
    %cst_86 = arith.constant dense<0.000000e+00> : vector<8x8xf32>
    %224 = tpu.matmul %221, %221, %cst_86 {dimension_numbers = #tpu.dot_dimension_numbers<[1], [1], [0], [0], [0, 0, 1, 0], [], []>} : vector<8x128xbf16>, vector<8x128xbf16>, vector<8x8xf32> -> vector<8x8xf32>
    %225 = arith.truncf %224 : vector<8x8xf32> to vector<8x8xbf16>
    %cst_87 = arith.constant dense<0.000000e+00> : vector<8x32xf32>
    %226 = tpu.matmul %225, %222, %cst_87 {dimension_numbers = #tpu.dot_dimension_numbers<[1], [0], [0], [1], [0, 0, 1, 1], [], []>} : vector<8x8xbf16>, vector<8x32xbf16>, vector<8x32xf32> -> vector<8x32xf32>
    %227 = arith.mulf %197, %223 : vector<8x32xf32>
    %cst_88 = arith.constant 9.99999997E-7 : f32
    %228 = vector.broadcast %cst_88 : f32 to vector<8x32xf32>
    %229 = arith.addf %226, %228 : vector<8x32xf32>
    %230 = tpu.reciprocal %229 {approx = true} : vector<8x32xf32> -> vector<8x32xf32>
    %231 = arith.mulf %227, %230 : vector<8x32xf32>
    %232 = arith.truncf %231 : vector<8x32xf32> to vector<8x32xbf16>
    %cst_89 = arith.constant dense<0.000000e+00> : vector<8x128xf32>
    %233 = tpu.matmul %232, %195, %cst_89 {dimension_numbers = #tpu.dot_dimension_numbers<[1], [0], [0], [1], [0, 0, 1, 1], [], []>} : vector<8x32xbf16>, vector<32x128xbf16>, vector<8x128xf32> -> vector<8x128xf32>
    %cst_90 = arith.constant dense<0.000000e+00> : vector<8x8xf32>
    %234 = tpu.matmul %232, %232, %cst_90 {dimension_numbers = #tpu.dot_dimension_numbers<[1], [1], [0], [0], [0, 0, 1, 0], [], []>} : vector<8x32xbf16>, vector<8x32xbf16>, vector<8x8xf32> -> vector<8x8xf32>
    %235 = arith.truncf %234 : vector<8x8xf32> to vector<8x8xbf16>
    %236 = arith.truncf %220 : vector<8x128xf32> to vector<8x128xbf16>
    %cst_91 = arith.constant dense<0.000000e+00> : vector<8x128xf32>
    %237 = tpu.matmul %235, %236, %cst_91 {dimension_numbers = #tpu.dot_dimension_numbers<[1], [0], [0], [1], [0, 0, 1, 1], [], []>} : vector<8x8xbf16>, vector<8x128xbf16>, vector<8x128xf32> -> vector<8x128xf32>
    %238 = arith.mulf %220, %233 : vector<8x128xf32>
    %cst_92 = arith.constant 9.99999997E-7 : f32
    %239 = vector.broadcast %cst_92 : f32 to vector<8x128xf32>
    %240 = arith.addf %237, %239 : vector<8x128xf32>
    %241 = tpu.reciprocal %240 {approx = true} : vector<8x128xf32> -> vector<8x128xf32>
    %242 = arith.mulf %238, %241 : vector<8x128xf32>
    %243 = arith.truncf %242 : vector<8x128xf32> to vector<8x128xbf16>
    %244 = arith.truncf %231 : vector<8x32xf32> to vector<8x32xbf16>
    %cst_93 = arith.constant dense<0.000000e+00> : vector<8x32xf32>
    %245 = tpu.matmul %243, %195, %cst_93 {dimension_numbers = #tpu.dot_dimension_numbers<[1], [1], [0], [0], [0, 0, 1, 0], [], []>} : vector<8x128xbf16>, vector<32x128xbf16>, vector<8x32xf32> -> vector<8x32xf32>
    %cst_94 = arith.constant dense<0.000000e+00> : vector<8x8xf32>
    %246 = tpu.matmul %243, %243, %cst_94 {dimension_numbers = #tpu.dot_dimension_numbers<[1], [1], [0], [0], [0, 0, 1, 0], [], []>} : vector<8x128xbf16>, vector<8x128xbf16>, vector<8x8xf32> -> vector<8x8xf32>
    %247 = arith.truncf %246 : vector<8x8xf32> to vector<8x8xbf16>
    %cst_95 = arith.constant dense<0.000000e+00> : vector<8x32xf32>
    %248 = tpu.matmul %247, %244, %cst_95 {dimension_numbers = #tpu.dot_dimension_numbers<[1], [0], [0], [1], [0, 0, 1, 1], [], []>} : vector<8x8xbf16>, vector<8x32xbf16>, vector<8x32xf32> -> vector<8x32xf32>
    %249 = arith.mulf %231, %245 : vector<8x32xf32>
    %cst_96 = arith.constant 9.99999997E-7 : f32
    %250 = vector.broadcast %cst_96 : f32 to vector<8x32xf32>
    %251 = arith.addf %248, %250 : vector<8x32xf32>
    %252 = tpu.reciprocal %251 {approx = true} : vector<8x32xf32> -> vector<8x32xf32>
    %253 = arith.mulf %249, %252 : vector<8x32xf32>
    %254 = arith.truncf %253 : vector<8x32xf32> to vector<8x32xbf16>
    %cst_97 = arith.constant dense<0.000000e+00> : vector<8x128xf32>
    %255 = tpu.matmul %254, %195, %cst_97 {dimension_numbers = #tpu.dot_dimension_numbers<[1], [0], [0], [1], [0, 0, 1, 1], [], []>} : vector<8x32xbf16>, vector<32x128xbf16>, vector<8x128xf32> -> vector<8x128xf32>
    %cst_98 = arith.constant dense<0.000000e+00> : vector<8x8xf32>
    %256 = tpu.matmul %254, %254, %cst_98 {dimension_numbers = #tpu.dot_dimension_numbers<[1], [1], [0], [0], [0, 0, 1, 0], [], []>} : vector<8x32xbf16>, vector<8x32xbf16>, vector<8x8xf32> -> vector<8x8xf32>
    %257 = arith.truncf %256 : vector<8x8xf32> to vector<8x8xbf16>
    %258 = arith.truncf %242 : vector<8x128xf32> to vector<8x128xbf16>
    %cst_99 = arith.constant dense<0.000000e+00> : vector<8x128xf32>
    %259 = tpu.matmul %257, %258, %cst_99 {dimension_numbers = #tpu.dot_dimension_numbers<[1], [0], [0], [1], [0, 0, 1, 1], [], []>} : vector<8x8xbf16>, vector<8x128xbf16>, vector<8x128xf32> -> vector<8x128xf32>
    %260 = arith.mulf %242, %255 : vector<8x128xf32>
    %cst_100 = arith.constant 9.99999997E-7 : f32
    %261 = vector.broadcast %cst_100 : f32 to vector<8x128xf32>
    %262 = arith.addf %259, %261 : vector<8x128xf32>
    %263 = tpu.reciprocal %262 {approx = true} : vector<8x128xf32> -> vector<8x128xf32>
    %264 = arith.mulf %260, %263 : vector<8x128xf32>
    %265 = arith.truncf %264 : vector<8x128xf32> to vector<8x128xbf16>
    %266 = arith.truncf %253 : vector<8x32xf32> to vector<8x32xbf16>
    %cst_101 = arith.constant dense<0.000000e+00> : vector<8x32xf32>
    %267 = tpu.matmul %265, %195, %cst_101 {dimension_numbers = #tpu.dot_dimension_numbers<[1], [1], [0], [0], [0, 0, 1, 0], [], []>} : vector<8x128xbf16>, vector<32x128xbf16>, vector<8x32xf32> -> vector<8x32xf32>
    %cst_102 = arith.constant dense<0.000000e+00> : vector<8x8xf32>
    %268 = tpu.matmul %265, %265, %cst_102 {dimension_numbers = #tpu.dot_dimension_numbers<[1], [1], [0], [0], [0, 0, 1, 0], [], []>} : vector<8x128xbf16>, vector<8x128xbf16>, vector<8x8xf32> -> vector<8x8xf32>
    %269 = arith.truncf %268 : vector<8x8xf32> to vector<8x8xbf16>
    %cst_103 = arith.constant dense<0.000000e+00> : vector<8x32xf32>
    %270 = tpu.matmul %269, %266, %cst_103 {dimension_numbers = #tpu.dot_dimension_numbers<[1], [0], [0], [1], [0, 0, 1, 1], [], []>} : vector<8x8xbf16>, vector<8x32xbf16>, vector<8x32xf32> -> vector<8x32xf32>
    %271 = arith.mulf %253, %267 : vector<8x32xf32>
    %cst_104 = arith.constant 9.99999997E-7 : f32
    %272 = vector.broadcast %cst_104 : f32 to vector<8x32xf32>
    %273 = arith.addf %270, %272 : vector<8x32xf32>
    %274 = tpu.reciprocal %273 {approx = true} : vector<8x32xf32> -> vector<8x32xf32>
    %275 = arith.mulf %271, %274 : vector<8x32xf32>
    %276 = arith.truncf %275 : vector<8x32xf32> to vector<8x32xbf16>
    %cst_105 = arith.constant dense<0.000000e+00> : vector<8x128xf32>
    %277 = tpu.matmul %276, %195, %cst_105 {dimension_numbers = #tpu.dot_dimension_numbers<[1], [0], [0], [1], [0, 0, 1, 1], [], []>} : vector<8x32xbf16>, vector<32x128xbf16>, vector<8x128xf32> -> vector<8x128xf32>
    %cst_106 = arith.constant dense<0.000000e+00> : vector<8x8xf32>
    %278 = tpu.matmul %276, %276, %cst_106 {dimension_numbers = #tpu.dot_dimension_numbers<[1], [1], [0], [0], [0, 0, 1, 0], [], []>} : vector<8x32xbf16>, vector<8x32xbf16>, vector<8x8xf32> -> vector<8x8xf32>
    %279 = arith.truncf %278 : vector<8x8xf32> to vector<8x8xbf16>
    %280 = arith.truncf %264 : vector<8x128xf32> to vector<8x128xbf16>
    %cst_107 = arith.constant dense<0.000000e+00> : vector<8x128xf32>
    %281 = tpu.matmul %279, %280, %cst_107 {dimension_numbers = #tpu.dot_dimension_numbers<[1], [0], [0], [1], [0, 0, 1, 1], [], []>} : vector<8x8xbf16>, vector<8x128xbf16>, vector<8x128xf32> -> vector<8x128xf32>
    %282 = arith.mulf %264, %277 : vector<8x128xf32>
    %cst_108 = arith.constant 9.99999997E-7 : f32
    %283 = vector.broadcast %cst_108 : f32 to vector<8x128xf32>
    %284 = arith.addf %281, %283 : vector<8x128xf32>
    %285 = tpu.reciprocal %284 {approx = true} : vector<8x128xf32> -> vector<8x128xf32>
    %286 = arith.mulf %282, %285 : vector<8x128xf32>
    %287 = arith.truncf %286 : vector<8x128xf32> to vector<8x128xbf16>
    %288 = arith.truncf %275 : vector<8x32xf32> to vector<8x32xbf16>
    %cst_109 = arith.constant dense<0.000000e+00> : vector<8x32xf32>
    %289 = tpu.matmul %287, %195, %cst_109 {dimension_numbers = #tpu.dot_dimension_numbers<[1], [1], [0], [0], [0, 0, 1, 0], [], []>} : vector<8x128xbf16>, vector<32x128xbf16>, vector<8x32xf32> -> vector<8x32xf32>
    %cst_110 = arith.constant dense<0.000000e+00> : vector<8x8xf32>
    %290 = tpu.matmul %287, %287, %cst_110 {dimension_numbers = #tpu.dot_dimension_numbers<[1], [1], [0], [0], [0, 0, 1, 0], [], []>} : vector<8x128xbf16>, vector<8x128xbf16>, vector<8x8xf32> -> vector<8x8xf32>
    %291 = arith.truncf %290 : vector<8x8xf32> to vector<8x8xbf16>
    %cst_111 = arith.constant dense<0.000000e+00> : vector<8x32xf32>
    %292 = tpu.matmul %291, %288, %cst_111 {dimension_numbers = #tpu.dot_dimension_numbers<[1], [0], [0], [1], [0, 0, 1, 1], [], []>} : vector<8x8xbf16>, vector<8x32xbf16>, vector<8x32xf32> -> vector<8x32xf32>
    %293 = arith.mulf %275, %289 : vector<8x32xf32>
    %cst_112 = arith.constant 9.99999997E-7 : f32
    %294 = vector.broadcast %cst_112 : f32 to vector<8x32xf32>
    %295 = arith.addf %292, %294 : vector<8x32xf32>
    %296 = tpu.reciprocal %295 {approx = true} : vector<8x32xf32> -> vector<8x32xf32>
    %297 = arith.mulf %293, %296 : vector<8x32xf32>
    %298 = arith.truncf %297 : vector<8x32xf32> to vector<8x32xbf16>
    %cst_113 = arith.constant dense<0.000000e+00> : vector<8x128xf32>
    %299 = tpu.matmul %298, %195, %cst_113 {dimension_numbers = #tpu.dot_dimension_numbers<[1], [0], [0], [1], [0, 0, 1, 1], [], []>} : vector<8x32xbf16>, vector<32x128xbf16>, vector<8x128xf32> -> vector<8x128xf32>
    %cst_114 = arith.constant dense<0.000000e+00> : vector<8x8xf32>
    %300 = tpu.matmul %298, %298, %cst_114 {dimension_numbers = #tpu.dot_dimension_numbers<[1], [1], [0], [0], [0, 0, 1, 0], [], []>} : vector<8x32xbf16>, vector<8x32xbf16>, vector<8x8xf32> -> vector<8x8xf32>
    %301 = arith.truncf %300 : vector<8x8xf32> to vector<8x8xbf16>
    %302 = arith.truncf %286 : vector<8x128xf32> to vector<8x128xbf16>
    %cst_115 = arith.constant dense<0.000000e+00> : vector<8x128xf32>
    %303 = tpu.matmul %301, %302, %cst_115 {dimension_numbers = #tpu.dot_dimension_numbers<[1], [0], [0], [1], [0, 0, 1, 1], [], []>} : vector<8x8xbf16>, vector<8x128xbf16>, vector<8x128xf32> -> vector<8x128xf32>
    %304 = arith.mulf %286, %299 : vector<8x128xf32>
    %cst_116 = arith.constant 9.99999997E-7 : f32
    %305 = vector.broadcast %cst_116 : f32 to vector<8x128xf32>
    %306 = arith.addf %303, %305 : vector<8x128xf32>
    %307 = tpu.reciprocal %306 {approx = true} : vector<8x128xf32> -> vector<8x128xf32>
    %308 = arith.mulf %304, %307 : vector<8x128xf32>
    %309 = arith.truncf %308 : vector<8x128xf32> to vector<8x128xbf16>
    %310 = arith.truncf %297 : vector<8x32xf32> to vector<8x32xbf16>
    %cst_117 = arith.constant dense<0.000000e+00> : vector<8x32xf32>
    %311 = tpu.matmul %309, %195, %cst_117 {dimension_numbers = #tpu.dot_dimension_numbers<[1], [1], [0], [0], [0, 0, 1, 0], [], []>} : vector<8x128xbf16>, vector<32x128xbf16>, vector<8x32xf32> -> vector<8x32xf32>
    %cst_118 = arith.constant dense<0.000000e+00> : vector<8x8xf32>
    %312 = tpu.matmul %309, %309, %cst_118 {dimension_numbers = #tpu.dot_dimension_numbers<[1], [1], [0], [0], [0, 0, 1, 0], [], []>} : vector<8x128xbf16>, vector<8x128xbf16>, vector<8x8xf32> -> vector<8x8xf32>
    %313 = arith.truncf %312 : vector<8x8xf32> to vector<8x8xbf16>
    %cst_119 = arith.constant dense<0.000000e+00> : vector<8x32xf32>
    %314 = tpu.matmul %313, %310, %cst_119 {dimension_numbers = #tpu.dot_dimension_numbers<[1], [0], [0], [1], [0, 0, 1, 1], [], []>} : vector<8x8xbf16>, vector<8x32xbf16>, vector<8x32xf32> -> vector<8x32xf32>
    %315 = arith.mulf %297, %311 : vector<8x32xf32>
    %cst_120 = arith.constant 9.99999997E-7 : f32
    %316 = vector.broadcast %cst_120 : f32 to vector<8x32xf32>
    %317 = arith.addf %314, %316 : vector<8x32xf32>
    %318 = tpu.reciprocal %317 {approx = true} : vector<8x32xf32> -> vector<8x32xf32>
    %319 = arith.mulf %315, %318 : vector<8x32xf32>
    %320 = arith.truncf %319 : vector<8x32xf32> to vector<8x32xbf16>
    %cst_121 = arith.constant dense<0.000000e+00> : vector<8x128xf32>
    %321 = tpu.matmul %320, %195, %cst_121 {dimension_numbers = #tpu.dot_dimension_numbers<[1], [0], [0], [1], [0, 0, 1, 1], [], []>} : vector<8x32xbf16>, vector<32x128xbf16>, vector<8x128xf32> -> vector<8x128xf32>
    %cst_122 = arith.constant dense<0.000000e+00> : vector<8x8xf32>
    %322 = tpu.matmul %320, %320, %cst_122 {dimension_numbers = #tpu.dot_dimension_numbers<[1], [1], [0], [0], [0, 0, 1, 0], [], []>} : vector<8x32xbf16>, vector<8x32xbf16>, vector<8x8xf32> -> vector<8x8xf32>
    %323 = arith.truncf %322 : vector<8x8xf32> to vector<8x8xbf16>
    %324 = arith.truncf %308 : vector<8x128xf32> to vector<8x128xbf16>
    %cst_123 = arith.constant dense<0.000000e+00> : vector<8x128xf32>
    %325 = tpu.matmul %323, %324, %cst_123 {dimension_numbers = #tpu.dot_dimension_numbers<[1], [0], [0], [1], [0, 0, 1, 1], [], []>} : vector<8x8xbf16>, vector<8x128xbf16>, vector<8x128xf32> -> vector<8x128xf32>
    %326 = arith.mulf %308, %321 : vector<8x128xf32>
    %cst_124 = arith.constant 9.99999997E-7 : f32
    %327 = vector.broadcast %cst_124 : f32 to vector<8x128xf32>
    %328 = arith.addf %325, %327 : vector<8x128xf32>
    %329 = tpu.reciprocal %328 {approx = true} : vector<8x128xf32> -> vector<8x128xf32>
    %330 = arith.mulf %326, %329 : vector<8x128xf32>
    %331 = arith.truncf %330 : vector<8x128xf32> to vector<8x128xbf16>
    %332 = arith.truncf %319 : vector<8x32xf32> to vector<8x32xbf16>
    %cst_125 = arith.constant dense<0.000000e+00> : vector<8x32xf32>
    %333 = tpu.matmul %331, %195, %cst_125 {dimension_numbers = #tpu.dot_dimension_numbers<[1], [1], [0], [0], [0, 0, 1, 0], [], []>} : vector<8x128xbf16>, vector<32x128xbf16>, vector<8x32xf32> -> vector<8x32xf32>
    %cst_126 = arith.constant dense<0.000000e+00> : vector<8x8xf32>
    %334 = tpu.matmul %331, %331, %cst_126 {dimension_numbers = #tpu.dot_dimension_numbers<[1], [1], [0], [0], [0, 0, 1, 0], [], []>} : vector<8x128xbf16>, vector<8x128xbf16>, vector<8x8xf32> -> vector<8x8xf32>
    %335 = arith.truncf %334 : vector<8x8xf32> to vector<8x8xbf16>
    %cst_127 = arith.constant dense<0.000000e+00> : vector<8x32xf32>
    %336 = tpu.matmul %335, %332, %cst_127 {dimension_numbers = #tpu.dot_dimension_numbers<[1], [0], [0], [1], [0, 0, 1, 1], [], []>} : vector<8x8xbf16>, vector<8x32xbf16>, vector<8x32xf32> -> vector<8x32xf32>
    %337 = arith.mulf %319, %333 : vector<8x32xf32>
    %cst_128 = arith.constant 9.99999997E-7 : f32
    %338 = vector.broadcast %cst_128 : f32 to vector<8x32xf32>
    %339 = arith.addf %336, %338 : vector<8x32xf32>
    %340 = tpu.reciprocal %339 {approx = true} : vector<8x32xf32> -> vector<8x32xf32>
    %341 = arith.mulf %337, %340 : vector<8x32xf32>
    %342 = arith.truncf %341 : vector<8x32xf32> to vector<8x32xbf16>
    %cst_129 = arith.constant dense<0.000000e+00> : vector<8x128xf32>
    %343 = tpu.matmul %342, %195, %cst_129 {dimension_numbers = #tpu.dot_dimension_numbers<[1], [0], [0], [1], [0, 0, 1, 1], [], []>} : vector<8x32xbf16>, vector<32x128xbf16>, vector<8x128xf32> -> vector<8x128xf32>
    %cst_130 = arith.constant dense<0.000000e+00> : vector<8x8xf32>
    %344 = tpu.matmul %342, %342, %cst_130 {dimension_numbers = #tpu.dot_dimension_numbers<[1], [1], [0], [0], [0, 0, 1, 0], [], []>} : vector<8x32xbf16>, vector<8x32xbf16>, vector<8x8xf32> -> vector<8x8xf32>
    %345 = arith.truncf %344 : vector<8x8xf32> to vector<8x8xbf16>
    %346 = arith.truncf %330 : vector<8x128xf32> to vector<8x128xbf16>
    %cst_131 = arith.constant dense<0.000000e+00> : vector<8x128xf32>
    %347 = tpu.matmul %345, %346, %cst_131 {dimension_numbers = #tpu.dot_dimension_numbers<[1], [0], [0], [1], [0, 0, 1, 1], [], []>} : vector<8x8xbf16>, vector<8x128xbf16>, vector<8x128xf32> -> vector<8x128xf32>
    %348 = arith.mulf %330, %343 : vector<8x128xf32>
    %cst_132 = arith.constant 9.99999997E-7 : f32
    %349 = vector.broadcast %cst_132 : f32 to vector<8x128xf32>
    %350 = arith.addf %347, %349 : vector<8x128xf32>
    %351 = tpu.reciprocal %350 {approx = true} : vector<8x128xf32> -> vector<8x128xf32>
    %352 = arith.mulf %348, %351 : vector<8x128xf32>
    %353 = arith.truncf %352 : vector<8x128xf32> to vector<8x128xbf16>
    %354 = arith.truncf %341 : vector<8x32xf32> to vector<8x32xbf16>
    %cst_133 = arith.constant dense<0.000000e+00> : vector<8x32xf32>
    %355 = tpu.matmul %353, %195, %cst_133 {dimension_numbers = #tpu.dot_dimension_numbers<[1], [1], [0], [0], [0, 0, 1, 0], [], []>} : vector<8x128xbf16>, vector<32x128xbf16>, vector<8x32xf32> -> vector<8x32xf32>
    %cst_134 = arith.constant dense<0.000000e+00> : vector<8x8xf32>
    %356 = tpu.matmul %353, %353, %cst_134 {dimension_numbers = #tpu.dot_dimension_numbers<[1], [1], [0], [0], [0, 0, 1, 0], [], []>} : vector<8x128xbf16>, vector<8x128xbf16>, vector<8x8xf32> -> vector<8x8xf32>
    %357 = arith.truncf %356 : vector<8x8xf32> to vector<8x8xbf16>
    %cst_135 = arith.constant dense<0.000000e+00> : vector<8x32xf32>
    %358 = tpu.matmul %357, %354, %cst_135 {dimension_numbers = #tpu.dot_dimension_numbers<[1], [0], [0], [1], [0, 0, 1, 1], [], []>} : vector<8x8xbf16>, vector<8x32xbf16>, vector<8x32xf32> -> vector<8x32xf32>
    %359 = arith.mulf %341, %355 : vector<8x32xf32>
    %cst_136 = arith.constant 9.99999997E-7 : f32
    %360 = vector.broadcast %cst_136 : f32 to vector<8x32xf32>
    %361 = arith.addf %358, %360 : vector<8x32xf32>
    %362 = tpu.reciprocal %361 {approx = true} : vector<8x32xf32> -> vector<8x32xf32>
    %363 = arith.mulf %359, %362 : vector<8x32xf32>
    %364 = arith.truncf %363 : vector<8x32xf32> to vector<8x32xbf16>
    %cst_137 = arith.constant dense<0.000000e+00> : vector<8x128xf32>
    %365 = tpu.matmul %364, %195, %cst_137 {dimension_numbers = #tpu.dot_dimension_numbers<[1], [0], [0], [1], [0, 0, 1, 1], [], []>} : vector<8x32xbf16>, vector<32x128xbf16>, vector<8x128xf32> -> vector<8x128xf32>
    %cst_138 = arith.constant dense<0.000000e+00> : vector<8x8xf32>
    %366 = tpu.matmul %364, %364, %cst_138 {dimension_numbers = #tpu.dot_dimension_numbers<[1], [1], [0], [0], [0, 0, 1, 0], [], []>} : vector<8x32xbf16>, vector<8x32xbf16>, vector<8x8xf32> -> vector<8x8xf32>
    %367 = arith.truncf %366 : vector<8x8xf32> to vector<8x8xbf16>
    %368 = arith.truncf %352 : vector<8x128xf32> to vector<8x128xbf16>
    %cst_139 = arith.constant dense<0.000000e+00> : vector<8x128xf32>
    %369 = tpu.matmul %367, %368, %cst_139 {dimension_numbers = #tpu.dot_dimension_numbers<[1], [0], [0], [1], [0, 0, 1, 1], [], []>} : vector<8x8xbf16>, vector<8x128xbf16>, vector<8x128xf32> -> vector<8x128xf32>
    %370 = arith.mulf %352, %365 : vector<8x128xf32>
    %cst_140 = arith.constant 9.99999997E-7 : f32
    %371 = vector.broadcast %cst_140 : f32 to vector<8x128xf32>
    %372 = arith.addf %369, %371 : vector<8x128xf32>
    %373 = tpu.reciprocal %372 {approx = true} : vector<8x128xf32> -> vector<8x128xf32>
    %374 = arith.mulf %370, %373 : vector<8x128xf32>
    %375 = arith.truncf %363 : vector<8x32xf32> to vector<8x32xbf16>
    %376 = arith.truncf %374 : vector<8x128xf32> to vector<8x128xbf16>
    %cst_141 = arith.constant dense<0.000000e+00> : vector<32x128xf32>
    %377 = tpu.matmul %375, %376, %cst_141 {dimension_numbers = #tpu.dot_dimension_numbers<[0], [0], [1], [1], [0, 1, 1, 1], [], []>} : vector<8x32xbf16>, vector<8x128xbf16>, vector<32x128xf32> -> vector<32x128xf32>
    %c0_142 = arith.constant 0 : index
    %c128 = arith.constant 128 : index
    %378 = vector.load %arg1[%c0_142, %c128] : memref<33x512xf32, #tpu.memory_space<vmem>>, vector<32x128xf32>
    %379 = arith.addf %378, %377 : vector<32x128xf32>
    %cst_143 = arith.constant 0.000000e+00 : f32
    %380 = vector.broadcast %cst_143 : f32 to vector<32x128xf32>
    %381 = arith.maximumf %379, %380 : vector<32x128xf32>
    %c0_144 = arith.constant 0 : index
    %c128_145 = arith.constant 128 : index
    %382 = vector.load %arg4[%c0_144, %c128_145] : memref<32x512xf32, #tpu.memory_space<vmem>>, vector<32x128xf32>
    tpu.vector_store %arg4[%c0_144, %c128_145], %381 {strides = array<i32>} : memref<32x512xf32, #tpu.memory_space<vmem>>, vector<32x128xf32>,
    %383 = vector.extract_strided_slice %4 {offsets = [0, 256], sizes = [32, 128], strides = [1, 1]} : vector<32x512xf32> to vector<32x128xf32>
    %384 = arith.truncf %383 : vector<32x128xf32> to vector<32x128xbf16>
    %c2 = arith.constant 2 : index
    %c0_146 = arith.constant 0 : index
    %c0_147 = arith.constant 0 : index
    %385 = vector.load %arg3[%c2, %c0_146, %c0_147] : memref<4x8x32xf32, #tpu.memory_space<vmem>>, vector<1x8x32xf32>
    %386 = vector.shape_cast %385 : vector<1x8x32xf32> to vector<8x32xf32>
    %387 = arith.truncf %386 : vector<8x32xf32> to vector<8x32xbf16>
    %cst_148 = arith.constant dense<0.000000e+00> : vector<8x128xf32>
    %388 = tpu.matmul %387, %384, %cst_148 {dimension_numbers = #tpu.dot_dimension_numbers<[1], [0], [0], [1], [0, 0, 1, 1], [], []>} : vector<8x32xbf16>, vector<32x128xbf16>, vector<8x128xf32> -> vector<8x128xf32>
    %cst_149 = arith.constant dense<0xFF800000> : vector<128xf32>
    %389 = vector.multi_reduction <maximumf>, %388, %cst_149 [0] : vector<8x128xf32> to vector<128xf32>
    %390 = vector.shape_cast %389 : vector<128xf32> to vector<1x128xf32>
    %391 = vector.broadcast %390 : vector<1x128xf32> to vector<8x128xf32>
    %392 = arith.subf %388, %391 : vector<8x128xf32>
    %393 = math.exp %392 : vector<8x128xf32>
    %cst_150 = arith.constant dense<0.000000e+00> : vector<128xf32>
    %394 = vector.multi_reduction <add>, %393, %cst_150 [0] : vector<8x128xf32> to vector<128xf32>
    %395 = vector.shape_cast %394 : vector<128xf32> to vector<1x128xf32>
    %396 = tpu.reciprocal %395 {approx = true} : vector<1x128xf32> -> vector<1x128xf32>
    %397 = vector.broadcast %396 : vector<1x128xf32> to vector<8x128xf32>
    %398 = arith.mulf %393, %397 : vector<8x128xf32>
    %399 = arith.truncf %386 : vector<8x32xf32> to vector<8x32xbf16>
    %cst_151 = arith.constant dense<0.000000e+00> : vector<8x128xf32>
    %400 = tpu.matmul %399, %384, %cst_151 {dimension_numbers = #tpu.dot_dimension_numbers<[1], [0], [0], [1], [0, 0, 1, 1], [], []>} : vector<8x32xbf16>, vector<32x128xbf16>, vector<8x128xf32> -> vector<8x128xf32>
    %cst_152 = arith.constant dense<0.000000e+00> : vector<8x8xf32>
    %401 = tpu.matmul %399, %399, %cst_152 {dimension_numbers = #tpu.dot_dimension_numbers<[1], [1], [0], [0], [0, 0, 1, 0], [], []>} : vector<8x32xbf16>, vector<8x32xbf16>, vector<8x8xf32> -> vector<8x8xf32>
    %402 = arith.truncf %401 : vector<8x8xf32> to vector<8x8xbf16>
    %403 = arith.truncf %398 : vector<8x128xf32> to vector<8x128xbf16>
    %cst_153 = arith.constant dense<0.000000e+00> : vector<8x128xf32>
    %404 = tpu.matmul %402, %403, %cst_153 {dimension_numbers = #tpu.dot_dimension_numbers<[1], [0], [0], [1], [0, 0, 1, 1], [], []>} : vector<8x8xbf16>, vector<8x128xbf16>, vector<8x128xf32> -> vector<8x128xf32>
    %405 = arith.mulf %398, %400 : vector<8x128xf32>
    %cst_154 = arith.constant 9.99999997E-7 : f32
    %406 = vector.broadcast %cst_154 : f32 to vector<8x128xf32>
    %407 = arith.addf %404, %406 : vector<8x128xf32>
    %408 = tpu.reciprocal %407 {approx = true} : vector<8x128xf32> -> vector<8x128xf32>
    %409 = arith.mulf %405, %408 : vector<8x128xf32>
    %410 = arith.truncf %409 : vector<8x128xf32> to vector<8x128xbf16>
    %411 = arith.truncf %386 : vector<8x32xf32> to vector<8x32xbf16>
    %cst_155 = arith.constant dense<0.000000e+00> : vector<8x32xf32>
    %412 = tpu.matmul %410, %384, %cst_155 {dimension_numbers = #tpu.dot_dimension_numbers<[1], [1], [0], [0], [0, 0, 1, 0], [], []>} : vector<8x128xbf16>, vector<32x128xbf16>, vector<8x32xf32> -> vector<8x32xf32>
    %cst_156 = arith.constant dense<0.000000e+00> : vector<8x8xf32>
    %413 = tpu.matmul %410, %410, %cst_156 {dimension_numbers = #tpu.dot_dimension_numbers<[1], [1], [0], [0], [0, 0, 1, 0], [], []>} : vector<8x128xbf16>, vector<8x128xbf16>, vector<8x8xf32> -> vector<8x8xf32>
    %414 = arith.truncf %413 : vector<8x8xf32> to vector<8x8xbf16>
    %cst_157 = arith.constant dense<0.000000e+00> : vector<8x32xf32>
    %415 = tpu.matmul %414, %411, %cst_157 {dimension_numbers = #tpu.dot_dimension_numbers<[1], [0], [0], [1], [0, 0, 1, 1], [], []>} : vector<8x8xbf16>, vector<8x32xbf16>, vector<8x32xf32> -> vector<8x32xf32>
    %416 = arith.mulf %386, %412 : vector<8x32xf32>
    %cst_158 = arith.constant 9.99999997E-7 : f32
    %417 = vector.broadcast %cst_158 : f32 to vector<8x32xf32>
    %418 = arith.addf %415, %417 : vector<8x32xf32>
    %419 = tpu.reciprocal %418 {approx = true} : vector<8x32xf32> -> vector<8x32xf32>
    %420 = arith.mulf %416, %419 : vector<8x32xf32>
    %421 = arith.truncf %420 : vector<8x32xf32> to vector<8x32xbf16>
    %cst_159 = arith.constant dense<0.000000e+00> : vector<8x128xf32>
    %422 = tpu.matmul %421, %384, %cst_159 {dimension_numbers = #tpu.dot_dimension_numbers<[1], [0], [0], [1], [0, 0, 1, 1], [], []>} : vector<8x32xbf16>, vector<32x128xbf16>, vector<8x128xf32> -> vector<8x128xf32>
    %cst_160 = arith.constant dense<0.000000e+00> : vector<8x8xf32>
    %423 = tpu.matmul %421, %421, %cst_160 {dimension_numbers = #tpu.dot_dimension_numbers<[1], [1], [0], [0], [0, 0, 1, 0], [], []>} : vector<8x32xbf16>, vector<8x32xbf16>, vector<8x8xf32> -> vector<8x8xf32>
    %424 = arith.truncf %423 : vector<8x8xf32> to vector<8x8xbf16>
    %425 = arith.truncf %409 : vector<8x128xf32> to vector<8x128xbf16>
    %cst_161 = arith.constant dense<0.000000e+00> : vector<8x128xf32>
    %426 = tpu.matmul %424, %425, %cst_161 {dimension_numbers = #tpu.dot_dimension_numbers<[1], [0], [0], [1], [0, 0, 1, 1], [], []>} : vector<8x8xbf16>, vector<8x128xbf16>, vector<8x128xf32> -> vector<8x128xf32>
    %427 = arith.mulf %409, %422 : vector<8x128xf32>
    %cst_162 = arith.constant 9.99999997E-7 : f32
    %428 = vector.broadcast %cst_162 : f32 to vector<8x128xf32>
    %429 = arith.addf %426, %428 : vector<8x128xf32>
    %430 = tpu.reciprocal %429 {approx = true} : vector<8x128xf32> -> vector<8x128xf32>
    %431 = arith.mulf %427, %430 : vector<8x128xf32>
    %432 = arith.truncf %431 : vector<8x128xf32> to vector<8x128xbf16>
    %433 = arith.truncf %420 : vector<8x32xf32> to vector<8x32xbf16>
    %cst_163 = arith.constant dense<0.000000e+00> : vector<8x32xf32>
    %434 = tpu.matmul %432, %384, %cst_163 {dimension_numbers = #tpu.dot_dimension_numbers<[1], [1], [0], [0], [0, 0, 1, 0], [], []>} : vector<8x128xbf16>, vector<32x128xbf16>, vector<8x32xf32> -> vector<8x32xf32>
    %cst_164 = arith.constant dense<0.000000e+00> : vector<8x8xf32>
    %435 = tpu.matmul %432, %432, %cst_164 {dimension_numbers = #tpu.dot_dimension_numbers<[1], [1], [0], [0], [0, 0, 1, 0], [], []>} : vector<8x128xbf16>, vector<8x128xbf16>, vector<8x8xf32> -> vector<8x8xf32>
    %436 = arith.truncf %435 : vector<8x8xf32> to vector<8x8xbf16>
    %cst_165 = arith.constant dense<0.000000e+00> : vector<8x32xf32>
    %437 = tpu.matmul %436, %433, %cst_165 {dimension_numbers = #tpu.dot_dimension_numbers<[1], [0], [0], [1], [0, 0, 1, 1], [], []>} : vector<8x8xbf16>, vector<8x32xbf16>, vector<8x32xf32> -> vector<8x32xf32>
    %438 = arith.mulf %420, %434 : vector<8x32xf32>
    %cst_166 = arith.constant 9.99999997E-7 : f32
    %439 = vector.broadcast %cst_166 : f32 to vector<8x32xf32>
    %440 = arith.addf %437, %439 : vector<8x32xf32>
    %441 = tpu.reciprocal %440 {approx = true} : vector<8x32xf32> -> vector<8x32xf32>
    %442 = arith.mulf %438, %441 : vector<8x32xf32>
    %443 = arith.truncf %442 : vector<8x32xf32> to vector<8x32xbf16>
    %cst_167 = arith.constant dense<0.000000e+00> : vector<8x128xf32>
    %444 = tpu.matmul %443, %384, %cst_167 {dimension_numbers = #tpu.dot_dimension_numbers<[1], [0], [0], [1], [0, 0, 1, 1], [], []>} : vector<8x32xbf16>, vector<32x128xbf16>, vector<8x128xf32> -> vector<8x128xf32>
    %cst_168 = arith.constant dense<0.000000e+00> : vector<8x8xf32>
    %445 = tpu.matmul %443, %443, %cst_168 {dimension_numbers = #tpu.dot_dimension_numbers<[1], [1], [0], [0], [0, 0, 1, 0], [], []>} : vector<8x32xbf16>, vector<8x32xbf16>, vector<8x8xf32> -> vector<8x8xf32>
    %446 = arith.truncf %445 : vector<8x8xf32> to vector<8x8xbf16>
    %447 = arith.truncf %431 : vector<8x128xf32> to vector<8x128xbf16>
    %cst_169 = arith.constant dense<0.000000e+00> : vector<8x128xf32>
    %448 = tpu.matmul %446, %447, %cst_169 {dimension_numbers = #tpu.dot_dimension_numbers<[1], [0], [0], [1], [0, 0, 1, 1], [], []>} : vector<8x8xbf16>, vector<8x128xbf16>, vector<8x128xf32> -> vector<8x128xf32>
    %449 = arith.mulf %431, %444 : vector<8x128xf32>
    %cst_170 = arith.constant 9.99999997E-7 : f32
    %450 = vector.broadcast %cst_170 : f32 to vector<8x128xf32>
    %451 = arith.addf %448, %450 : vector<8x128xf32>
    %452 = tpu.reciprocal %451 {approx = true} : vector<8x128xf32> -> vector<8x128xf32>
    %453 = arith.mulf %449, %452 : vector<8x128xf32>
    %454 = arith.truncf %453 : vector<8x128xf32> to vector<8x128xbf16>
    %455 = arith.truncf %442 : vector<8x32xf32> to vector<8x32xbf16>
    %cst_171 = arith.constant dense<0.000000e+00> : vector<8x32xf32>
    %456 = tpu.matmul %454, %384, %cst_171 {dimension_numbers = #tpu.dot_dimension_numbers<[1], [1], [0], [0], [0, 0, 1, 0], [], []>} : vector<8x128xbf16>, vector<32x128xbf16>, vector<8x32xf32> -> vector<8x32xf32>
    %cst_172 = arith.constant dense<0.000000e+00> : vector<8x8xf32>
    %457 = tpu.matmul %454, %454, %cst_172 {dimension_numbers = #tpu.dot_dimension_numbers<[1], [1], [0], [0], [0, 0, 1, 0], [], []>} : vector<8x128xbf16>, vector<8x128xbf16>, vector<8x8xf32> -> vector<8x8xf32>
    %458 = arith.truncf %457 : vector<8x8xf32> to vector<8x8xbf16>
    %cst_173 = arith.constant dense<0.000000e+00> : vector<8x32xf32>
    %459 = tpu.matmul %458, %455, %cst_173 {dimension_numbers = #tpu.dot_dimension_numbers<[1], [0], [0], [1], [0, 0, 1, 1], [], []>} : vector<8x8xbf16>, vector<8x32xbf16>, vector<8x32xf32> -> vector<8x32xf32>
    %460 = arith.mulf %442, %456 : vector<8x32xf32>
    %cst_174 = arith.constant 9.99999997E-7 : f32
    %461 = vector.broadcast %cst_174 : f32 to vector<8x32xf32>
    %462 = arith.addf %459, %461 : vector<8x32xf32>
    %463 = tpu.reciprocal %462 {approx = true} : vector<8x32xf32> -> vector<8x32xf32>
    %464 = arith.mulf %460, %463 : vector<8x32xf32>
    %465 = arith.truncf %464 : vector<8x32xf32> to vector<8x32xbf16>
    %cst_175 = arith.constant dense<0.000000e+00> : vector<8x128xf32>
    %466 = tpu.matmul %465, %384, %cst_175 {dimension_numbers = #tpu.dot_dimension_numbers<[1], [0], [0], [1], [0, 0, 1, 1], [], []>} : vector<8x32xbf16>, vector<32x128xbf16>, vector<8x128xf32> -> vector<8x128xf32>
    %cst_176 = arith.constant dense<0.000000e+00> : vector<8x8xf32>
    %467 = tpu.matmul %465, %465, %cst_176 {dimension_numbers = #tpu.dot_dimension_numbers<[1], [1], [0], [0], [0, 0, 1, 0], [], []>} : vector<8x32xbf16>, vector<8x32xbf16>, vector<8x8xf32> -> vector<8x8xf32>
    %468 = arith.truncf %467 : vector<8x8xf32> to vector<8x8xbf16>
    %469 = arith.truncf %453 : vector<8x128xf32> to vector<8x128xbf16>
    %cst_177 = arith.constant dense<0.000000e+00> : vector<8x128xf32>
    %470 = tpu.matmul %468, %469, %cst_177 {dimension_numbers = #tpu.dot_dimension_numbers<[1], [0], [0], [1], [0, 0, 1, 1], [], []>} : vector<8x8xbf16>, vector<8x128xbf16>, vector<8x128xf32> -> vector<8x128xf32>
    %471 = arith.mulf %453, %466 : vector<8x128xf32>
    %cst_178 = arith.constant 9.99999997E-7 : f32
    %472 = vector.broadcast %cst_178 : f32 to vector<8x128xf32>
    %473 = arith.addf %470, %472 : vector<8x128xf32>
    %474 = tpu.reciprocal %473 {approx = true} : vector<8x128xf32> -> vector<8x128xf32>
    %475 = arith.mulf %471, %474 : vector<8x128xf32>
    %476 = arith.truncf %475 : vector<8x128xf32> to vector<8x128xbf16>
    %477 = arith.truncf %464 : vector<8x32xf32> to vector<8x32xbf16>
    %cst_179 = arith.constant dense<0.000000e+00> : vector<8x32xf32>
    %478 = tpu.matmul %476, %384, %cst_179 {dimension_numbers = #tpu.dot_dimension_numbers<[1], [1], [0], [0], [0, 0, 1, 0], [], []>} : vector<8x128xbf16>, vector<32x128xbf16>, vector<8x32xf32> -> vector<8x32xf32>
    %cst_180 = arith.constant dense<0.000000e+00> : vector<8x8xf32>
    %479 = tpu.matmul %476, %476, %cst_180 {dimension_numbers = #tpu.dot_dimension_numbers<[1], [1], [0], [0], [0, 0, 1, 0], [], []>} : vector<8x128xbf16>, vector<8x128xbf16>, vector<8x8xf32> -> vector<8x8xf32>
    %480 = arith.truncf %479 : vector<8x8xf32> to vector<8x8xbf16>
    %cst_181 = arith.constant dense<0.000000e+00> : vector<8x32xf32>
    %481 = tpu.matmul %480, %477, %cst_181 {dimension_numbers = #tpu.dot_dimension_numbers<[1], [0], [0], [1], [0, 0, 1, 1], [], []>} : vector<8x8xbf16>, vector<8x32xbf16>, vector<8x32xf32> -> vector<8x32xf32>
    %482 = arith.mulf %464, %478 : vector<8x32xf32>
    %cst_182 = arith.constant 9.99999997E-7 : f32
    %483 = vector.broadcast %cst_182 : f32 to vector<8x32xf32>
    %484 = arith.addf %481, %483 : vector<8x32xf32>
    %485 = tpu.reciprocal %484 {approx = true} : vector<8x32xf32> -> vector<8x32xf32>
    %486 = arith.mulf %482, %485 : vector<8x32xf32>
    %487 = arith.truncf %486 : vector<8x32xf32> to vector<8x32xbf16>
    %cst_183 = arith.constant dense<0.000000e+00> : vector<8x128xf32>
    %488 = tpu.matmul %487, %384, %cst_183 {dimension_numbers = #tpu.dot_dimension_numbers<[1], [0], [0], [1], [0, 0, 1, 1], [], []>} : vector<8x32xbf16>, vector<32x128xbf16>, vector<8x128xf32> -> vector<8x128xf32>
    %cst_184 = arith.constant dense<0.000000e+00> : vector<8x8xf32>
    %489 = tpu.matmul %487, %487, %cst_184 {dimension_numbers = #tpu.dot_dimension_numbers<[1], [1], [0], [0], [0, 0, 1, 0], [], []>} : vector<8x32xbf16>, vector<8x32xbf16>, vector<8x8xf32> -> vector<8x8xf32>
    %490 = arith.truncf %489 : vector<8x8xf32> to vector<8x8xbf16>
    %491 = arith.truncf %475 : vector<8x128xf32> to vector<8x128xbf16>
    %cst_185 = arith.constant dense<0.000000e+00> : vector<8x128xf32>
    %492 = tpu.matmul %490, %491, %cst_185 {dimension_numbers = #tpu.dot_dimension_numbers<[1], [0], [0], [1], [0, 0, 1, 1], [], []>} : vector<8x8xbf16>, vector<8x128xbf16>, vector<8x128xf32> -> vector<8x128xf32>
    %493 = arith.mulf %475, %488 : vector<8x128xf32>
    %cst_186 = arith.constant 9.99999997E-7 : f32
    %494 = vector.broadcast %cst_186 : f32 to vector<8x128xf32>
    %495 = arith.addf %492, %494 : vector<8x128xf32>
    %496 = tpu.reciprocal %495 {approx = true} : vector<8x128xf32> -> vector<8x128xf32>
    %497 = arith.mulf %493, %496 : vector<8x128xf32>
    %498 = arith.truncf %497 : vector<8x128xf32> to vector<8x128xbf16>
    %499 = arith.truncf %486 : vector<8x32xf32> to vector<8x32xbf16>
    %cst_187 = arith.constant dense<0.000000e+00> : vector<8x32xf32>
    %500 = tpu.matmul %498, %384, %cst_187 {dimension_numbers = #tpu.dot_dimension_numbers<[1], [1], [0], [0], [0, 0, 1, 0], [], []>} : vector<8x128xbf16>, vector<32x128xbf16>, vector<8x32xf32> -> vector<8x32xf32>
    %cst_188 = arith.constant dense<0.000000e+00> : vector<8x8xf32>
    %501 = tpu.matmul %498, %498, %cst_188 {dimension_numbers = #tpu.dot_dimension_numbers<[1], [1], [0], [0], [0, 0, 1, 0], [], []>} : vector<8x128xbf16>, vector<8x128xbf16>, vector<8x8xf32> -> vector<8x8xf32>
    %502 = arith.truncf %501 : vector<8x8xf32> to vector<8x8xbf16>
    %cst_189 = arith.constant dense<0.000000e+00> : vector<8x32xf32>
    %503 = tpu.matmul %502, %499, %cst_189 {dimension_numbers = #tpu.dot_dimension_numbers<[1], [0], [0], [1], [0, 0, 1, 1], [], []>} : vector<8x8xbf16>, vector<8x32xbf16>, vector<8x32xf32> -> vector<8x32xf32>
    %504 = arith.mulf %486, %500 : vector<8x32xf32>
    %cst_190 = arith.constant 9.99999997E-7 : f32
    %505 = vector.broadcast %cst_190 : f32 to vector<8x32xf32>
    %506 = arith.addf %503, %505 : vector<8x32xf32>
    %507 = tpu.reciprocal %506 {approx = true} : vector<8x32xf32> -> vector<8x32xf32>
    %508 = arith.mulf %504, %507 : vector<8x32xf32>
    %509 = arith.truncf %508 : vector<8x32xf32> to vector<8x32xbf16>
    %cst_191 = arith.constant dense<0.000000e+00> : vector<8x128xf32>
    %510 = tpu.matmul %509, %384, %cst_191 {dimension_numbers = #tpu.dot_dimension_numbers<[1], [0], [0], [1], [0, 0, 1, 1], [], []>} : vector<8x32xbf16>, vector<32x128xbf16>, vector<8x128xf32> -> vector<8x128xf32>
    %cst_192 = arith.constant dense<0.000000e+00> : vector<8x8xf32>
    %511 = tpu.matmul %509, %509, %cst_192 {dimension_numbers = #tpu.dot_dimension_numbers<[1], [1], [0], [0], [0, 0, 1, 0], [], []>} : vector<8x32xbf16>, vector<8x32xbf16>, vector<8x8xf32> -> vector<8x8xf32>
    %512 = arith.truncf %511 : vector<8x8xf32> to vector<8x8xbf16>
    %513 = arith.truncf %497 : vector<8x128xf32> to vector<8x128xbf16>
    %cst_193 = arith.constant dense<0.000000e+00> : vector<8x128xf32>
    %514 = tpu.matmul %512, %513, %cst_193 {dimension_numbers = #tpu.dot_dimension_numbers<[1], [0], [0], [1], [0, 0, 1, 1], [], []>} : vector<8x8xbf16>, vector<8x128xbf16>, vector<8x128xf32> -> vector<8x128xf32>
    %515 = arith.mulf %497, %510 : vector<8x128xf32>
    %cst_194 = arith.constant 9.99999997E-7 : f32
    %516 = vector.broadcast %cst_194 : f32 to vector<8x128xf32>
    %517 = arith.addf %514, %516 : vector<8x128xf32>
    %518 = tpu.reciprocal %517 {approx = true} : vector<8x128xf32> -> vector<8x128xf32>
    %519 = arith.mulf %515, %518 : vector<8x128xf32>
    %520 = arith.truncf %519 : vector<8x128xf32> to vector<8x128xbf16>
    %521 = arith.truncf %508 : vector<8x32xf32> to vector<8x32xbf16>
    %cst_195 = arith.constant dense<0.000000e+00> : vector<8x32xf32>
    %522 = tpu.matmul %520, %384, %cst_195 {dimension_numbers = #tpu.dot_dimension_numbers<[1], [1], [0], [0], [0, 0, 1, 0], [], []>} : vector<8x128xbf16>, vector<32x128xbf16>, vector<8x32xf32> -> vector<8x32xf32>
    %cst_196 = arith.constant dense<0.000000e+00> : vector<8x8xf32>
    %523 = tpu.matmul %520, %520, %cst_196 {dimension_numbers = #tpu.dot_dimension_numbers<[1], [1], [0], [0], [0, 0, 1, 0], [], []>} : vector<8x128xbf16>, vector<8x128xbf16>, vector<8x8xf32> -> vector<8x8xf32>
    %524 = arith.truncf %523 : vector<8x8xf32> to vector<8x8xbf16>
    %cst_197 = arith.constant dense<0.000000e+00> : vector<8x32xf32>
    %525 = tpu.matmul %524, %521, %cst_197 {dimension_numbers = #tpu.dot_dimension_numbers<[1], [0], [0], [1], [0, 0, 1, 1], [], []>} : vector<8x8xbf16>, vector<8x32xbf16>, vector<8x32xf32> -> vector<8x32xf32>
    %526 = arith.mulf %508, %522 : vector<8x32xf32>
    %cst_198 = arith.constant 9.99999997E-7 : f32
    %527 = vector.broadcast %cst_198 : f32 to vector<8x32xf32>
    %528 = arith.addf %525, %527 : vector<8x32xf32>
    %529 = tpu.reciprocal %528 {approx = true} : vector<8x32xf32> -> vector<8x32xf32>
    %530 = arith.mulf %526, %529 : vector<8x32xf32>
    %531 = arith.truncf %530 : vector<8x32xf32> to vector<8x32xbf16>
    %cst_199 = arith.constant dense<0.000000e+00> : vector<8x128xf32>
    %532 = tpu.matmul %531, %384, %cst_199 {dimension_numbers = #tpu.dot_dimension_numbers<[1], [0], [0], [1], [0, 0, 1, 1], [], []>} : vector<8x32xbf16>, vector<32x128xbf16>, vector<8x128xf32> -> vector<8x128xf32>
    %cst_200 = arith.constant dense<0.000000e+00> : vector<8x8xf32>
    %533 = tpu.matmul %531, %531, %cst_200 {dimension_numbers = #tpu.dot_dimension_numbers<[1], [1], [0], [0], [0, 0, 1, 0], [], []>} : vector<8x32xbf16>, vector<8x32xbf16>, vector<8x8xf32> -> vector<8x8xf32>
    %534 = arith.truncf %533 : vector<8x8xf32> to vector<8x8xbf16>
    %535 = arith.truncf %519 : vector<8x128xf32> to vector<8x128xbf16>
    %cst_201 = arith.constant dense<0.000000e+00> : vector<8x128xf32>
    %536 = tpu.matmul %534, %535, %cst_201 {dimension_numbers = #tpu.dot_dimension_numbers<[1], [0], [0], [1], [0, 0, 1, 1], [], []>} : vector<8x8xbf16>, vector<8x128xbf16>, vector<8x128xf32> -> vector<8x128xf32>
    %537 = arith.mulf %519, %532 : vector<8x128xf32>
    %cst_202 = arith.constant 9.99999997E-7 : f32
    %538 = vector.broadcast %cst_202 : f32 to vector<8x128xf32>
    %539 = arith.addf %536, %538 : vector<8x128xf32>
    %540 = tpu.reciprocal %539 {approx = true} : vector<8x128xf32> -> vector<8x128xf32>
    %541 = arith.mulf %537, %540 : vector<8x128xf32>
    %542 = arith.truncf %541 : vector<8x128xf32> to vector<8x128xbf16>
    %543 = arith.truncf %530 : vector<8x32xf32> to vector<8x32xbf16>
    %cst_203 = arith.constant dense<0.000000e+00> : vector<8x32xf32>
    %544 = tpu.matmul %542, %384, %cst_203 {dimension_numbers = #tpu.dot_dimension_numbers<[1], [1], [0], [0], [0, 0, 1, 0], [], []>} : vector<8x128xbf16>, vector<32x128xbf16>, vector<8x32xf32> -> vector<8x32xf32>
    %cst_204 = arith.constant dense<0.000000e+00> : vector<8x8xf32>
    %545 = tpu.matmul %542, %542, %cst_204 {dimension_numbers = #tpu.dot_dimension_numbers<[1], [1], [0], [0], [0, 0, 1, 0], [], []>} : vector<8x128xbf16>, vector<8x128xbf16>, vector<8x8xf32> -> vector<8x8xf32>
    %546 = arith.truncf %545 : vector<8x8xf32> to vector<8x8xbf16>
    %cst_205 = arith.constant dense<0.000000e+00> : vector<8x32xf32>
    %547 = tpu.matmul %546, %543, %cst_205 {dimension_numbers = #tpu.dot_dimension_numbers<[1], [0], [0], [1], [0, 0, 1, 1], [], []>} : vector<8x8xbf16>, vector<8x32xbf16>, vector<8x32xf32> -> vector<8x32xf32>
    %548 = arith.mulf %530, %544 : vector<8x32xf32>
    %cst_206 = arith.constant 9.99999997E-7 : f32
    %549 = vector.broadcast %cst_206 : f32 to vector<8x32xf32>
    %550 = arith.addf %547, %549 : vector<8x32xf32>
    %551 = tpu.reciprocal %550 {approx = true} : vector<8x32xf32> -> vector<8x32xf32>
    %552 = arith.mulf %548, %551 : vector<8x32xf32>
    %553 = arith.truncf %552 : vector<8x32xf32> to vector<8x32xbf16>
    %cst_207 = arith.constant dense<0.000000e+00> : vector<8x128xf32>
    %554 = tpu.matmul %553, %384, %cst_207 {dimension_numbers = #tpu.dot_dimension_numbers<[1], [0], [0], [1], [0, 0, 1, 1], [], []>} : vector<8x32xbf16>, vector<32x128xbf16>, vector<8x128xf32> -> vector<8x128xf32>
    %cst_208 = arith.constant dense<0.000000e+00> : vector<8x8xf32>
    %555 = tpu.matmul %553, %553, %cst_208 {dimension_numbers = #tpu.dot_dimension_numbers<[1], [1], [0], [0], [0, 0, 1, 0], [], []>} : vector<8x32xbf16>, vector<8x32xbf16>, vector<8x8xf32> -> vector<8x8xf32>
    %556 = arith.truncf %555 : vector<8x8xf32> to vector<8x8xbf16>
    %557 = arith.truncf %541 : vector<8x128xf32> to vector<8x128xbf16>
    %cst_209 = arith.constant dense<0.000000e+00> : vector<8x128xf32>
    %558 = tpu.matmul %556, %557, %cst_209 {dimension_numbers = #tpu.dot_dimension_numbers<[1], [0], [0], [1], [0, 0, 1, 1], [], []>} : vector<8x8xbf16>, vector<8x128xbf16>, vector<8x128xf32> -> vector<8x128xf32>
    %559 = arith.mulf %541, %554 : vector<8x128xf32>
    %cst_210 = arith.constant 9.99999997E-7 : f32
    %560 = vector.broadcast %cst_210 : f32 to vector<8x128xf32>
    %561 = arith.addf %558, %560 : vector<8x128xf32>
    %562 = tpu.reciprocal %561 {approx = true} : vector<8x128xf32> -> vector<8x128xf32>
    %563 = arith.mulf %559, %562 : vector<8x128xf32>
    %564 = arith.truncf %552 : vector<8x32xf32> to vector<8x32xbf16>
    %565 = arith.truncf %563 : vector<8x128xf32> to vector<8x128xbf16>
    %cst_211 = arith.constant dense<0.000000e+00> : vector<32x128xf32>
    %566 = tpu.matmul %564, %565, %cst_211 {dimension_numbers = #tpu.dot_dimension_numbers<[0], [0], [1], [1], [0, 1, 1, 1], [], []>} : vector<8x32xbf16>, vector<8x128xbf16>, vector<32x128xf32> -> vector<32x128xf32>
    %c0_212 = arith.constant 0 : index
    %c256 = arith.constant 256 : index
    %567 = vector.load %arg1[%c0_212, %c256] : memref<33x512xf32, #tpu.memory_space<vmem>>, vector<32x128xf32>
    %568 = arith.addf %567, %566 : vector<32x128xf32>
    %cst_213 = arith.constant 0.000000e+00 : f32
    %569 = vector.broadcast %cst_213 : f32 to vector<32x128xf32>
    %570 = arith.maximumf %568, %569 : vector<32x128xf32>
    %c0_214 = arith.constant 0 : index
    %c256_215 = arith.constant 256 : index
    %571 = vector.load %arg4[%c0_214, %c256_215] : memref<32x512xf32, #tpu.memory_space<vmem>>, vector<32x128xf32>
    tpu.vector_store %arg4[%c0_214, %c256_215], %570 {strides = array<i32>} : memref<32x512xf32, #tpu.memory_space<vmem>>, vector<32x128xf32>,
    %572 = vector.extract_strided_slice %4 {offsets = [0, 384], sizes = [32, 128], strides = [1, 1]} : vector<32x512xf32> to vector<32x128xf32>
    %573 = arith.truncf %572 : vector<32x128xf32> to vector<32x128xbf16>
    %c3 = arith.constant 3 : index
    %c0_216 = arith.constant 0 : index
    %c0_217 = arith.constant 0 : index
    %574 = vector.load %arg3[%c3, %c0_216, %c0_217] : memref<4x8x32xf32, #tpu.memory_space<vmem>>, vector<1x8x32xf32>
    %575 = vector.shape_cast %574 : vector<1x8x32xf32> to vector<8x32xf32>
    %576 = arith.truncf %575 : vector<8x32xf32> to vector<8x32xbf16>
    %cst_218 = arith.constant dense<0.000000e+00> : vector<8x128xf32>
    %577 = tpu.matmul %576, %573, %cst_218 {dimension_numbers = #tpu.dot_dimension_numbers<[1], [0], [0], [1], [0, 0, 1, 1], [], []>} : vector<8x32xbf16>, vector<32x128xbf16>, vector<8x128xf32> -> vector<8x128xf32>
    %cst_219 = arith.constant dense<0xFF800000> : vector<128xf32>
    %578 = vector.multi_reduction <maximumf>, %577, %cst_219 [0] : vector<8x128xf32> to vector<128xf32>
    %579 = vector.shape_cast %578 : vector<128xf32> to vector<1x128xf32>
    %580 = vector.broadcast %579 : vector<1x128xf32> to vector<8x128xf32>
    %581 = arith.subf %577, %580 : vector<8x128xf32>
    %582 = math.exp %581 : vector<8x128xf32>
    %cst_220 = arith.constant dense<0.000000e+00> : vector<128xf32>
    %583 = vector.multi_reduction <add>, %582, %cst_220 [0] : vector<8x128xf32> to vector<128xf32>
    %584 = vector.shape_cast %583 : vector<128xf32> to vector<1x128xf32>
    %585 = tpu.reciprocal %584 {approx = true} : vector<1x128xf32> -> vector<1x128xf32>
    %586 = vector.broadcast %585 : vector<1x128xf32> to vector<8x128xf32>
    %587 = arith.mulf %582, %586 : vector<8x128xf32>
    %588 = arith.truncf %575 : vector<8x32xf32> to vector<8x32xbf16>
    %cst_221 = arith.constant dense<0.000000e+00> : vector<8x128xf32>
    %589 = tpu.matmul %588, %573, %cst_221 {dimension_numbers = #tpu.dot_dimension_numbers<[1], [0], [0], [1], [0, 0, 1, 1], [], []>} : vector<8x32xbf16>, vector<32x128xbf16>, vector<8x128xf32> -> vector<8x128xf32>
    %cst_222 = arith.constant dense<0.000000e+00> : vector<8x8xf32>
    %590 = tpu.matmul %588, %588, %cst_222 {dimension_numbers = #tpu.dot_dimension_numbers<[1], [1], [0], [0], [0, 0, 1, 0], [], []>} : vector<8x32xbf16>, vector<8x32xbf16>, vector<8x8xf32> -> vector<8x8xf32>
    %591 = arith.truncf %590 : vector<8x8xf32> to vector<8x8xbf16>
    %592 = arith.truncf %587 : vector<8x128xf32> to vector<8x128xbf16>
    %cst_223 = arith.constant dense<0.000000e+00> : vector<8x128xf32>
    %593 = tpu.matmul %591, %592, %cst_223 {dimension_numbers = #tpu.dot_dimension_numbers<[1], [0], [0], [1], [0, 0, 1, 1], [], []>} : vector<8x8xbf16>, vector<8x128xbf16>, vector<8x128xf32> -> vector<8x128xf32>
    %594 = arith.mulf %587, %589 : vector<8x128xf32>
    %cst_224 = arith.constant 9.99999997E-7 : f32
    %595 = vector.broadcast %cst_224 : f32 to vector<8x128xf32>
    %596 = arith.addf %593, %595 : vector<8x128xf32>
    %597 = tpu.reciprocal %596 {approx = true} : vector<8x128xf32> -> vector<8x128xf32>
    %598 = arith.mulf %594, %597 : vector<8x128xf32>
    %599 = arith.truncf %598 : vector<8x128xf32> to vector<8x128xbf16>
    %600 = arith.truncf %575 : vector<8x32xf32> to vector<8x32xbf16>
    %cst_225 = arith.constant dense<0.000000e+00> : vector<8x32xf32>
    %601 = tpu.matmul %599, %573, %cst_225 {dimension_numbers = #tpu.dot_dimension_numbers<[1], [1], [0], [0], [0, 0, 1, 0], [], []>} : vector<8x128xbf16>, vector<32x128xbf16>, vector<8x32xf32> -> vector<8x32xf32>
    %cst_226 = arith.constant dense<0.000000e+00> : vector<8x8xf32>
    %602 = tpu.matmul %599, %599, %cst_226 {dimension_numbers = #tpu.dot_dimension_numbers<[1], [1], [0], [0], [0, 0, 1, 0], [], []>} : vector<8x128xbf16>, vector<8x128xbf16>, vector<8x8xf32> -> vector<8x8xf32>
    %603 = arith.truncf %602 : vector<8x8xf32> to vector<8x8xbf16>
    %cst_227 = arith.constant dense<0.000000e+00> : vector<8x32xf32>
    %604 = tpu.matmul %603, %600, %cst_227 {dimension_numbers = #tpu.dot_dimension_numbers<[1], [0], [0], [1], [0, 0, 1, 1], [], []>} : vector<8x8xbf16>, vector<8x32xbf16>, vector<8x32xf32> -> vector<8x32xf32>
    %605 = arith.mulf %575, %601 : vector<8x32xf32>
    %cst_228 = arith.constant 9.99999997E-7 : f32
    %606 = vector.broadcast %cst_228 : f32 to vector<8x32xf32>
    %607 = arith.addf %604, %606 : vector<8x32xf32>
    %608 = tpu.reciprocal %607 {approx = true} : vector<8x32xf32> -> vector<8x32xf32>
    %609 = arith.mulf %605, %608 : vector<8x32xf32>
    %610 = arith.truncf %609 : vector<8x32xf32> to vector<8x32xbf16>
    %cst_229 = arith.constant dense<0.000000e+00> : vector<8x128xf32>
    %611 = tpu.matmul %610, %573, %cst_229 {dimension_numbers = #tpu.dot_dimension_numbers<[1], [0], [0], [1], [0, 0, 1, 1], [], []>} : vector<8x32xbf16>, vector<32x128xbf16>, vector<8x128xf32> -> vector<8x128xf32>
    %cst_230 = arith.constant dense<0.000000e+00> : vector<8x8xf32>
    %612 = tpu.matmul %610, %610, %cst_230 {dimension_numbers = #tpu.dot_dimension_numbers<[1], [1], [0], [0], [0, 0, 1, 0], [], []>} : vector<8x32xbf16>, vector<8x32xbf16>, vector<8x8xf32> -> vector<8x8xf32>
    %613 = arith.truncf %612 : vector<8x8xf32> to vector<8x8xbf16>
    %614 = arith.truncf %598 : vector<8x128xf32> to vector<8x128xbf16>
    %cst_231 = arith.constant dense<0.000000e+00> : vector<8x128xf32>
    %615 = tpu.matmul %613, %614, %cst_231 {dimension_numbers = #tpu.dot_dimension_numbers<[1], [0], [0], [1], [0, 0, 1, 1], [], []>} : vector<8x8xbf16>, vector<8x128xbf16>, vector<8x128xf32> -> vector<8x128xf32>
    %616 = arith.mulf %598, %611 : vector<8x128xf32>
    %cst_232 = arith.constant 9.99999997E-7 : f32
    %617 = vector.broadcast %cst_232 : f32 to vector<8x128xf32>
    %618 = arith.addf %615, %617 : vector<8x128xf32>
    %619 = tpu.reciprocal %618 {approx = true} : vector<8x128xf32> -> vector<8x128xf32>
    %620 = arith.mulf %616, %619 : vector<8x128xf32>
    %621 = arith.truncf %620 : vector<8x128xf32> to vector<8x128xbf16>
    %622 = arith.truncf %609 : vector<8x32xf32> to vector<8x32xbf16>
    %cst_233 = arith.constant dense<0.000000e+00> : vector<8x32xf32>
    %623 = tpu.matmul %621, %573, %cst_233 {dimension_numbers = #tpu.dot_dimension_numbers<[1], [1], [0], [0], [0, 0, 1, 0], [], []>} : vector<8x128xbf16>, vector<32x128xbf16>, vector<8x32xf32> -> vector<8x32xf32>
    %cst_234 = arith.constant dense<0.000000e+00> : vector<8x8xf32>
    %624 = tpu.matmul %621, %621, %cst_234 {dimension_numbers = #tpu.dot_dimension_numbers<[1], [1], [0], [0], [0, 0, 1, 0], [], []>} : vector<8x128xbf16>, vector<8x128xbf16>, vector<8x8xf32> -> vector<8x8xf32>
    %625 = arith.truncf %624 : vector<8x8xf32> to vector<8x8xbf16>
    %cst_235 = arith.constant dense<0.000000e+00> : vector<8x32xf32>
    %626 = tpu.matmul %625, %622, %cst_235 {dimension_numbers = #tpu.dot_dimension_numbers<[1], [0], [0], [1], [0, 0, 1, 1], [], []>} : vector<8x8xbf16>, vector<8x32xbf16>, vector<8x32xf32> -> vector<8x32xf32>
    %627 = arith.mulf %609, %623 : vector<8x32xf32>
    %cst_236 = arith.constant 9.99999997E-7 : f32
    %628 = vector.broadcast %cst_236 : f32 to vector<8x32xf32>
    %629 = arith.addf %626, %628 : vector<8x32xf32>
    %630 = tpu.reciprocal %629 {approx = true} : vector<8x32xf32> -> vector<8x32xf32>
    %631 = arith.mulf %627, %630 : vector<8x32xf32>
    %632 = arith.truncf %631 : vector<8x32xf32> to vector<8x32xbf16>
    %cst_237 = arith.constant dense<0.000000e+00> : vector<8x128xf32>
    %633 = tpu.matmul %632, %573, %cst_237 {dimension_numbers = #tpu.dot_dimension_numbers<[1], [0], [0], [1], [0, 0, 1, 1], [], []>} : vector<8x32xbf16>, vector<32x128xbf16>, vector<8x128xf32> -> vector<8x128xf32>
    %cst_238 = arith.constant dense<0.000000e+00> : vector<8x8xf32>
    %634 = tpu.matmul %632, %632, %cst_238 {dimension_numbers = #tpu.dot_dimension_numbers<[1], [1], [0], [0], [0, 0, 1, 0], [], []>} : vector<8x32xbf16>, vector<8x32xbf16>, vector<8x8xf32> -> vector<8x8xf32>
    %635 = arith.truncf %634 : vector<8x8xf32> to vector<8x8xbf16>
    %636 = arith.truncf %620 : vector<8x128xf32> to vector<8x128xbf16>
    %cst_239 = arith.constant dense<0.000000e+00> : vector<8x128xf32>
    %637 = tpu.matmul %635, %636, %cst_239 {dimension_numbers = #tpu.dot_dimension_numbers<[1], [0], [0], [1], [0, 0, 1, 1], [], []>} : vector<8x8xbf16>, vector<8x128xbf16>, vector<8x128xf32> -> vector<8x128xf32>
    %638 = arith.mulf %620, %633 : vector<8x128xf32>
    %cst_240 = arith.constant 9.99999997E-7 : f32
    %639 = vector.broadcast %cst_240 : f32 to vector<8x128xf32>
    %640 = arith.addf %637, %639 : vector<8x128xf32>
    %641 = tpu.reciprocal %640 {approx = true} : vector<8x128xf32> -> vector<8x128xf32>
    %642 = arith.mulf %638, %641 : vector<8x128xf32>
    %643 = arith.truncf %642 : vector<8x128xf32> to vector<8x128xbf16>
    %644 = arith.truncf %631 : vector<8x32xf32> to vector<8x32xbf16>
    %cst_241 = arith.constant dense<0.000000e+00> : vector<8x32xf32>
    %645 = tpu.matmul %643, %573, %cst_241 {dimension_numbers = #tpu.dot_dimension_numbers<[1], [1], [0], [0], [0, 0, 1, 0], [], []>} : vector<8x128xbf16>, vector<32x128xbf16>, vector<8x32xf32> -> vector<8x32xf32>
    %cst_242 = arith.constant dense<0.000000e+00> : vector<8x8xf32>
    %646 = tpu.matmul %643, %643, %cst_242 {dimension_numbers = #tpu.dot_dimension_numbers<[1], [1], [0], [0], [0, 0, 1, 0], [], []>} : vector<8x128xbf16>, vector<8x128xbf16>, vector<8x8xf32> -> vector<8x8xf32>
    %647 = arith.truncf %646 : vector<8x8xf32> to vector<8x8xbf16>
    %cst_243 = arith.constant dense<0.000000e+00> : vector<8x32xf32>
    %648 = tpu.matmul %647, %644, %cst_243 {dimension_numbers = #tpu.dot_dimension_numbers<[1], [0], [0], [1], [0, 0, 1, 1], [], []>} : vector<8x8xbf16>, vector<8x32xbf16>, vector<8x32xf32> -> vector<8x32xf32>
    %649 = arith.mulf %631, %645 : vector<8x32xf32>
    %cst_244 = arith.constant 9.99999997E-7 : f32
    %650 = vector.broadcast %cst_244 : f32 to vector<8x32xf32>
    %651 = arith.addf %648, %650 : vector<8x32xf32>
    %652 = tpu.reciprocal %651 {approx = true} : vector<8x32xf32> -> vector<8x32xf32>
    %653 = arith.mulf %649, %652 : vector<8x32xf32>
    %654 = arith.truncf %653 : vector<8x32xf32> to vector<8x32xbf16>
    %cst_245 = arith.constant dense<0.000000e+00> : vector<8x128xf32>
    %655 = tpu.matmul %654, %573, %cst_245 {dimension_numbers = #tpu.dot_dimension_numbers<[1], [0], [0], [1], [0, 0, 1, 1], [], []>} : vector<8x32xbf16>, vector<32x128xbf16>, vector<8x128xf32> -> vector<8x128xf32>
    %cst_246 = arith.constant dense<0.000000e+00> : vector<8x8xf32>
    %656 = tpu.matmul %654, %654, %cst_246 {dimension_numbers = #tpu.dot_dimension_numbers<[1], [1], [0], [0], [0, 0, 1, 0], [], []>} : vector<8x32xbf16>, vector<8x32xbf16>, vector<8x8xf32> -> vector<8x8xf32>
    %657 = arith.truncf %656 : vector<8x8xf32> to vector<8x8xbf16>
    %658 = arith.truncf %642 : vector<8x128xf32> to vector<8x128xbf16>
    %cst_247 = arith.constant dense<0.000000e+00> : vector<8x128xf32>
    %659 = tpu.matmul %657, %658, %cst_247 {dimension_numbers = #tpu.dot_dimension_numbers<[1], [0], [0], [1], [0, 0, 1, 1], [], []>} : vector<8x8xbf16>, vector<8x128xbf16>, vector<8x128xf32> -> vector<8x128xf32>
    %660 = arith.mulf %642, %655 : vector<8x128xf32>
    %cst_248 = arith.constant 9.99999997E-7 : f32
    %661 = vector.broadcast %cst_248 : f32 to vector<8x128xf32>
    %662 = arith.addf %659, %661 : vector<8x128xf32>
    %663 = tpu.reciprocal %662 {approx = true} : vector<8x128xf32> -> vector<8x128xf32>
    %664 = arith.mulf %660, %663 : vector<8x128xf32>
    %665 = arith.truncf %664 : vector<8x128xf32> to vector<8x128xbf16>
    %666 = arith.truncf %653 : vector<8x32xf32> to vector<8x32xbf16>
    %cst_249 = arith.constant dense<0.000000e+00> : vector<8x32xf32>
    %667 = tpu.matmul %665, %573, %cst_249 {dimension_numbers = #tpu.dot_dimension_numbers<[1], [1], [0], [0], [0, 0, 1, 0], [], []>} : vector<8x128xbf16>, vector<32x128xbf16>, vector<8x32xf32> -> vector<8x32xf32>
    %cst_250 = arith.constant dense<0.000000e+00> : vector<8x8xf32>
    %668 = tpu.matmul %665, %665, %cst_250 {dimension_numbers = #tpu.dot_dimension_numbers<[1], [1], [0], [0], [0, 0, 1, 0], [], []>} : vector<8x128xbf16>, vector<8x128xbf16>, vector<8x8xf32> -> vector<8x8xf32>
    %669 = arith.truncf %668 : vector<8x8xf32> to vector<8x8xbf16>
    %cst_251 = arith.constant dense<0.000000e+00> : vector<8x32xf32>
    %670 = tpu.matmul %669, %666, %cst_251 {dimension_numbers = #tpu.dot_dimension_numbers<[1], [0], [0], [1], [0, 0, 1, 1], [], []>} : vector<8x8xbf16>, vector<8x32xbf16>, vector<8x32xf32> -> vector<8x32xf32>
    %671 = arith.mulf %653, %667 : vector<8x32xf32>
    %cst_252 = arith.constant 9.99999997E-7 : f32
    %672 = vector.broadcast %cst_252 : f32 to vector<8x32xf32>
    %673 = arith.addf %670, %672 : vector<8x32xf32>
    %674 = tpu.reciprocal %673 {approx = true} : vector<8x32xf32> -> vector<8x32xf32>
    %675 = arith.mulf %671, %674 : vector<8x32xf32>
    %676 = arith.truncf %675 : vector<8x32xf32> to vector<8x32xbf16>
    %cst_253 = arith.constant dense<0.000000e+00> : vector<8x128xf32>
    %677 = tpu.matmul %676, %573, %cst_253 {dimension_numbers = #tpu.dot_dimension_numbers<[1], [0], [0], [1], [0, 0, 1, 1], [], []>} : vector<8x32xbf16>, vector<32x128xbf16>, vector<8x128xf32> -> vector<8x128xf32>
    %cst_254 = arith.constant dense<0.000000e+00> : vector<8x8xf32>
    %678 = tpu.matmul %676, %676, %cst_254 {dimension_numbers = #tpu.dot_dimension_numbers<[1], [1], [0], [0], [0, 0, 1, 0], [], []>} : vector<8x32xbf16>, vector<8x32xbf16>, vector<8x8xf32> -> vector<8x8xf32>
    %679 = arith.truncf %678 : vector<8x8xf32> to vector<8x8xbf16>
    %680 = arith.truncf %664 : vector<8x128xf32> to vector<8x128xbf16>
    %cst_255 = arith.constant dense<0.000000e+00> : vector<8x128xf32>
    %681 = tpu.matmul %679, %680, %cst_255 {dimension_numbers = #tpu.dot_dimension_numbers<[1], [0], [0], [1], [0, 0, 1, 1], [], []>} : vector<8x8xbf16>, vector<8x128xbf16>, vector<8x128xf32> -> vector<8x128xf32>
    %682 = arith.mulf %664, %677 : vector<8x128xf32>
    %cst_256 = arith.constant 9.99999997E-7 : f32
    %683 = vector.broadcast %cst_256 : f32 to vector<8x128xf32>
    %684 = arith.addf %681, %683 : vector<8x128xf32>
    %685 = tpu.reciprocal %684 {approx = true} : vector<8x128xf32> -> vector<8x128xf32>
    %686 = arith.mulf %682, %685 : vector<8x128xf32>
    %687 = arith.truncf %686 : vector<8x128xf32> to vector<8x128xbf16>
    %688 = arith.truncf %675 : vector<8x32xf32> to vector<8x32xbf16>
    %cst_257 = arith.constant dense<0.000000e+00> : vector<8x32xf32>
    %689 = tpu.matmul %687, %573, %cst_257 {dimension_numbers = #tpu.dot_dimension_numbers<[1], [1], [0], [0], [0, 0, 1, 0], [], []>} : vector<8x128xbf16>, vector<32x128xbf16>, vector<8x32xf32> -> vector<8x32xf32>
    %cst_258 = arith.constant dense<0.000000e+00> : vector<8x8xf32>
    %690 = tpu.matmul %687, %687, %cst_258 {dimension_numbers = #tpu.dot_dimension_numbers<[1], [1], [0], [0], [0, 0, 1, 0], [], []>} : vector<8x128xbf16>, vector<8x128xbf16>, vector<8x8xf32> -> vector<8x8xf32>
    %691 = arith.truncf %690 : vector<8x8xf32> to vector<8x8xbf16>
    %cst_259 = arith.constant dense<0.000000e+00> : vector<8x32xf32>
    %692 = tpu.matmul %691, %688, %cst_259 {dimension_numbers = #tpu.dot_dimension_numbers<[1], [0], [0], [1], [0, 0, 1, 1], [], []>} : vector<8x8xbf16>, vector<8x32xbf16>, vector<8x32xf32> -> vector<8x32xf32>
    %693 = arith.mulf %675, %689 : vector<8x32xf32>
    %cst_260 = arith.constant 9.99999997E-7 : f32
    %694 = vector.broadcast %cst_260 : f32 to vector<8x32xf32>
    %695 = arith.addf %692, %694 : vector<8x32xf32>
    %696 = tpu.reciprocal %695 {approx = true} : vector<8x32xf32> -> vector<8x32xf32>
    %697 = arith.mulf %693, %696 : vector<8x32xf32>
    %698 = arith.truncf %697 : vector<8x32xf32> to vector<8x32xbf16>
    %cst_261 = arith.constant dense<0.000000e+00> : vector<8x128xf32>
    %699 = tpu.matmul %698, %573, %cst_261 {dimension_numbers = #tpu.dot_dimension_numbers<[1], [0], [0], [1], [0, 0, 1, 1], [], []>} : vector<8x32xbf16>, vector<32x128xbf16>, vector<8x128xf32> -> vector<8x128xf32>
    %cst_262 = arith.constant dense<0.000000e+00> : vector<8x8xf32>
    %700 = tpu.matmul %698, %698, %cst_262 {dimension_numbers = #tpu.dot_dimension_numbers<[1], [1], [0], [0], [0, 0, 1, 0], [], []>} : vector<8x32xbf16>, vector<8x32xbf16>, vector<8x8xf32> -> vector<8x8xf32>
    %701 = arith.truncf %700 : vector<8x8xf32> to vector<8x8xbf16>
    %702 = arith.truncf %686 : vector<8x128xf32> to vector<8x128xbf16>
    %cst_263 = arith.constant dense<0.000000e+00> : vector<8x128xf32>
    %703 = tpu.matmul %701, %702, %cst_263 {dimension_numbers = #tpu.dot_dimension_numbers<[1], [0], [0], [1], [0, 0, 1, 1], [], []>} : vector<8x8xbf16>, vector<8x128xbf16>, vector<8x128xf32> -> vector<8x128xf32>
    %704 = arith.mulf %686, %699 : vector<8x128xf32>
    %cst_264 = arith.constant 9.99999997E-7 : f32
    %705 = vector.broadcast %cst_264 : f32 to vector<8x128xf32>
    %706 = arith.addf %703, %705 : vector<8x128xf32>
    %707 = tpu.reciprocal %706 {approx = true} : vector<8x128xf32> -> vector<8x128xf32>
    %708 = arith.mulf %704, %707 : vector<8x128xf32>
    %709 = arith.truncf %708 : vector<8x128xf32> to vector<8x128xbf16>
    %710 = arith.truncf %697 : vector<8x32xf32> to vector<8x32xbf16>
    %cst_265 = arith.constant dense<0.000000e+00> : vector<8x32xf32>
    %711 = tpu.matmul %709, %573, %cst_265 {dimension_numbers = #tpu.dot_dimension_numbers<[1], [1], [0], [0], [0, 0, 1, 0], [], []>} : vector<8x128xbf16>, vector<32x128xbf16>, vector<8x32xf32> -> vector<8x32xf32>
    %cst_266 = arith.constant dense<0.000000e+00> : vector<8x8xf32>
    %712 = tpu.matmul %709, %709, %cst_266 {dimension_numbers = #tpu.dot_dimension_numbers<[1], [1], [0], [0], [0, 0, 1, 0], [], []>} : vector<8x128xbf16>, vector<8x128xbf16>, vector<8x8xf32> -> vector<8x8xf32>
    %713 = arith.truncf %712 : vector<8x8xf32> to vector<8x8xbf16>
    %cst_267 = arith.constant dense<0.000000e+00> : vector<8x32xf32>
    %714 = tpu.matmul %713, %710, %cst_267 {dimension_numbers = #tpu.dot_dimension_numbers<[1], [0], [0], [1], [0, 0, 1, 1], [], []>} : vector<8x8xbf16>, vector<8x32xbf16>, vector<8x32xf32> -> vector<8x32xf32>
    %715 = arith.mulf %697, %711 : vector<8x32xf32>
    %cst_268 = arith.constant 9.99999997E-7 : f32
    %716 = vector.broadcast %cst_268 : f32 to vector<8x32xf32>
    %717 = arith.addf %714, %716 : vector<8x32xf32>
    %718 = tpu.reciprocal %717 {approx = true} : vector<8x32xf32> -> vector<8x32xf32>
    %719 = arith.mulf %715, %718 : vector<8x32xf32>
    %720 = arith.truncf %719 : vector<8x32xf32> to vector<8x32xbf16>
    %cst_269 = arith.constant dense<0.000000e+00> : vector<8x128xf32>
    %721 = tpu.matmul %720, %573, %cst_269 {dimension_numbers = #tpu.dot_dimension_numbers<[1], [0], [0], [1], [0, 0, 1, 1], [], []>} : vector<8x32xbf16>, vector<32x128xbf16>, vector<8x128xf32> -> vector<8x128xf32>
    %cst_270 = arith.constant dense<0.000000e+00> : vector<8x8xf32>
    %722 = tpu.matmul %720, %720, %cst_270 {dimension_numbers = #tpu.dot_dimension_numbers<[1], [1], [0], [0], [0, 0, 1, 0], [], []>} : vector<8x32xbf16>, vector<8x32xbf16>, vector<8x8xf32> -> vector<8x8xf32>
    %723 = arith.truncf %722 : vector<8x8xf32> to vector<8x8xbf16>
    %724 = arith.truncf %708 : vector<8x128xf32> to vector<8x128xbf16>
    %cst_271 = arith.constant dense<0.000000e+00> : vector<8x128xf32>
    %725 = tpu.matmul %723, %724, %cst_271 {dimension_numbers = #tpu.dot_dimension_numbers<[1], [0], [0], [1], [0, 0, 1, 1], [], []>} : vector<8x8xbf16>, vector<8x128xbf16>, vector<8x128xf32> -> vector<8x128xf32>
    %726 = arith.mulf %708, %721 : vector<8x128xf32>
    %cst_272 = arith.constant 9.99999997E-7 : f32
    %727 = vector.broadcast %cst_272 : f32 to vector<8x128xf32>
    %728 = arith.addf %725, %727 : vector<8x128xf32>
    %729 = tpu.reciprocal %728 {approx = true} : vector<8x128xf32> -> vector<8x128xf32>
    %730 = arith.mulf %726, %729 : vector<8x128xf32>
    %731 = arith.truncf %730 : vector<8x128xf32> to vector<8x128xbf16>
    %732 = arith.truncf %719 : vector<8x32xf32> to vector<8x32xbf16>
    %cst_273 = arith.constant dense<0.000000e+00> : vector<8x32xf32>
    %733 = tpu.matmul %731, %573, %cst_273 {dimension_numbers = #tpu.dot_dimension_numbers<[1], [1], [0], [0], [0, 0, 1, 0], [], []>} : vector<8x128xbf16>, vector<32x128xbf16>, vector<8x32xf32> -> vector<8x32xf32>
    %cst_274 = arith.constant dense<0.000000e+00> : vector<8x8xf32>
    %734 = tpu.matmul %731, %731, %cst_274 {dimension_numbers = #tpu.dot_dimension_numbers<[1], [1], [0], [0], [0, 0, 1, 0], [], []>} : vector<8x128xbf16>, vector<8x128xbf16>, vector<8x8xf32> -> vector<8x8xf32>
    %735 = arith.truncf %734 : vector<8x8xf32> to vector<8x8xbf16>
    %cst_275 = arith.constant dense<0.000000e+00> : vector<8x32xf32>
    %736 = tpu.matmul %735, %732, %cst_275 {dimension_numbers = #tpu.dot_dimension_numbers<[1], [0], [0], [1], [0, 0, 1, 1], [], []>} : vector<8x8xbf16>, vector<8x32xbf16>, vector<8x32xf32> -> vector<8x32xf32>
    %737 = arith.mulf %719, %733 : vector<8x32xf32>
    %cst_276 = arith.constant 9.99999997E-7 : f32
    %738 = vector.broadcast %cst_276 : f32 to vector<8x32xf32>
    %739 = arith.addf %736, %738 : vector<8x32xf32>
    %740 = tpu.reciprocal %739 {approx = true} : vector<8x32xf32> -> vector<8x32xf32>
    %741 = arith.mulf %737, %740 : vector<8x32xf32>
    %742 = arith.truncf %741 : vector<8x32xf32> to vector<8x32xbf16>
    %cst_277 = arith.constant dense<0.000000e+00> : vector<8x128xf32>
    %743 = tpu.matmul %742, %573, %cst_277 {dimension_numbers = #tpu.dot_dimension_numbers<[1], [0], [0], [1], [0, 0, 1, 1], [], []>} : vector<8x32xbf16>, vector<32x128xbf16>, vector<8x128xf32> -> vector<8x128xf32>
    %cst_278 = arith.constant dense<0.000000e+00> : vector<8x8xf32>
    %744 = tpu.matmul %742, %742, %cst_278 {dimension_numbers = #tpu.dot_dimension_numbers<[1], [1], [0], [0], [0, 0, 1, 0], [], []>} : vector<8x32xbf16>, vector<8x32xbf16>, vector<8x8xf32> -> vector<8x8xf32>
    %745 = arith.truncf %744 : vector<8x8xf32> to vector<8x8xbf16>
    %746 = arith.truncf %730 : vector<8x128xf32> to vector<8x128xbf16>
    %cst_279 = arith.constant dense<0.000000e+00> : vector<8x128xf32>
    %747 = tpu.matmul %745, %746, %cst_279 {dimension_numbers = #tpu.dot_dimension_numbers<[1], [0], [0], [1], [0, 0, 1, 1], [], []>} : vector<8x8xbf16>, vector<8x128xbf16>, vector<8x128xf32> -> vector<8x128xf32>
    %748 = arith.mulf %730, %743 : vector<8x128xf32>
    %cst_280 = arith.constant 9.99999997E-7 : f32
    %749 = vector.broadcast %cst_280 : f32 to vector<8x128xf32>
    %750 = arith.addf %747, %749 : vector<8x128xf32>
    %751 = tpu.reciprocal %750 {approx = true} : vector<8x128xf32> -> vector<8x128xf32>
    %752 = arith.mulf %748, %751 : vector<8x128xf32>
    %753 = arith.truncf %741 : vector<8x32xf32> to vector<8x32xbf16>
    %754 = arith.truncf %752 : vector<8x128xf32> to vector<8x128xbf16>
    %cst_281 = arith.constant dense<0.000000e+00> : vector<32x128xf32>
    %755 = tpu.matmul %753, %754, %cst_281 {dimension_numbers = #tpu.dot_dimension_numbers<[0], [0], [1], [1], [0, 1, 1, 1], [], []>} : vector<8x32xbf16>, vector<8x128xbf16>, vector<32x128xf32> -> vector<32x128xf32>
    %c0_282 = arith.constant 0 : index
    %c384 = arith.constant 384 : index
    %756 = vector.load %arg1[%c0_282, %c384] : memref<33x512xf32, #tpu.memory_space<vmem>>, vector<32x128xf32>
    %757 = arith.addf %756, %755 : vector<32x128xf32>
    %cst_283 = arith.constant 0.000000e+00 : f32
    %758 = vector.broadcast %cst_283 : f32 to vector<32x128xf32>
    %759 = arith.maximumf %757, %758 : vector<32x128xf32>
    %c0_284 = arith.constant 0 : index
    %c384_285 = arith.constant 384 : index
    %760 = vector.load %arg4[%c0_284, %c384_285] : memref<32x512xf32, #tpu.memory_space<vmem>>, vector<32x128xf32>
    tpu.vector_store %arg4[%c0_284, %c384_285], %759 {strides = array<i32>} : memref<32x512xf32, #tpu.memory_space<vmem>>, vector<32x128xf32>,
    return
  }
  func.func @transform_0(%arg0: i32) -> (i32, i32) {
    %c0_i32 = arith.constant 0 : i32
    %c0_i32_0 = arith.constant 0 : i32
    return %c0_i32, %arg0 : i32, i32
  }
  func.func @transform_1(%arg0: i32) -> (i32, i32) {
    %c0_i32 = arith.constant 0 : i32
    %c0_i32_0 = arith.constant 0 : i32
    %c0_i32_1 = arith.constant 0 : i32
    return %c0_i32, %c0_i32_0 : i32, i32
  }
  func.func @transform_2(%arg0: i32) -> (i32, i32, i32) {
    %c0_i32 = arith.constant 0 : i32
    %c0_i32_0 = arith.constant 0 : i32
    %c0_i32_1 = arith.constant 0 : i32
    return %arg0, %c0_i32, %c0_i32_0 : i32, i32, i32
  }
  func.func @transform_3(%arg0: i32) -> (i32, i32) {
    %c0_i32 = arith.constant 0 : i32
    %c0_i32_0 = arith.constant 0 : i32
    return %c0_i32, %arg0 : i32, i32
  }
}

</mosaic_0001>

<llo_original>
// kernel: _hamburger_forward_jit.1
$region0: #{_hamburger_forward_jit.1}
  #allocation0 [shape = 'u32[]', space=smem, size = 0x4, offset = 0x4, fixed_abs, tag = 'smem constant byte address 0x4 - core index']
  #allocation1 [shape = 'u32[72,128]{1,0:T(1,128)}', space=vmem, size = 0x9000, scoped, tag = 'internal scratch']
  %s0 = inlined_call_operand.vmem [shape: f32[33,512], index: 0, kind: input, shape index: {}]
  %s1 = inlined_call_operand.vmem [shape: f32[32,33], index: 1, kind: input, shape index: {}]
  %s2 = inlined_call_operand.vmem [shape: f32[4,8,32], index: 2, kind: input, shape index: {}]
  %s3 = inlined_call_operand.vmem [shape: f32[32,512], index: 3, kind: output, shape index: {}]
  %s4 = sld [smem:[#allocation0]]
  $region22: #{_hamburger_forward_jit.1} parent=0
    _
  %s6 = ssub.s32 1, %s4
  %s7 = scalar_select 0, %s6, %s4
  // Predicated region
  $region2: #{_hamburger_forward_jit.1} parent=0 // pred_check
    _
  $region3: #{_hamburger_forward_jit.1} parent=0 // pred_check_branch
    %9 = sbr.rel (0) target = $region5
  $region4: #{_hamburger_forward_jit.1} parent=0 // pred_region
    _
  $region5: #{_hamburger_forward_jit.1} parent=0 // pred_fallthru
    _
  // Predicated region
  $region6: #{_hamburger_forward_jit.1} parent=0 // pred_check
    _
  $region7: #{_hamburger_forward_jit.1} parent=0 // pred_check_branch
    %11 = sbr.rel (0) target = $region9
  $region8: #{_hamburger_forward_jit.1} parent=0 // pred_region
    _
  $region9: #{_hamburger_forward_jit.1} parent=0 // pred_fallthru
    _
  // Predicated region
  $region10: #{_hamburger_forward_jit.1} parent=0 // pred_check
    _
  $region11: #{_hamburger_forward_jit.1} parent=0 // pred_check_branch
    %13 = sbr.rel (0) target = $region13
  $region12: #{_hamburger_forward_jit.1} parent=0 // pred_region
    _
  $region13: #{_hamburger_forward_jit.1} parent=0 // pred_fallthru
    _
  %v15 = vld [vmem:[%s1] sm:$0xff]
  %v16 = vld [vmem:[%s1 + $0x8] sm:$0xff]
  %v17 = vld [vmem:[%s1 + $0x10] sm:$0xff]
  %v18 = vld [vmem:[%s1 + $0x18] sm:$0xff]
  %v19 = vld [vmem:[%s0] sm:$0xff]
  %v20 = vld [vmem:[%s0 + $0x8] sm:$0xff]
  %v21 = vld [vmem:[%s0 + $0x10] sm:$0xff]
  %v22 = vld [vmem:[%s0 + $0x18] sm:$0xff]
  %v23 = vld [vmem:[%s0 + $0x20] sm:$0xff]
  %v24 = vld [vmem:[%s0 + $0x28] sm:$0xff]
  %v25 = vld [vmem:[%s0 + $0x30] sm:$0xff]
  %v26 = vld [vmem:[%s0 + $0x38] sm:$0xff]
  %v27 = vld [vmem:[%s0 + $0x40] sm:$0xff]
  %v28 = vld [vmem:[%s0 + $0x48] sm:$0xff]
  %v29 = vld [vmem:[%s0 + $0x50] sm:$0xff]
  %v30 = vld [vmem:[%s0 + $0x58] sm:$0xff]
  %v31 = vld [vmem:[%s0 + $0x60] sm:$0xff]
  %v32 = vld [vmem:[%s0 + $0x68] sm:$0xff]
  %v33 = vld [vmem:[%s0 + $0x70] sm:$0xff]
  %v34 = vld [vmem:[%s0 + $0x78] sm:$0xff]
  %v35 = vld [vmem:[%s0 + $0x80] sm:$0x1]
  %v36 = vld [vmem:[%s0 + $0x88] sm:$0x1]
  %v37 = vld [vmem:[%s0 + $0x90] sm:$0x1]
  %v38 = vld [vmem:[%s0 + $0x98] sm:$0x1]
  %vm39 = vcmask 269312
  %v41 = vsel %vm39, %v15, 0
  %v44 = vsel %vm39, %v16, 0
  %v47 = vsel %vm39, %v17, 0
  %v50 = vsel %vm39, %v18, 0
  %vm52 = vcmask 1040384
  %v54 = vsel %vm52, %v35, 0
  %v57 = vsel %vm52, %v36, 0
  %v60 = vsel %vm52, %v37, 0
  %v63 = vsel %vm52, %v38, 0
  %65 = vmatpush.msra.mxu0 0.0
  %66 = vmatpush.msra.mxu0 0.0
  %67 = vmatpush.msra.mxu0 0.0
  %68 = vmatpush.msra.mxu0 0.0
  %69 = vmatpush.msra.mxu0 0.0
  %70 = vmatpush.msra.mxu0 0.0
  %71 = vmatpush.msra.mxu0 0.0
  %72 = vmatpush.msra.mxu0 0.0
  %73 = vmatpush.msra.mxu0 0.0
  %74 = vmatpush.msra.mxu0 0.0
  %75 = vmatpush.msra.mxu0 0.0
  %76 = vmatpush.msra.mxu0 %v54
  %77 = vmatpush.msra.mxu0 %v31
  %78 = vmatpush.msra.mxu0 %v27
  %79 = vmatpush.msra.mxu0 %v23
  %80 = vmatpush.msra.mxu0 %v19
  %81 = vmatmul.f32.gmra.mxu0 %v41
  %v82 = vpop.f32.mrf.mxu0
  %v83 = vadd.f32 0.0, %v82
  %84 = vmatmul.f32.gmra.mxu0 %v44
  %v85 = vpop.f32.mrf.mxu0
  %v86 = vadd.f32 0.0, %v85
  %87 = vmatmul.f32.gmra.mxu0 %v47
  %v88 = vpop.f32.mrf.mxu0
  %v89 = vadd.f32 0.0, %v88
  %90 = vmatmul.f32.gmra.mxu0 %v50
  %v91 = vpop.f32.mrf.mxu0
  %v92 = vadd.f32 0.0, %v91
  %93 = vdwg.mxu0
  %94 = vmatpush.msra.mxu0 0.0
  %95 = vmatpush.msra.mxu0 0.0
  %96 = vmatpush.msra.mxu0 0.0
  %97 = vmatpush.msra.mxu0 0.0
  %98 = vmatpush.msra.mxu0 0.0
  %99 = vmatpush.msra.mxu0 0.0
  %100 = vmatpush.msra.mxu0 0.0
  %101 = vmatpush.msra.mxu0 0.0
  %102 = vmatpush.msra.mxu0 0.0
  %103 = vmatpush.msra.mxu0 0.0
  %104 = vmatpush.msra.mxu0 0.0
  %105 = vmatpush.msra.mxu0 %v57
  %106 = vmatpush.msra.mxu0 %v32
  %107 = vmatpush.msra.mxu0 %v28
  %108 = vmatpush.msra.mxu0 %v24
  %109 = vmatpush.msra.mxu0 %v20
  %110 = vmatmul.f32.gmra.mxu0 %v41
  %v111 = vpop.f32.mrf.mxu0
  %v112 = vadd.f32 0.0, %v111
  %113 = vmatmul.f32.gmra.mxu0 %v44
  %v114 = vpop.f32.mrf.mxu0
  %v115 = vadd.f32 0.0, %v114
  %116 = vmatmul.f32.gmra.mxu0 %v47
  %v117 = vpop.f32.mrf.mxu0
  %v118 = vadd.f32 0.0, %v117
  %119 = vmatmul.f32.gmra.mxu0 %v50
  %v120 = vpop.f32.mrf.mxu0
  %v121 = vadd.f32 0.0, %v120
  %122 = vdwg.mxu0
  %123 = vmatpush.msra.mxu0 0.0
  %124 = vmatpush.msra.mxu0 0.0
  %125 = vmatpush.msra.mxu0 0.0
  %126 = vmatpush.msra.mxu0 0.0
  %127 = vmatpush.msra.mxu0 0.0
  %128 = vmatpush.msra.mxu0 0.0
  %129 = vmatpush.msra.mxu0 0.0
  %130 = vmatpush.msra.mxu0 0.0
  %131 = vmatpush.msra.mxu0 0.0
  %132 = vmatpush.msra.mxu0 0.0
  %133 = vmatpush.msra.mxu0 0.0
  %134 = vmatpush.msra.mxu0 %v60
  %135 = vmatpush.msra.mxu0 %v33
  %136 = vmatpush.msra.mxu0 %v29
  %137 = vmatpush.msra.mxu0 %v25
  %138 = vmatpush.msra.mxu0 %v21
  %139 = vmatmul.f32.gmra.mxu0 %v41
  %v140 = vpop.f32.mrf.mxu0
  %v141 = vadd.f32 0.0, %v140
  %142 = vmatmul.f32.gmra.mxu0 %v44
  %v143 = vpop.f32.mrf.mxu0
  %v144 = vadd.f32 0.0, %v143
  %145 = vmatmul.f32.gmra.mxu0 %v47
  %v146 = vpop.f32.mrf.mxu0
  %v147 = vadd.f32 0.0, %v146
  %148 = vmatmul.f32.gmra.mxu0 %v50
  %v149 = vpop.f32.mrf.mxu0
  %v150 = vadd.f32 0.0, %v149
  %151 = vdwg.mxu0
  %152 = vmatpush.msra.mxu0 0.0
  %153 = vmatpush.msra.mxu0 0.0
  %154 = vmatpush.msra.mxu0 0.0
  %155 = vmatpush.msra.mxu0 0.0
  %156 = vmatpush.msra.mxu0 0.0
  %157 = vmatpush.msra.mxu0 0.0
  %158 = vmatpush.msra.mxu0 0.0
  %159 = vmatpush.msra.mxu0 0.0
  %160 = vmatpush.msra.mxu0 0.0
  %161 = vmatpush.msra.mxu0 0.0
  %162 = vmatpush.msra.mxu0 0.0
  %163 = vmatpush.msra.mxu0 %v63
  %164 = vmatpush.msra.mxu0 %v34
  %165 = vmatpush.msra.mxu0 %v30
  %166 = vmatpush.msra.mxu0 %v26
  %167 = vmatpush.msra.mxu0 %v22
  %168 = vmatmul.f32.gmra.mxu0 %v41
  %v169 = vpop.f32.mrf.mxu0
  %v170 = vadd.f32 0.0, %v169
  %171 = vmatmul.f32.gmra.mxu0 %v44
  %v172 = vpop.f32.mrf.mxu0
  %v173 = vadd.f32 0.0, %v172
  %174 = vmatmul.f32.gmra.mxu0 %v47
  %v175 = vpop.f32.mrf.mxu0
  %v176 = vadd.f32 0.0, %v175
  %177 = vmatmul.f32.gmra.mxu0 %v50
  %v178 = vpop.f32.mrf.mxu0
  %v179 = vadd.f32 0.0, %v178
  %180 = vdwg.mxu0
  %v181 = vmax.f32 %v83, 0.0
  %v182 = vmax.f32 %v112, 0.0
  %v183 = vmax.f32 %v141, 0.0
  %v184 = vmax.f32 %v170, 0.0
  %v185 = vmax.f32 %v86, 0.0
  %v186 = vmax.f32 %v115, 0.0
  %v187 = vmax.f32 %v144, 0.0
  %v188 = vmax.f32 %v173, 0.0
  %v189 = vmax.f32 %v89, 0.0
  %v190 = vmax.f32 %v118, 0.0
  %v191 = vmax.f32 %v147, 0.0
  %v192 = vmax.f32 %v176, 0.0
  %v193 = vmax.f32 %v92, 0.0
  %v194 = vmax.f32 %v121, 0.0
  %v195 = vmax.f32 %v150, 0.0
  %v196 = vmax.f32 %v179, 0.0
  %v197 = vpack.c.bf16 %v185, %v181
  %v198 = vpack.c.bf16 %v193, %v189
  %v199 = vld [vmem:[%s2] sm:$0xff]
  %v200 = vpack.c.bf16 %v199, %v199
  %vm201 = vcmask 261120
  %v203 = vsel %vm201, %v200, 0
  %205 = vmatpush.bf16.msra.mxu0 0
  %206 = vmatpush.bf16.msra.mxu0 0
  %207 = vmatpush.bf16.msra.mxu0 0
  %208 = vmatpush.bf16.msra.mxu0 0
  %209 = vmatpush.bf16.msra.mxu0 0
  %210 = vmatpush.bf16.msra.mxu0 0
  %211 = vmatpush.bf16.msra.mxu0 %v198
  %212 = vmatpush.bf16.msra.mxu0 %v197
  %213 = vmatmul.bf16.gmra.mxu0 %v203
  %v214 = vpop.f32.mrf.mxu0
  %v215 = vadd.f32 0.0, %v214
  %v216 = vpop.f32.mrf.mxu0
  %217 = vdwg.mxu0
  %v218 = vrot.slane %v215, 4
  %v219 = vmax.f32 %v215, %v218
  %v220 = vrot.slane %v219, 2
  %v221 = vmax.f32 %v219, %v220
  %v222 = vrot.slane %v221, 1
  %v223 = vmax.f32 %v221, %v222
  %v224 = vsub.f32 %v215, %v223
  %v225 = vmul.f32 %v224, 1.442695
  %v226 = vpow.pop %v225
  %v227 = vrot.slane %v226, 4
  %v228 = vadd.f32 %v226, %v227
  %v229 = vrot.slane %v228, 2
  %v230 = vadd.f32 %v228, %v229
  %v231 = vrot.slane %v230, 1
  %v232 = vadd.f32 %v230, %v231
  %v233 = vrcp.pop %v232
  %v234 = vmul.f32 %v226, %v233
  %235 = vmatpush.bf16.xpose.msra.mxu0 0
  %236 = vmatpush.bf16.xpose.msra.mxu0 0
  %237 = vmatpush.bf16.xpose.msra.mxu0 0
  %238 = vmatpush.bf16.xpose.msra.mxu0 0
  %239 = vmatpush.bf16.xpose.msra.mxu0 0
  %240 = vmatpush.bf16.xpose.msra.mxu0 0
  %241 = vmatpush.bf16.xpose.msra.mxu0 0
  %242 = vmatpush.bf16.xpose.msra.mxu0 %v203
  %243 = vmatmul.bf16.gmra.mxu0 %v203
  %v244 = vpop.f32.mrf.mxu0
  %v245 = vadd.f32 0.0, %v244
  %v246 = vpop.f32.mrf.mxu0
  %247 = vdwg.mxu0
  %v248 = vpack.c.bf16 %v245, %v245
  %v249 = vpack.c.bf16 %v234, %v234
  %v250 = vmul.f32 %v234, %v215
  %vm251 = vcmask 64512
  %v253 = vsel %vm251, %v248, 0
  %vm255 = vcmask 1043456
  %v257 = vsel %vm255, %v249, 0
  %259 = vmatpush.bf16.msra.mxu0 0
  %260 = vmatpush.bf16.msra.mxu0 0
  %261 = vmatpush.bf16.msra.mxu0 0
  %262 = vmatpush.bf16.msra.mxu0 0
  %263 = vmatpush.bf16.msra.mxu0 0
  %264 = vmatpush.bf16.msra.mxu0 0
  %265 = vmatpush.bf16.msra.mxu0 0
  %266 = vmatpush.bf16.msra.mxu0 %v257
  %267 = vmatmul.bf16.gmra.mxu0 %v253
  %v268 = vpop.f32.mrf.mxu0
  %v269 = vadd.f32 1e-06, %v268
  %v270 = vpop.f32.mrf.mxu0
  %271 = vdwg.mxu0
  %v272 = vrcp.pop %v269
  %v273 = vmul.f32 %v250, %v272
  %v274 = vpack.c.bf16 %v273, %v273
  %275 = vmatpush.bf16.xpose.msra.mxu0 0
  %276 = vmatpush.bf16.xpose.msra.mxu0 0
  %277 = vmatpush.bf16.xpose.msra.mxu0 0
  %278 = vmatpush.bf16.xpose.msra.mxu0 0
  %279 = vmatpush.bf16.xpose.msra.mxu0 0
  %280 = vmatpush.bf16.xpose.msra.mxu0 0
  %281 = vmatpush.bf16.xpose.msra.mxu0 %v198
  %282 = vmatpush.bf16.xpose.msra.mxu0 %v197
  %283 = vmatmul.bf16.gmra.mxu0 %v274
  %v284 = vpop.f32.mrf.mxu0
  %v285 = vadd.f32 0.0, %v284
  %v286 = vpop.f32.mrf.mxu0
  %287 = vdwg.mxu0
  %288 = vmatpush.bf16.xpose.msra.mxu0 0
  %289 = vmatpush.bf16.xpose.msra.mxu0 0
  %290 = vmatpush.bf16.xpose.msra.mxu0 0
  %291 = vmatpush.bf16.xpose.msra.mxu0 0
  %292 = vmatpush.bf16.xpose.msra.mxu0 0
  %293 = vmatpush.bf16.xpose.msra.mxu0 0
  %294 = vmatpush.bf16.xpose.msra.mxu0 0
  %295 = vmatpush.bf16.xpose.msra.mxu0 %v274
  %296 = vmatmul.bf16.gmra.mxu0 %v274
  %v297 = vpop.f32.mrf.mxu0
  %v298 = vadd.f32 0.0, %v297
  %v299 = vpop.f32.mrf.mxu0
  %300 = vdwg.mxu0
  %v301 = vpack.c.bf16 %v298, %v298
  %v302 = vmul.f32 %v199, %v285
  %v304 = vsel %vm251, %v301, 0
  %v306 = vsel %vm255, %v200, 0
  %308 = vmatpush.bf16.msra.mxu0 0
  %309 = vmatpush.bf16.msra.mxu0 0
  %310 = vmatpush.bf16.msra.mxu0 0
  %311 = vmatpush.bf16.msra.mxu0 0
  %312 = vmatpush.bf16.msra.mxu0 0
  %313 = vmatpush.bf16.msra.mxu0 0
  %314 = vmatpush.bf16.msra.mxu0 0
  %315 = vmatpush.bf16.msra.mxu0 %v306
  %316 = vmatmul.bf16.gmra.mxu0 %v304
  %v317 = vpop.f32.mrf.mxu0
  %v318 = vadd.f32 1e-06, %v317
  %v319 = vpop.f32.mrf.mxu0
  %320 = vdwg.mxu0
  %v321 = vrcp.pop %v318
  %v322 = vmul.f32 %v302, %v321
  %v323 = vpack.c.bf16 %v322, %v322
  %v325 = vsel %vm201, %v323, 0
  %327 = vmatpush.bf16.msra.mxu0 0
  %328 = vmatpush.bf16.msra.mxu0 0
  %329 = vmatpush.bf16.msra.mxu0 0
  %330 = vmatpush.bf16.msra.mxu0 0
  %331 = vmatpush.bf16.msra.mxu0 0
  %332 = vmatpush.bf16.msra.mxu0 0
  %333 = vmatpush.bf16.msra.mxu0 %v198
  %334 = vmatpush.bf16.msra.mxu0 %v197
  %335 = vmatmul.bf16.gmra.mxu0 %v325
  %v336 = vpop.f32.mrf.mxu0
  %v337 = vadd.f32 0.0, %v336
  %v338 = vpop.f32.mrf.mxu0
  %339 = vdwg.mxu0
  %340 = vmatpush.bf16.xpose.msra.mxu0 0
  %341 = vmatpush.bf16.xpose.msra.mxu0 0
  %342 = vmatpush.bf16.xpose.msra.mxu0 0
  %343 = vmatpush.bf16.xpose.msra.mxu0 0
  %344 = vmatpush.bf16.xpose.msra.mxu0 0
  %345 = vmatpush.bf16.xpose.msra.mxu0 0
  %346 = vmatpush.bf16.xpose.msra.mxu0 0
  %347 = vmatpush.bf16.xpose.msra.mxu0 %v325
  %348 = vmatmul.bf16.gmra.mxu0 %v325
  %v349 = vpop.f32.mrf.mxu0
  %v350 = vadd.f32 0.0, %v349
  %v351 = vpop.f32.mrf.mxu0
  %352 = vdwg.mxu0
  %v353 = vpack.c.bf16 %v350, %v350
  %v354 = vmul.f32 %v273, %v337
  %v356 = vsel %vm251, %v353, 0
  %v359 = vsel %vm255, %v274, 0
  %361 = vmatpush.bf16.msra.mxu0 0
  %362 = vmatpush.bf16.msra.mxu0 0
  %363 = vmatpush.bf16.msra.mxu0 0
  %364 = vmatpush.bf16.msra.mxu0 0
  %365 = vmatpush.bf16.msra.mxu0 0
  %366 = vmatpush.bf16.msra.mxu0 0
  %367 = vmatpush.bf16.msra.mxu0 0
  %368 = vmatpush.bf16.msra.mxu0 %v359
  %369 = vmatmul.bf16.gmra.mxu0 %v356
  %v370 = vpop.f32.mrf.mxu0
  %v371 = vadd.f32 1e-06, %v370
  %v372 = vpop.f32.mrf.mxu0
  %373 = vdwg.mxu0
  %v374 = vrcp.pop %v371
  %v375 = vmul.f32 %v354, %v374
  %v376 = vpack.c.bf16 %v375, %v375
  %377 = vmatpush.bf16.xpose.msra.mxu0 0
  %378 = vmatpush.bf16.xpose.msra.mxu0 0
  %379 = vmatpush.bf16.xpose.msra.mxu0 0
  %380 = vmatpush.bf16.xpose.msra.mxu0 0
  %381 = vmatpush.bf16.xpose.msra.mxu0 0
  %382 = vmatpush.bf16.xpose.msra.mxu0 0
  %383 = vmatpush.bf16.xpose.msra.mxu0 %v198
  %384 = vmatpush.bf16.xpose.msra.mxu0 %v197
  %385 = vmatmul.bf16.gmra.mxu0 %v376
  %v386 = vpop.f32.mrf.mxu0
  %v387 = vadd.f32 0.0, %v386
  %v388 = vpop.f32.mrf.mxu0
  %389 = vdwg.mxu0
  %390 = vmatpush.bf16.xpose.msra.mxu0 0
  %391 = vmatpush.bf16.xpose.msra.mxu0 0
  %392 = vmatpush.bf16.xpose.msra.mxu0 0
  %393 = vmatpush.bf16.xpose.msra.mxu0 0
  %394 = vmatpush.bf16.xpose.msra.mxu0 0
  %395 = vmatpush.bf16.xpose.msra.mxu0 0
  %396 = vmatpush.bf16.xpose.msra.mxu0 0
  %397 = vmatpush.bf16.xpose.msra.mxu0 %v376
  %398 = vmatmul.bf16.gmra.mxu0 %v376
  %v399 = vpop.f32.mrf.mxu0
  %v400 = vadd.f32 0.0, %v399
  %v401 = vpop.f32.mrf.mxu0
  %402 = vdwg.mxu0
  %v403 = vpack.c.bf16 %v400, %v400
  %v404 = vmul.f32 %v322, %v387
  %v406 = vsel %vm251, %v403, 0
  %v408 = vsel %vm255, %v323, 0
  %410 = vmatpush.bf16.msra.mxu0 0
  %411 = vmatpush.bf16.msra.mxu0 0
  %412 = vmatpush.bf16.msra.mxu0 0
  %413 = vmatpush.bf16.msra.mxu0 0
  %414 = vmatpush.bf16.msra.mxu0 0
  %415 = vmatpush.bf16.msra.mxu0 0
  %416 = vmatpush.bf16.msra.mxu0 0
  %417 = vmatpush.bf16.msra.mxu0 %v408
  %418 = vmatmul.bf16.gmra.mxu0 %v406
  %v419 = vpop.f32.mrf.mxu0
  %v420 = vadd.f32 1e-06, %v419
  %v421 = vpop.f32.mrf.mxu0
  %422 = vdwg.mxu0
  %v423 = vrcp.pop %v420
  %v424 = vmul.f32 %v404, %v423
  %v425 = vpack.c.bf16 %v424, %v424
  %v427 = vsel %vm201, %v425, 0
  %429 = vmatpush.bf16.msra.mxu0 0
  %430 = vmatpush.bf16.msra.mxu0 0
  %431 = vmatpush.bf16.msra.mxu0 0
  %432 = vmatpush.bf16.msra.mxu0 0
  %433 = vmatpush.bf16.msra.mxu0 0
  %434 = vmatpush.bf16.msra.mxu0 0
  %435 = vmatpush.bf16.msra.mxu0 %v198
  %436 = vmatpush.bf16.msra.mxu0 %v197
  %437 = vmatmul.bf16.gmra.mxu0 %v427
  %v438 = vpop.f32.mrf.mxu0
  %v439 = vadd.f32 0.0, %v438
  %v440 = vpop.f32.mrf.mxu0
  %441 = vdwg.mxu0
  %442 = vmatpush.bf16.xpose.msra.mxu0 0
  %443 = vmatpush.bf16.xpose.msra.mxu0 0
  %444 = vmatpush.bf16.xpose.msra.mxu0 0
  %445 = vmatpush.bf16.xpose.msra.mxu0 0
  %446 = vmatpush.bf16.xpose.msra.mxu0 0
  %447 = vmatpush.bf16.xpose.msra.mxu0 0
  %448 = vmatpush.bf16.xpose.msra.mxu0 0
  %449 = vmatpush.bf16.xpose.msra.mxu0 %v427
  %450 = vmatmul.bf16.gmra.mxu0 %v427
  %v451 = vpop.f32.mrf.mxu0
  %v452 = vadd.f32 0.0, %v451
  %v453 = vpop.f32.mrf.mxu0
  %454 = vdwg.mxu0
  %v455 = vpack.c.bf16 %v452, %v452
  %v456 = vmul.f32 %v375, %v439
  %v458 = vsel %vm251, %v455, 0
  %v461 = vsel %vm255, %v376, 0
  %463 = vmatpush.bf16.msra.mxu0 0
  %464 = vmatpush.bf16.msra.mxu0 0
  %465 = vmatpush.bf16.msra.mxu0 0
  %466 = vmatpush.bf16.msra.mxu0 0
  %467 = vmatpush.bf16.msra.mxu0 0
  %468 = vmatpush.bf16.msra.mxu0 0
  %469 = vmatpush.bf16.msra.mxu0 0
  %470 = vmatpush.bf16.msra.mxu0 %v461
  %471 = vmatmul.bf16.gmra.mxu0 %v458
  %v472 = vpop.f32.mrf.mxu0
  %v473 = vadd.f32 1e-06, %v472
  %v474 = vpop.f32.mrf.mxu0
  %475 = vdwg.mxu0
  %v476 = vrcp.pop %v473
  %v477 = vmul.f32 %v456, %v476
  %v478 = vpack.c.bf16 %v477, %v477
  %479 = vmatpush.bf16.xpose.msra.mxu0 0
  %480 = vmatpush.bf16.xpose.msra.mxu0 0
  %481 = vmatpush.bf16.xpose.msra.mxu0 0
  %482 = vmatpush.bf16.xpose.msra.mxu0 0
  %483 = vmatpush.bf16.xpose.msra.mxu0 0
  %484 = vmatpush.bf16.xpose.msra.mxu0 0
  %485 = vmatpush.bf16.xpose.msra.mxu0 %v198
  %486 = vmatpush.bf16.xpose.msra.mxu0 %v197
  %487 = vmatmul.bf16.gmra.mxu0 %v478
  %v488 = vpop.f32.mrf.mxu0
  %v489 = vadd.f32 0.0, %v488
  %v490 = vpop.f32.mrf.mxu0
  %491 = vdwg.mxu0
  %492 = vmatpush.bf16.xpose.msra.mxu0 0
  %493 = vmatpush.bf16.xpose.msra.mxu0 0
  %494 = vmatpush.bf16.xpose.msra.mxu0 0
  %495 = vmatpush.bf16.xpose.msra.mxu0 0
  %496 = vmatpush.bf16.xpose.msra.mxu0 0
  %497 = vmatpush.bf16.xpose.msra.mxu0 0
  %498 = vmatpush.bf16.xpose.msra.mxu0 0
  %499 = vmatpush.bf16.xpose.msra.mxu0 %v478
  %500 = vmatmul.bf16.gmra.mxu0 %v478
  %v501 = vpop.f32.mrf.mxu0
  %v502 = vadd.f32 0.0, %v501
  %v503 = vpop.f32.mrf.mxu0
  %504 = vdwg.mxu0
  %v505 = vpack.c.bf16 %v502, %v502
  %v506 = vmul.f32 %v424, %v489
  %v508 = vsel %vm251, %v505, 0
  %v510 = vsel %vm255, %v425, 0
  %512 = vmatpush.bf16.msra.mxu0 0
  %513 = vmatpush.bf16.msra.mxu0 0
  %514 = vmatpush.bf16.msra.mxu0 0
  %515 = vmatpush.bf16.msra.mxu0 0
  %516 = vmatpush.bf16.msra.mxu0 0
  %517 = vmatpush.bf16.msra.mxu0 0
  %518 = vmatpush.bf16.msra.mxu0 0
  %519 = vmatpush.bf16.msra.mxu0 %v510
  %520 = vmatmul.bf16.gmra.mxu0 %v508
  %v521 = vpop.f32.mrf.mxu0
  %v522 = vadd.f32 1e-06, %v521
  %v523 = vpop.f32.mrf.mxu0
  %524 = vdwg.mxu0
  %v525 = vrcp.pop %v522
  %v526 = vmul.f32 %v506, %v525
  %v527 = vpack.c.bf16 %v526, %v526
  %v529 = vsel %vm201, %v527, 0
  %531 = vmatpush.bf16.msra.mxu0 0
  %532 = vmatpush.bf16.msra.mxu0 0
  %533 = vmatpush.bf16.msra.mxu0 0
  %534 = vmatpush.bf16.msra.mxu0 0
  %535 = vmatpush.bf16.msra.mxu0 0
  %536 = vmatpush.bf16.msra.mxu0 0
  %537 = vmatpush.bf16.msra.mxu0 %v198
  %538 = vmatpush.bf16.msra.mxu0 %v197
  %539 = vmatmul.bf16.gmra.mxu0 %v529
  %v540 = vpop.f32.mrf.mxu0
  %v541 = vadd.f32 0.0, %v540
  %v542 = vpop.f32.mrf.mxu0
  %543 = vdwg.mxu0
  %544 = vmatpush.bf16.xpose.msra.mxu0 0
  %545 = vmatpush.bf16.xpose.msra.mxu0 0
  %546 = vmatpush.bf16.xpose.msra.mxu0 0
  %547 = vmatpush.bf16.xpose.msra.mxu0 0
  %548 = vmatpush.bf16.xpose.msra.mxu0 0
  %549 = vmatpush.bf16.xpose.msra.mxu0 0
  %550 = vmatpush.bf16.xpose.msra.mxu0 0
  %551 = vmatpush.bf16.xpose.msra.mxu0 %v529
  %552 = vmatmul.bf16.gmra.mxu0 %v529
  %v553 = vpop.f32.mrf.mxu0
  %v554 = vadd.f32 0.0, %v553
  %v555 = vpop.f32.mrf.mxu0
  %556 = vdwg.mxu0
  %v557 = vpack.c.bf16 %v554, %v554
  %v558 = vmul.f32 %v477, %v541
  %v560 = vsel %vm251, %v557, 0
  %v563 = vsel %vm255, %v478, 0
  %565 = vmatpush.bf16.msra.mxu0 0
  %566 = vmatpush.bf16.msra.mxu0 0
  %567 = vmatpush.bf16.msra.mxu0 0
  %568 = vmatpush.bf16.msra.mxu0 0
  %569 = vmatpush.bf16.msra.mxu0 0
  %570 = vmatpush.bf16.msra.mxu0 0
  %571 = vmatpush.bf16.msra.mxu0 0
  %572 = vmatpush.bf16.msra.mxu0 %v563
  %573 = vmatmul.bf16.gmra.mxu0 %v560
  %v574 = vpop.f32.mrf.mxu0
  %v575 = vadd.f32 1e-06, %v574
  %v576 = vpop.f32.mrf.mxu0
  %577 = vdwg.mxu0
  %v578 = vrcp.pop %v575
  %v579 = vmul.f32 %v558, %v578
  %v580 = vpack.c.bf16 %v579, %v579
  %581 = vmatpush.bf16.xpose.msra.mxu0 0
  %582 = vmatpush.bf16.xpose.msra.mxu0 0
  %583 = vmatpush.bf16.xpose.msra.mxu0 0
  %584 = vmatpush.bf16.xpose.msra.mxu0 0
  %585 = vmatpush.bf16.xpose.msra.mxu0 0
  %586 = vmatpush.bf16.xpose.msra.mxu0 0
  %587 = vmatpush.bf16.xpose.msra.mxu0 %v198
  %588 = vmatpush.bf16.xpose.msra.mxu0 %v197
  %589 = vmatmul.bf16.gmra.mxu0 %v580
  %v590 = vpop.f32.mrf.mxu0
  %v591 = vadd.f32 0.0, %v590
  %v592 = vpop.f32.mrf.mxu0
  %593 = vdwg.mxu0
  %594 = vmatpush.bf16.xpose.msra.mxu0 0
  %595 = vmatpush.bf16.xpose.msra.mxu0 0
  %596 = vmatpush.bf16.xpose.msra.mxu0 0
  %597 = vmatpush.bf16.xpose.msra.mxu0 0
  %598 = vmatpush.bf16.xpose.msra.mxu0 0
  %599 = vmatpush.bf16.xpose.msra.mxu0 0
  %600 = vmatpush.bf16.xpose.msra.mxu0 0
  %601 = vmatpush.bf16.xpose.msra.mxu0 %v580
  %602 = vmatmul.bf16.gmra.mxu0 %v580
  %v603 = vpop.f32.mrf.mxu0
  %v604 = vadd.f32 0.0, %v603
  %v605 = vpop.f32.mrf.mxu0
  %606 = vdwg.mxu0
  %v607 = vpack.c.bf16 %v604, %v604
  %v608 = vmul.f32 %v526, %v591
  %v610 = vsel %vm251, %v607, 0
  %v612 = vsel %vm255, %v527, 0
  %614 = vmatpush.bf16.msra.mxu0 0
  %615 = vmatpush.bf16.msra.mxu0 0
  %616 = vmatpush.bf16.msra.mxu0 0
  %617 = vmatpush.bf16.msra.mxu0 0
  %618 = vmatpush.bf16.msra.mxu0 0
  %619 = vmatpush.bf16.msra.mxu0 0
  %620 = vmatpush.bf16.msra.mxu0 0
  %621 = vmatpush.bf16.msra.mxu0 %v612
  %622 = vmatmul.bf16.gmra.mxu0 %v610
  %v623 = vpop.f32.mrf.mxu0
  %v624 = vadd.f32 1e-06, %v623
  %v625 = vpop.f32.mrf.mxu0
  %626 = vdwg.mxu0
  %v627 = vrcp.pop %v624
  %v628 = vmul.f32 %v608, %v627
  %v629 = vpack.c.bf16 %v628, %v628
  %v631 = vsel %vm201, %v629, 0
  %633 = vmatpush.bf16.msra.mxu0 0
  %634 = vmatpush.bf16.msra.mxu0 0
  %635 = vmatpush.bf16.msra.mxu0 0
  %636 = vmatpush.bf16.msra.mxu0 0
  %637 = vmatpush.bf16.msra.mxu0 0
  %638 = vmatpush.bf16.msra.mxu0 0
  %639 = vmatpush.bf16.msra.mxu0 %v198
  %640 = vmatpush.bf16.msra.mxu0 %v197
  %641 = vmatmul.bf16.gmra.mxu0 %v631
  %v642 = vpop.f32.mrf.mxu0
  %v643 = vadd.f32 0.0, %v642
  %v644 = vpop.f32.mrf.mxu0
  %645 = vdwg.mxu0
  %646 = vmatpush.bf16.xpose.msra.mxu0 0
  %647 = vmatpush.bf16.xpose.msra.mxu0 0
  %648 = vmatpush.bf16.xpose.msra.mxu0 0
  %649 = vmatpush.bf16.xpose.msra.mxu0 0
  %650 = vmatpush.bf16.xpose.msra.mxu0 0
  %651 = vmatpush.bf16.xpose.msra.mxu0 0
  %652 = vmatpush.bf16.xpose.msra.mxu0 0
  %653 = vmatpush.bf16.xpose.msra.mxu0 %v631
  %654 = vmatmul.bf16.gmra.mxu0 %v631
  %v655 = vpop.f32.mrf.mxu0
  %v656 = vadd.f32 0.0, %v655
  %v657 = vpop.f32.mrf.mxu0
  %658 = vdwg.mxu0
  %v659 = vpack.c.bf16 %v656, %v656
  %v660 = vmul.f32 %v579, %v643
  %v662 = vsel %vm251, %v659, 0
  %v665 = vsel %vm255, %v580, 0
  %667 = vmatpush.bf16.msra.mxu0 0
  %668 = vmatpush.bf16.msra.mxu0 0
  %669 = vmatpush.bf16.msra.mxu0 0
  %670 = vmatpush.bf16.msra.mxu0 0
  %671 = vmatpush.bf16.msra.mxu0 0
  %672 = vmatpush.bf16.msra.mxu0 0
  %673 = vmatpush.bf16.msra.mxu0 0
  %674 = vmatpush.bf16.msra.mxu0 %v665
  %675 = vmatmul.bf16.gmra.mxu0 %v662
  %v676 = vpop.f32.mrf.mxu0
  %v677 = vadd.f32 1e-06, %v676
  %v678 = vpop.f32.mrf.mxu0
  %679 = vdwg.mxu0
  %v680 = vrcp.pop %v677
  %v681 = vmul.f32 %v660, %v680
  %v682 = vpack.c.bf16 %v681, %v681
  %683 = vmatpush.bf16.xpose.msra.mxu0 0
  %684 = vmatpush.bf16.xpose.msra.mxu0 0
  %685 = vmatpush.bf16.xpose.msra.mxu0 0
  %686 = vmatpush.bf16.xpose.msra.mxu0 0
  %687 = vmatpush.bf16.xpose.msra.mxu0 0
  %688 = vmatpush.bf16.xpose.msra.mxu0 0
  %689 = vmatpush.bf16.xpose.msra.mxu0 %v198
  %690 = vmatpush.bf16.xpose.msra.mxu0 %v197
  %691 = vmatmul.bf16.gmra.mxu0 %v682
  %v692 = vpop.f32.mrf.mxu0
  %v693 = vadd.f32 0.0, %v692
  %v694 = vpop.f32.mrf.mxu0
  %695 = vdwg.mxu0
  %696 = vmatpush.bf16.xpose.msra.mxu0 0
  %697 = vmatpush.bf16.xpose.msra.mxu0 0
  %698 = vmatpush.bf16.xpose.msra.mxu0 0
  %699 = vmatpush.bf16.xpose.msra.mxu0 0
  %700 = vmatpush.bf16.xpose.msra.mxu0 0
  %701 = vmatpush.bf16.xpose.msra.mxu0 0
  %702 = vmatpush.bf16.xpose.msra.mxu0 0
  %703 = vmatpush.bf16.xpose.msra.mxu0 %v682
  %704 = vmatmul.bf16.gmra.mxu0 %v682
  %v705 = vpop.f32.mrf.mxu0
  %v706 = vadd.f32 0.0, %v705
  %v707 = vpop.f32.mrf.mxu0
  %708 = vdwg.mxu0
  %v709 = vpack.c.bf16 %v706, %v706
  %v710 = vmul.f32 %v628, %v693
  %v712 = vsel %vm251, %v709, 0
  %v714 = vsel %vm255, %v629, 0
  %716 = vmatpush.bf16.msra.mxu0 0
  %717 = vmatpush.bf16.msra.mxu0 0
  %718 = vmatpush.bf16.msra.mxu0 0
  %719 = vmatpush.bf16.msra.mxu0 0
  %720 = vmatpush.bf16.msra.mxu0 0
  %721 = vmatpush.bf16.msra.mxu0 0
  %722 = vmatpush.bf16.msra.mxu0 0
  %723 = vmatpush.bf16.msra.mxu0 %v714
  %724 = vmatmul.bf16.gmra.mxu0 %v712
  %v725 = vpop.f32.mrf.mxu0
  %v726 = vadd.f32 1e-06, %v725
  %v727 = vpop.f32.mrf.mxu0
  %728 = vdwg.mxu0
  %v729 = vrcp.pop %v726
  %v730 = vmul.f32 %v710, %v729
  %v731 = vpack.c.bf16 %v730, %v730
  %v733 = vsel %vm201, %v731, 0
  %735 = vmatpush.bf16.msra.mxu0 0
  %736 = vmatpush.bf16.msra.mxu0 0
  %737 = vmatpush.bf16.msra.mxu0 0
  %738 = vmatpush.bf16.msra.mxu0 0
  %739 = vmatpush.bf16.msra.mxu0 0
  %740 = vmatpush.bf16.msra.mxu0 0
  %741 = vmatpush.bf16.msra.mxu0 %v198
  %742 = vmatpush.bf16.msra.mxu0 %v197
  %743 = vmatmul.bf16.gmra.mxu0 %v733
  %v744 = vpop.f32.mrf.mxu0
  %v745 = vadd.f32 0.0, %v744
  %v746 = vpop.f32.mrf.mxu0
  %747 = vdwg.mxu0
  %748 = vmatpush.bf16.xpose.msra.mxu0 0
  %749 = vmatpush.bf16.xpose.msra.mxu0 0
  %750 = vmatpush.bf16.xpose.msra.mxu0 0
  %751 = vmatpush.bf16.xpose.msra.mxu0 0
  %752 = vmatpush.bf16.xpose.msra.mxu0 0
  %753 = vmatpush.bf16.xpose.msra.mxu0 0
  %754 = vmatpush.bf16.xpose.msra.mxu0 0
  %755 = vmatpush.bf16.xpose.msra.mxu0 %v733
  %756 = vmatmul.bf16.gmra.mxu0 %v733
  %v757 = vpop.f32.mrf.mxu0
  %v758 = vadd.f32 0.0, %v757
  %v759 = vpop.f32.mrf.mxu0
  %760 = vdwg.mxu0
  %v761 = vpack.c.bf16 %v758, %v758
  %v762 = vmul.f32 %v681, %v745
  %v764 = vsel %vm251, %v761, 0
  %v767 = vsel %vm255, %v682, 0
  %769 = vmatpush.bf16.msra.mxu0 0
  %770 = vmatpush.bf16.msra.mxu0 0
  %771 = vmatpush.bf16.msra.mxu0 0
  %772 = vmatpush.bf16.msra.mxu0 0
  %773 = vmatpush.bf16.msra.mxu0 0
  %774 = vmatpush.bf16.msra.mxu0 0
  %775 = vmatpush.bf16.msra.mxu0 0
  %776 = vmatpush.bf16.msra.mxu0 %v767
  %777 = vmatmul.bf16.gmra.mxu0 %v764
  %v778 = vpop.f32.mrf.mxu0
  %v779 = vadd.f32 1e-06, %v778
  %v780 = vpop.f32.mrf.mxu0
  %781 = vdwg.mxu0
  %v782 = vrcp.pop %v779
  %v783 = vmul.f32 %v762, %v782
  %v784 = vpack.c.bf16 %v783, %v783
  %785 = vmatpush.bf16.xpose.msra.mxu0 0
  %786 = vmatpush.bf16.xpose.msra.mxu0 0
  %787 = vmatpush.bf16.xpose.msra.mxu0 0
  %788 = vmatpush.bf16.xpose.msra.mxu0 0
  %789 = vmatpush.bf16.xpose.msra.mxu0 0
  %790 = vmatpush.bf16.xpose.msra.mxu0 0
  %791 = vmatpush.bf16.xpose.msra.mxu0 %v198
  %792 = vmatpush.bf16.xpose.msra.mxu0 %v197
  %793 = vmatmul.bf16.gmra.mxu0 %v784
  %v794 = vpop.f32.mrf.mxu0
  %v795 = vadd.f32 0.0, %v794
  %v796 = vpop.f32.mrf.mxu0
  %797 = vdwg.mxu0
  %798 = vmatpush.bf16.xpose.msra.mxu0 0
  %799 = vmatpush.bf16.xpose.msra.mxu0 0
  %800 = vmatpush.bf16.xpose.msra.mxu0 0
  %801 = vmatpush.bf16.xpose.msra.mxu0 0
  %802 = vmatpush.bf16.xpose.msra.mxu0 0
  %803 = vmatpush.bf16.xpose.msra.mxu0 0
  %804 = vmatpush.bf16.xpose.msra.mxu0 0
  %805 = vmatpush.bf16.xpose.msra.mxu0 %v784
  %806 = vmatmul.bf16.gmra.mxu0 %v784
  %v807 = vpop.f32.mrf.mxu0
  %v808 = vadd.f32 0.0, %v807
  %v809 = vpop.f32.mrf.mxu0
  %810 = vdwg.mxu0
  %v811 = vpack.c.bf16 %v808, %v808
  %v812 = vmul.f32 %v730, %v795
  %v814 = vsel %vm251, %v811, 0
  %v816 = vsel %vm255, %v731, 0
  %818 = vmatpush.bf16.msra.mxu0 0
  %819 = vmatpush.bf16.msra.mxu0 0
  %820 = vmatpush.bf16.msra.mxu0 0
  %821 = vmatpush.bf16.msra.mxu0 0
  %822 = vmatpush.bf16.msra.mxu0 0
  %823 = vmatpush.bf16.msra.mxu0 0
  %824 = vmatpush.bf16.msra.mxu0 0
  %825 = vmatpush.bf16.msra.mxu0 %v816
  %826 = vmatmul.bf16.gmra.mxu0 %v814
  %v827 = vpop.f32.mrf.mxu0
  %v828 = vadd.f32 1e-06, %v827
  %v829 = vpop.f32.mrf.mxu0
  %830 = vdwg.mxu0
  %v831 = vrcp.pop %v828
  %v832 = vmul.f32 %v812, %v831
  %v833 = vpack.c.bf16 %v832, %v832
  %v835 = vsel %vm201, %v833, 0
  %837 = vmatpush.bf16.msra.mxu0 0
  %838 = vmatpush.bf16.msra.mxu0 0
  %839 = vmatpush.bf16.msra.mxu0 0
  %840 = vmatpush.bf16.msra.mxu0 0
  %841 = vmatpush.bf16.msra.mxu0 0
  %842 = vmatpush.bf16.msra.mxu0 0
  %843 = vmatpush.bf16.msra.mxu0 %v198
  %844 = vmatpush.bf16.msra.mxu0 %v197
  %845 = vmatmul.bf16.gmra.mxu0 %v835
  %v846 = vpop.f32.mrf.mxu0
  %v847 = vadd.f32 0.0, %v846
  %v848 = vpop.f32.mrf.mxu0
  %849 = vdwg.mxu0
  %850 = vmatpush.bf16.xpose.msra.mxu0 0
  %851 = vmatpush.bf16.xpose.msra.mxu0 0
  %852 = vmatpush.bf16.xpose.msra.mxu0 0
  %853 = vmatpush.bf16.xpose.msra.mxu0 0
  %854 = vmatpush.bf16.xpose.msra.mxu0 0
  %855 = vmatpush.bf16.xpose.msra.mxu0 0
  %856 = vmatpush.bf16.xpose.msra.mxu0 0
  %857 = vmatpush.bf16.xpose.msra.mxu0 %v835
  %858 = vmatmul.bf16.gmra.mxu0 %v835
  %v859 = vpop.f32.mrf.mxu0
  %v860 = vadd.f32 0.0, %v859
  %v861 = vpop.f32.mrf.mxu0
  %862 = vdwg.mxu0
  %v863 = vpack.c.bf16 %v860, %v860
  %v864 = vmul.f32 %v783, %v847
  %v866 = vsel %vm251, %v863, 0
  %v869 = vsel %vm255, %v784, 0
  %871 = vmatpush.bf16.msra.mxu0 0
  %872 = vmatpush.bf16.msra.mxu0 0
  %873 = vmatpush.bf16.msra.mxu0 0
  %874 = vmatpush.bf16.msra.mxu0 0
  %875 = vmatpush.bf16.msra.mxu0 0
  %876 = vmatpush.bf16.msra.mxu0 0
  %877 = vmatpush.bf16.msra.mxu0 0
  %878 = vmatpush.bf16.msra.mxu0 %v869
  %879 = vmatmul.bf16.gmra.mxu0 %v866
  %v880 = vpop.f32.mrf.mxu0
  %v881 = vadd.f32 1e-06, %v880
  %v882 = vpop.f32.mrf.mxu0
  %883 = vdwg.mxu0
  %v884 = vrcp.pop %v881
  %v885 = vmul.f32 %v864, %v884
  %v886 = vpack.c.bf16 %v885, %v885
  %887 = vmatpush.bf16.xpose.msra.mxu0 0
  %888 = vmatpush.bf16.xpose.msra.mxu0 0
  %889 = vmatpush.bf16.xpose.msra.mxu0 0
  %890 = vmatpush.bf16.xpose.msra.mxu0 0
  %891 = vmatpush.bf16.xpose.msra.mxu0 0
  %892 = vmatpush.bf16.xpose.msra.mxu0 0
  %893 = vmatpush.bf16.xpose.msra.mxu0 %v198
  %894 = vmatpush.bf16.xpose.msra.mxu0 %v197
  %895 = vmatmul.bf16.gmra.mxu0 %v886
  %v896 = vpop.f32.mrf.mxu0
  %v897 = vadd.f32 0.0, %v896
  %v898 = vpop.f32.mrf.mxu0
  %899 = vdwg.mxu0
  %900 = vmatpush.bf16.xpose.msra.mxu0 0
  %901 = vmatpush.bf16.xpose.msra.mxu0 0
  %902 = vmatpush.bf16.xpose.msra.mxu0 0
  %903 = vmatpush.bf16.xpose.msra.mxu0 0
  %904 = vmatpush.bf16.xpose.msra.mxu0 0
  %905 = vmatpush.bf16.xpose.msra.mxu0 0
  %906 = vmatpush.bf16.xpose.msra.mxu0 0
  %907 = vmatpush.bf16.xpose.msra.mxu0 %v886
  %908 = vmatmul.bf16.gmra.mxu0 %v886
  %v909 = vpop.f32.mrf.mxu0
  %v910 = vadd.f32 0.0, %v909
  %v911 = vpop.f32.mrf.mxu0
  %912 = vdwg.mxu0
  %v913 = vpack.c.bf16 %v910, %v910
  %v914 = vmul.f32 %v832, %v897
  %v916 = vsel %vm251, %v913, 0
  %v918 = vsel %vm255, %v833, 0
  %920 = vmatpush.bf16.msra.mxu0 0
  %921 = vmatpush.bf16.msra.mxu0 0
  %922 = vmatpush.bf16.msra.mxu0 0
  %923 = vmatpush.bf16.msra.mxu0 0
  %924 = vmatpush.bf16.msra.mxu0 0
  %925 = vmatpush.bf16.msra.mxu0 0
  %926 = vmatpush.bf16.msra.mxu0 0
  %927 = vmatpush.bf16.msra.mxu0 %v918
  %928 = vmatmul.bf16.gmra.mxu0 %v916
  %v929 = vpop.f32.mrf.mxu0
  %v930 = vadd.f32 1e-06, %v929
  %v931 = vpop.f32.mrf.mxu0
  %932 = vdwg.mxu0
  %v933 = vrcp.pop %v930
  %v934 = vmul.f32 %v914, %v933
  %v935 = vpack.c.bf16 %v934, %v934
  %v937 = vsel %vm201, %v935, 0
  %939 = vmatpush.bf16.msra.mxu0 0
  %940 = vmatpush.bf16.msra.mxu0 0
  %941 = vmatpush.bf16.msra.mxu0 0
  %942 = vmatpush.bf16.msra.mxu0 0
  %943 = vmatpush.bf16.msra.mxu0 0
  %944 = vmatpush.bf16.msra.mxu0 0
  %945 = vmatpush.bf16.msra.mxu0 %v198
  %946 = vmatpush.bf16.msra.mxu0 %v197
  %947 = vmatmul.bf16.gmra.mxu0 %v937
  %v948 = vpop.f32.mrf.mxu0
  %v949 = vadd.f32 0.0, %v948
  %v950 = vpop.f32.mrf.mxu0
  %951 = vdwg.mxu0
  %952 = vmatpush.bf16.xpose.msra.mxu0 0
  %953 = vmatpush.bf16.xpose.msra.mxu0 0
  %954 = vmatpush.bf16.xpose.msra.mxu0 0
  %955 = vmatpush.bf16.xpose.msra.mxu0 0
  %956 = vmatpush.bf16.xpose.msra.mxu0 0
  %957 = vmatpush.bf16.xpose.msra.mxu0 0
  %958 = vmatpush.bf16.xpose.msra.mxu0 0
  %959 = vmatpush.bf16.xpose.msra.mxu0 %v937
  %960 = vmatmul.bf16.gmra.mxu0 %v937
  %v961 = vpop.f32.mrf.mxu0
  %v962 = vadd.f32 0.0, %v961
  %v963 = vpop.f32.mrf.mxu0
  %964 = vdwg.mxu0
  %v965 = vpack.c.bf16 %v962, %v962
  %v966 = vmul.f32 %v885, %v949
  %v968 = vsel %vm251, %v965, 0
  %v971 = vsel %vm255, %v886, 0
  %973 = vmatpush.bf16.msra.mxu0 0
  %974 = vmatpush.bf16.msra.mxu0 0
  %975 = vmatpush.bf16.msra.mxu0 0
  %976 = vmatpush.bf16.msra.mxu0 0
  %977 = vmatpush.bf16.msra.mxu0 0
  %978 = vmatpush.bf16.msra.mxu0 0
  %979 = vmatpush.bf16.msra.mxu0 0
  %980 = vmatpush.bf16.msra.mxu0 %v971
  %981 = vmatmul.bf16.gmra.mxu0 %v968
  %v982 = vpop.f32.mrf.mxu0
  %v983 = vadd.f32 1e-06, %v982
  %v984 = vpop.f32.mrf.mxu0
  %985 = vdwg.mxu0
  %v986 = vrcp.pop %v983
  %v987 = vmul.f32 %v966, %v986
  %v988 = vpack.c.bf16 %v987, %v987
  %989 = vxpose.xlu0.c.b16.start [1/8] %v935, 128
  %990 = vxpose.xlu0.c.b16.cont [2/8] 0, 128
  %991 = vxpose.xlu0.c.b16.cont [3/8] 0, 128
  %992 = vxpose.xlu0.c.b16.cont [4/8] 0, 128
  %993 = vxpose.xlu0.c.b16.cont [5/8] 0, 128
  %994 = vxpose.xlu0.c.b16.cont [6/8] 0, 128
  %995 = vxpose.xlu0.c.b16.cont [7/8] 0, 128
  %996 = vxpose.xlu0.c.b16.end [8/8] 0, 128
  %v997 = vpop.trf.xlu0
  %v998 = vpop.trf.xlu0
  %v999 = vpop.trf.xlu0
  %v1000 = vpop.trf.xlu0
  %v1001 = vpop.trf.xlu0
  %v1002 = vpop.trf.xlu0
  %v1003 = vpop.trf.xlu0
  %v1004 = vpop.trf.xlu0
  %v1006 = vsel %vm251, %v997, 0
  %v1009 = vsel %vm251, %v998, 0
  %v1012 = vsel %vm255, %v988, 0
  %1014 = vmatpush.bf16.msra.mxu0 0
  %1015 = vmatpush.bf16.msra.mxu0 0
  %1016 = vmatpush.bf16.msra.mxu0 0
  %1017 = vmatpush.bf16.msra.mxu0 0
  %1018 = vmatpush.bf16.msra.mxu0 0
  %1019 = vmatpush.bf16.msra.mxu0 0
  %1020 = vmatpush.bf16.msra.mxu0 0
  %1021 = vmatpush.bf16.msra.mxu0 %v1012
  %1022 = vmatmul.bf16.gmra.mxu0 %v1006
  %v1023 = vpop.f32.mrf.mxu0
  %v1024 = vadd.f32 0.0, %v1023
  %v1025 = vpop.f32.mrf.mxu0
  %v1026 = vadd.f32 0.0, %v1025
  %1027 = vmatmul.bf16.gmra.mxu0 %v1009
  %v1028 = vpop.f32.mrf.mxu0
  %v1029 = vadd.f32 0.0, %v1028
  %v1030 = vpop.f32.mrf.mxu0
  %v1031 = vadd.f32 0.0, %v1030
  %1032 = vdwg.mxu0
  %v1033 = vld [vmem:[%s0] sm:$0xff]
  %v1034 = vld [vmem:[%s0 + $0x20] sm:$0xff]
  %v1035 = vld [vmem:[%s0 + $0x40] sm:$0xff]
  %v1036 = vld [vmem:[%s0 + $0x60] sm:$0xff]
  %v1037 = vadd.f32 %v1033, %v1024
  %v1038 = vadd.f32 %v1034, %v1026
  %v1039 = vadd.f32 %v1035, %v1029
  %v1040 = vadd.f32 %v1036, %v1031
  %v1041 = vmax.f32 %v1037, 0.0
  %v1042 = vmax.f32 %v1038, 0.0
  %v1043 = vmax.f32 %v1039, 0.0
  %v1044 = vmax.f32 %v1040, 0.0
  %1045 = vst [vmem:[%s3] sm:$0xff] %v1041
  %1046 = vst [vmem:[%s3 + $0x20] sm:$0xff] %v1042
  %1047 = vst [vmem:[%s3 + $0x40] sm:$0xff] %v1043
  %1048 = vst [vmem:[%s3 + $0x60] sm:$0xff] %v1044
  %v1049 = vpack.c.bf16 %v186, %v182
  %v1050 = vpack.c.bf16 %v194, %v190
  %s1051 = scalar_lea.vmem %s2, 8
  %v1052 = vld [vmem:[%s1051] sm:$0xff]
  %v1053 = vpack.c.bf16 %v1052, %v1052
  %v1055 = vsel %vm201, %v1053, 0
  %1057 = vmatpush.bf16.msra.mxu0 0
  %1058 = vmatpush.bf16.msra.mxu0 0
  %1059 = vmatpush.bf16.msra.mxu0 0
  %1060 = vmatpush.bf16.msra.mxu0 0
  %1061 = vmatpush.bf16.msra.mxu0 0
  %1062 = vmatpush.bf16.msra.mxu0 0
  %1063 = vmatpush.bf16.msra.mxu0 %v1050
  %1064 = vmatpush.bf16.msra.mxu0 %v1049
  %1065 = vmatmul.bf16.gmra.mxu0 %v1055
  %v1066 = vpop.f32.mrf.mxu0
  %v1067 = vadd.f32 0.0, %v1066
  %v1068 = vpop.f32.mrf.mxu0
  %1069 = vdwg.mxu0
  %v1070 = vrot.slane %v1067, 4
  %v1071 = vmax.f32 %v1067, %v1070
  %v1072 = vrot.slane %v1071, 2
  %v1073 = vmax.f32 %v1071, %v1072
  %v1074 = vrot.slane %v1073, 1
  %v1075 = vmax.f32 %v1073, %v1074
  %v1076 = vsub.f32 %v1067, %v1075
  %v1077 = vmul.f32 %v1076, 1.442695
  %v1078 = vpow.pop %v1077
  %v1079 = vrot.slane %v1078, 4
  %v1080 = vadd.f32 %v1078, %v1079
  %v1081 = vrot.slane %v1080, 2
  %v1082 = vadd.f32 %v1080, %v1081
  %v1083 = vrot.slane %v1082, 1
  %v1084 = vadd.f32 %v1082, %v1083
  %v1085 = vrcp.pop %v1084
  %v1086 = vmul.f32 %v1078, %v1085
  %1087 = vmatpush.bf16.xpose.msra.mxu0 0
  %1088 = vmatpush.bf16.xpose.msra.mxu0 0
  %1089 = vmatpush.bf16.xpose.msra.mxu0 0
  %1090 = vmatpush.bf16.xpose.msra.mxu0 0
  %1091 = vmatpush.bf16.xpose.msra.mxu0 0
  %1092 = vmatpush.bf16.xpose.msra.mxu0 0
  %1093 = vmatpush.bf16.xpose.msra.mxu0 0
  %1094 = vmatpush.bf16.xpose.msra.mxu0 %v1055
  %1095 = vmatmul.bf16.gmra.mxu0 %v1055
  %v1096 = vpop.f32.mrf.mxu0
  %v1097 = vadd.f32 0.0, %v1096
  %v1098 = vpop.f32.mrf.mxu0
  %1099 = vdwg.mxu0
  %v1100 = vpack.c.bf16 %v1097, %v1097
  %v1101 = vpack.c.bf16 %v1086, %v1086
  %v1102 = vmul.f32 %v1086, %v1067
  %v1104 = vsel %vm251, %v1100, 0
  %v1107 = vsel %vm255, %v1101, 0
  %1109 = vmatpush.bf16.msra.mxu0 0
  %1110 = vmatpush.bf16.msra.mxu0 0
  %1111 = vmatpush.bf16.msra.mxu0 0
  %1112 = vmatpush.bf16.msra.mxu0 0
  %1113 = vmatpush.bf16.msra.mxu0 0
  %1114 = vmatpush.bf16.msra.mxu0 0
  %1115 = vmatpush.bf16.msra.mxu0 0
  %1116 = vmatpush.bf16.msra.mxu0 %v1107
  %1117 = vmatmul.bf16.gmra.mxu0 %v1104
  %v1118 = vpop.f32.mrf.mxu0
  %v1119 = vadd.f32 1e-06, %v1118
  %v1120 = vpop.f32.mrf.mxu0
  %1121 = vdwg.mxu0
  %v1122 = vrcp.pop %v1119
  %v1123 = vmul.f32 %v1102, %v1122
  %v1124 = vpack.c.bf16 %v1123, %v1123
  %1125 = vmatpush.bf16.xpose.msra.mxu0 0
  %1126 = vmatpush.bf16.xpose.msra.mxu0 0
  %1127 = vmatpush.bf16.xpose.msra.mxu0 0
  %1128 = vmatpush.bf16.xpose.msra.mxu0 0
  %1129 = vmatpush.bf16.xpose.msra.mxu0 0
  %1130 = vmatpush.bf16.xpose.msra.mxu0 0
  %1131 = vmatpush.bf16.xpose.msra.mxu0 %v1050
  %1132 = vmatpush.bf16.xpose.msra.mxu0 %v1049
  %1133 = vmatmul.bf16.gmra.mxu0 %v1124
  %v1134 = vpop.f32.mrf.mxu0
  %v1135 = vadd.f32 0.0, %v1134
  %v1136 = vpop.f32.mrf.mxu0
  %1137 = vdwg.mxu0
  %1138 = vmatpush.bf16.xpose.msra.mxu0 0
  %1139 = vmatpush.bf16.xpose.msra.mxu0 0
  %1140 = vmatpush.bf16.xpose.msra.mxu0 0
  %1141 = vmatpush.bf16.xpose.msra.mxu0 0
  %1142 = vmatpush.bf16.xpose.msra.mxu0 0
  %1143 = vmatpush.bf16.xpose.msra.mxu0 0
  %1144 = vmatpush.bf16.xpose.msra.mxu0 0
  %1145 = vmatpush.bf16.xpose.msra.mxu0 %v1124
  %1146 = vmatmul.bf16.gmra.mxu0 %v1124
  %v1147 = vpop.f32.mrf.mxu0
  %v1148 = vadd.f32 0.0, %v1147
  %v1149 = vpop.f32.mrf.mxu0
  %1150 = vdwg.mxu0
  %v1151 = vpack.c.bf16 %v1148, %v1148
  %v1152 = vmul.f32 %v1052, %v1135
  %v1154 = vsel %vm251, %v1151, 0
  %v1156 = vsel %vm255, %v1053, 0
  %1158 = vmatpush.bf16.msra.mxu0 0
  %1159 = vmatpush.bf16.msra.mxu0 0
  %1160 = vmatpush.bf16.msra.mxu0 0
  %1161 = vmatpush.bf16.msra.mxu0 0
  %1162 = vmatpush.bf16.msra.mxu0 0
  %1163 = vmatpush.bf16.msra.mxu0 0
  %1164 = vmatpush.bf16.msra.mxu0 0
  %1165 = vmatpush.bf16.msra.mxu0 %v1156
  %1166 = vmatmul.bf16.gmra.mxu0 %v1154
  %v1167 = vpop.f32.mrf.mxu0
  %v1168 = vadd.f32 1e-06, %v1167
  %v1169 = vpop.f32.mrf.mxu0
  %1170 = vdwg.mxu0
  %v1171 = vrcp.pop %v1168
  %v1172 = vmul.f32 %v1152, %v1171
  %v1173 = vpack.c.bf16 %v1172, %v1172
  %v1175 = vsel %vm201, %v1173, 0
  %1177 = vmatpush.bf16.msra.mxu0 0
  %1178 = vmatpush.bf16.msra.mxu0 0
  %1179 = vmatpush.bf16.msra.mxu0 0
  %1180 = vmatpush.bf16.msra.mxu0 0
  %1181 = vmatpush.bf16.msra.mxu0 0
  %1182 = vmatpush.bf16.msra.mxu0 0
  %1183 = vmatpush.bf16.msra.mxu0 %v1050
  %1184 = vmatpush.bf16.msra.mxu0 %v1049
  %1185 = vmatmul.bf16.gmra.mxu0 %v1175
  %v1186 = vpop.f32.mrf.mxu0
  %v1187 = vadd.f32 0.0, %v1186
  %v1188 = vpop.f32.mrf.mxu0
  %1189 = vdwg.mxu0
  %1190 = vmatpush.bf16.xpose.msra.mxu0 0
  %1191 = vmatpush.bf16.xpose.msra.mxu0 0
  %1192 = vmatpush.bf16.xpose.msra.mxu0 0
  %1193 = vmatpush.bf16.xpose.msra.mxu0 0
  %1194 = vmatpush.bf16.xpose.msra.mxu0 0
  %1195 = vmatpush.bf16.xpose.msra.mxu0 0
  %1196 = vmatpush.bf16.xpose.msra.mxu0 0
  %1197 = vmatpush.bf16.xpose.msra.mxu0 %v1175
  %1198 = vmatmul.bf16.gmra.mxu0 %v1175
  %v1199 = vpop.f32.mrf.mxu0
  %v1200 = vadd.f32 0.0, %v1199
  %v1201 = vpop.f32.mrf.mxu0
  %1202 = vdwg.mxu0
  %v1203 = vpack.c.bf16 %v1200, %v1200
  %v1204 = vmul.f32 %v1123, %v1187
  %v1206 = vsel %vm251, %v1203, 0
  %v1209 = vsel %vm255, %v1124, 0
  %1211 = vmatpush.bf16.msra.mxu0 0
  %1212 = vmatpush.bf16.msra.mxu0 0
  %1213 = vmatpush.bf16.msra.mxu0 0
  %1214 = vmatpush.bf16.msra.mxu0 0
  %1215 = vmatpush.bf16.msra.mxu0 0
  %1216 = vmatpush.bf16.msra.mxu0 0
  %1217 = vmatpush.bf16.msra.mxu0 0
  %1218 = vmatpush.bf16.msra.mxu0 %v1209
  %1219 = vmatmul.bf16.gmra.mxu0 %v1206
  %v1220 = vpop.f32.mrf.mxu0
  %v1221 = vadd.f32 1e-06, %v1220
  %v1222 = vpop.f32.mrf.mxu0
  %1223 = vdwg.mxu0
  %v1224 = vrcp.pop %v1221
  %v1225 = vmul.f32 %v1204, %v1224
  %v1226 = vpack.c.bf16 %v1225, %v1225
  %1227 = vmatpush.bf16.xpose.msra.mxu0 0
  %1228 = vmatpush.bf16.xpose.msra.mxu0 0
  %1229 = vmatpush.bf16.xpose.msra.mxu0 0
  %1230 = vmatpush.bf16.xpose.msra.mxu0 0
  %1231 = vmatpush.bf16.xpose.msra.mxu0 0
  %1232 = vmatpush.bf16.xpose.msra.mxu0 0
  %1233 = vmatpush.bf16.xpose.msra.mxu0 %v1050
  %1234 = vmatpush.bf16.xpose.msra.mxu0 %v1049
  %1235 = vmatmul.bf16.gmra.mxu0 %v1226
  %v1236 = vpop.f32.mrf.mxu0
  %v1237 = vadd.f32 0.0, %v1236
  %v1238 = vpop.f32.mrf.mxu0
  %1239 = vdwg.mxu0
  %1240 = vmatpush.bf16.xpose.msra.mxu0 0
  %1241 = vmatpush.bf16.xpose.msra.mxu0 0
  %1242 = vmatpush.bf16.xpose.msra.mxu0 0
  %1243 = vmatpush.bf16.xpose.msra.mxu0 0
  %1244 = vmatpush.bf16.xpose.msra.mxu0 0
  %1245 = vmatpush.bf16.xpose.msra.mxu0 0
  %1246 = vmatpush.bf16.xpose.msra.mxu0 0
  %1247 = vmatpush.bf16.xpose.msra.mxu0 %v1226
  %1248 = vmatmul.bf16.gmra.mxu0 %v1226
  %v1249 = vpop.f32.mrf.mxu0
  %v1250 = vadd.f32 0.0, %v1249
  %v1251 = vpop.f32.mrf.mxu0
  %1252 = vdwg.mxu0
  %v1253 = vpack.c.bf16 %v1250, %v1250
  %v1254 = vmul.f32 %v1172, %v1237
  %v1256 = vsel %vm251, %v1253, 0
  %v1258 = vsel %vm255, %v1173, 0
  %1260 = vmatpush.bf16.msra.mxu0 0
  %1261 = vmatpush.bf16.msra.mxu0 0
  %1262 = vmatpush.bf16.msra.mxu0 0
  %1263 = vmatpush.bf16.msra.mxu0 0
  %1264 = vmatpush.bf16.msra.mxu0 0
  %1265 = vmatpush.bf16.msra.mxu0 0
  %1266 = vmatpush.bf16.msra.mxu0 0
  %1267 = vmatpush.bf16.msra.mxu0 %v1258
  %1268 = vmatmul.bf16.gmra.mxu0 %v1256
  %v1269 = vpop.f32.mrf.mxu0
  %v1270 = vadd.f32 1e-06, %v1269
  %v1271 = vpop.f32.mrf.mxu0
  %1272 = vdwg.mxu0
  %v1273 = vrcp.pop %v1270
  %v1274 = vmul.f32 %v1254, %v1273
  %v1275 = vpack.c.bf16 %v1274, %v1274
  %v1277 = vsel %vm201, %v1275, 0
  %1279 = vmatpush.bf16.msra.mxu0 0
  %1280 = vmatpush.bf16.msra.mxu0 0
  %1281 = vmatpush.bf16.msra.mxu0 0
  %1282 = vmatpush.bf16.msra.mxu0 0
  %1283 = vmatpush.bf16.msra.mxu0 0
  %1284 = vmatpush.bf16.msra.mxu0 0
  %1285 = vmatpush.bf16.msra.mxu0 %v1050
  %1286 = vmatpush.bf16.msra.mxu0 %v1049
  %1287 = vmatmul.bf16.gmra.mxu0 %v1277
  %v1288 = vpop.f32.mrf.mxu0
  %v1289 = vadd.f32 0.0, %v1288
  %v1290 = vpop.f32.mrf.mxu0
  %1291 = vdwg.mxu0
  %1292 = vmatpush.bf16.xpose.msra.mxu0 0
  %1293 = vmatpush.bf16.xpose.msra.mxu0 0
  %1294 = vmatpush.bf16.xpose.msra.mxu0 0
  %1295 = vmatpush.bf16.xpose.msra.mxu0 0
  %1296 = vmatpush.bf16.xpose.msra.mxu0 0
  %1297 = vmatpush.bf16.xpose.msra.mxu0 0
  %1298 = vmatpush.bf16.xpose.msra.mxu0 0
  %1299 = vmatpush.bf16.xpose.msra.mxu0 %v1277
  %1300 = vmatmul.bf16.gmra.mxu0 %v1277
  %v1301 = vpop.f32.mrf.mxu0
  %v1302 = vadd.f32 0.0, %v1301
  %v1303 = vpop.f32.mrf.mxu0
  %1304 = vdwg.mxu0
  %v1305 = vpack.c.bf16 %v1302, %v1302
  %v1306 = vmul.f32 %v1225, %v1289
  %v1308 = vsel %vm251, %v1305, 0
  %v1311 = vsel %vm255, %v1226, 0
  %1313 = vmatpush.bf16.msra.mxu0 0
  %1314 = vmatpush.bf16.msra.mxu0 0
  %1315 = vmatpush.bf16.msra.mxu0 0
  %1316 = vmatpush.bf16.msra.mxu0 0
  %1317 = vmatpush.bf16.msra.mxu0 0
  %1318 = vmatpush.bf16.msra.mxu0 0
  %1319 = vmatpush.bf16.msra.mxu0 0
  %1320 = vmatpush.bf16.msra.mxu0 %v1311
  %1321 = vmatmul.bf16.gmra.mxu0 %v1308
  %v1322 = vpop.f32.mrf.mxu0
  %v1323 = vadd.f32 1e-06, %v1322
  %v1324 = vpop.f32.mrf.mxu0
  %1325 = vdwg.mxu0
  %v1326 = vrcp.pop %v1323
  %v1327 = vmul.f32 %v1306, %v1326
  %v1328 = vpack.c.bf16 %v1327, %v1327
  %1329 = vmatpush.bf16.xpose.msra.mxu0 0
  %1330 = vmatpush.bf16.xpose.msra.mxu0 0
  %1331 = vmatpush.bf16.xpose.msra.mxu0 0
  %1332 = vmatpush.bf16.xpose.msra.mxu0 0
  %1333 = vmatpush.bf16.xpose.msra.mxu0 0
  %1334 = vmatpush.bf16.xpose.msra.mxu0 0
  %1335 = vmatpush.bf16.xpose.msra.mxu0 %v1050
  %1336 = vmatpush.bf16.xpose.msra.mxu0 %v1049
  %1337 = vmatmul.bf16.gmra.mxu0 %v1328
  %v1338 = vpop.f32.mrf.mxu0
  %v1339 = vadd.f32 0.0, %v1338
  %v1340 = vpop.f32.mrf.mxu0
  %1341 = vdwg.mxu0
  %1342 = vmatpush.bf16.xpose.msra.mxu0 0
  %1343 = vmatpush.bf16.xpose.msra.mxu0 0
  %1344 = vmatpush.bf16.xpose.msra.mxu0 0
  %1345 = vmatpush.bf16.xpose.msra.mxu0 0
  %1346 = vmatpush.bf16.xpose.msra.mxu0 0
  %1347 = vmatpush.bf16.xpose.msra.mxu0 0
  %1348 = vmatpush.bf16.xpose.msra.mxu0 0
  %1349 = vmatpush.bf16.xpose.msra.mxu0 %v1328
  %1350 = vmatmul.bf16.gmra.mxu0 %v1328
  %v1351 = vpop.f32.mrf.mxu0
  %v1352 = vadd.f32 0.0, %v1351
  %v1353 = vpop.f32.mrf.mxu0
  %1354 = vdwg.mxu0
  %v1355 = vpack.c.bf16 %v1352, %v1352
  %v1356 = vmul.f32 %v1274, %v1339
  %v1358 = vsel %vm251, %v1355, 0
  %v1360 = vsel %vm255, %v1275, 0
  %1362 = vmatpush.bf16.msra.mxu0 0
  %1363 = vmatpush.bf16.msra.mxu0 0
  %1364 = vmatpush.bf16.msra.mxu0 0
  %1365 = vmatpush.bf16.msra.mxu0 0
  %1366 = vmatpush.bf16.msra.mxu0 0
  %1367 = vmatpush.bf16.msra.mxu0 0
  %1368 = vmatpush.bf16.msra.mxu0 0
  %1369 = vmatpush.bf16.msra.mxu0 %v1360
  %1370 = vmatmul.bf16.gmra.mxu0 %v1358
  %v1371 = vpop.f32.mrf.mxu0
  %v1372 = vadd.f32 1e-06, %v1371
  %v1373 = vpop.f32.mrf.mxu0
  %1374 = vdwg.mxu0
  %v1375 = vrcp.pop %v1372
  %v1376 = vmul.f32 %v1356, %v1375
  %v1377 = vpack.c.bf16 %v1376, %v1376
  %v1379 = vsel %vm201, %v1377, 0
  %1381 = vmatpush.bf16.msra.mxu0 0
  %1382 = vmatpush.bf16.msra.mxu0 0
  %1383 = vmatpush.bf16.msra.mxu0 0
  %1384 = vmatpush.bf16.msra.mxu0 0
  %1385 = vmatpush.bf16.msra.mxu0 0
  %1386 = vmatpush.bf16.msra.mxu0 0
  %1387 = vmatpush.bf16.msra.mxu0 %v1050
  %1388 = vmatpush.bf16.msra.mxu0 %v1049
  %1389 = vmatmul.bf16.gmra.mxu0 %v1379
  %v1390 = vpop.f32.mrf.mxu0
  %v1391 = vadd.f32 0.0, %v1390
  %v1392 = vpop.f32.mrf.mxu0
  %1393 = vdwg.mxu0
  %1394 = vmatpush.bf16.xpose.msra.mxu0 0
  %1395 = vmatpush.bf16.xpose.msra.mxu0 0
  %1396 = vmatpush.bf16.xpose.msra.mxu0 0
  %1397 = vmatpush.bf16.xpose.msra.mxu0 0
  %1398 = vmatpush.bf16.xpose.msra.mxu0 0
  %1399 = vmatpush.bf16.xpose.msra.mxu0 0
  %1400 = vmatpush.bf16.xpose.msra.mxu0 0
  %1401 = vmatpush.bf16.xpose.msra.mxu0 %v1379
  %1402 = vmatmul.bf16.gmra.mxu0 %v1379
  %v1403 = vpop.f32.mrf.mxu0
  %v1404 = vadd.f32 0.0, %v1403
  %v1405 = vpop.f32.mrf.mxu0
  %1406 = vdwg.mxu0
  %v1407 = vpack.c.bf16 %v1404, %v1404
  %v1408 = vmul.f32 %v1327, %v1391
  %v1410 = vsel %vm251, %v1407, 0
  %v1413 = vsel %vm255, %v1328, 0
  %1415 = vmatpush.bf16.msra.mxu0 0
  %1416 = vmatpush.bf16.msra.mxu0 0
  %1417 = vmatpush.bf16.msra.mxu0 0
  %1418 = vmatpush.bf16.msra.mxu0 0
  %1419 = vmatpush.bf16.msra.mxu0 0
  %1420 = vmatpush.bf16.msra.mxu0 0
  %1421 = vmatpush.bf16.msra.mxu0 0
  %1422 = vmatpush.bf16.msra.mxu0 %v1413
  %1423 = vmatmul.bf16.gmra.mxu0 %v1410
  %v1424 = vpop.f32.mrf.mxu0
  %v1425 = vadd.f32 1e-06, %v1424
  %v1426 = vpop.f32.mrf.mxu0
  %1427 = vdwg.mxu0
  %v1428 = vrcp.pop %v1425
  %v1429 = vmul.f32 %v1408, %v1428
  %v1430 = vpack.c.bf16 %v1429, %v1429
  %1431 = vmatpush.bf16.xpose.msra.mxu0 0
  %1432 = vmatpush.bf16.xpose.msra.mxu0 0
  %1433 = vmatpush.bf16.xpose.msra.mxu0 0
  %1434 = vmatpush.bf16.xpose.msra.mxu0 0
  %1435 = vmatpush.bf16.xpose.msra.mxu0 0
  %1436 = vmatpush.bf16.xpose.msra.mxu0 0
  %1437 = vmatpush.bf16.xpose.msra.mxu0 %v1050
  %1438 = vmatpush.bf16.xpose.msra.mxu0 %v1049
  %1439 = vmatmul.bf16.gmra.mxu0 %v1430
  %v1440 = vpop.f32.mrf.mxu0
  %v1441 = vadd.f32 0.0, %v1440
  %v1442 = vpop.f32.mrf.mxu0
  %1443 = vdwg.mxu0
  %1444 = vmatpush.bf16.xpose.msra.mxu0 0
  %1445 = vmatpush.bf16.xpose.msra.mxu0 0
  %1446 = vmatpush.bf16.xpose.msra.mxu0 0
  %1447 = vmatpush.bf16.xpose.msra.mxu0 0
  %1448 = vmatpush.bf16.xpose.msra.mxu0 0
  %1449 = vmatpush.bf16.xpose.msra.mxu0 0
  %1450 = vmatpush.bf16.xpose.msra.mxu0 0
  %1451 = vmatpush.bf16.xpose.msra.mxu0 %v1430
  %1452 = vmatmul.bf16.gmra.mxu0 %v1430
  %v1453 = vpop.f32.mrf.mxu0
  %v1454 = vadd.f32 0.0, %v1453
  %v1455 = vpop.f32.mrf.mxu0
  %1456 = vdwg.mxu0
  %v1457 = vpack.c.bf16 %v1454, %v1454
  %v1458 = vmul.f32 %v1376, %v1441
  %v1460 = vsel %vm251, %v1457, 0
  %v1462 = vsel %vm255, %v1377, 0
  %1464 = vmatpush.bf16.msra.mxu0 0
  %1465 = vmatpush.bf16.msra.mxu0 0
  %1466 = vmatpush.bf16.msra.mxu0 0
  %1467 = vmatpush.bf16.msra.mxu0 0
  %1468 = vmatpush.bf16.msra.mxu0 0
  %1469 = vmatpush.bf16.msra.mxu0 0
  %1470 = vmatpush.bf16.msra.mxu0 0
  %1471 = vmatpush.bf16.msra.mxu0 %v1462
  %1472 = vmatmul.bf16.gmra.mxu0 %v1460
  %v1473 = vpop.f32.mrf.mxu0
  %v1474 = vadd.f32 1e-06, %v1473
  %v1475 = vpop.f32.mrf.mxu0
  %1476 = vdwg.mxu0
  %v1477 = vrcp.pop %v1474
  %v1478 = vmul.f32 %v1458, %v1477
  %v1479 = vpack.c.bf16 %v1478, %v1478
  %v1481 = vsel %vm201, %v1479, 0
  %1483 = vmatpush.bf16.msra.mxu0 0
  %1484 = vmatpush.bf16.msra.mxu0 0
  %1485 = vmatpush.bf16.msra.mxu0 0
  %1486 = vmatpush.bf16.msra.mxu0 0
  %1487 = vmatpush.bf16.msra.mxu0 0
  %1488 = vmatpush.bf16.msra.mxu0 0
  %1489 = vmatpush.bf16.msra.mxu0 %v1050
  %1490 = vmatpush.bf16.msra.mxu0 %v1049
  %1491 = vmatmul.bf16.gmra.mxu0 %v1481
  %v1492 = vpop.f32.mrf.mxu0
  %v1493 = vadd.f32 0.0, %v1492
  %v1494 = vpop.f32.mrf.mxu0
  %1495 = vdwg.mxu0
  %1496 = vmatpush.bf16.xpose.msra.mxu0 0
  %1497 = vmatpush.bf16.xpose.msra.mxu0 0
  %1498 = vmatpush.bf16.xpose.msra.mxu0 0
  %1499 = vmatpush.bf16.xpose.msra.mxu0 0
  %1500 = vmatpush.bf16.xpose.msra.mxu0 0
  %1501 = vmatpush.bf16.xpose.msra.mxu0 0
  %1502 = vmatpush.bf16.xpose.msra.mxu0 0
  %1503 = vmatpush.bf16.xpose.msra.mxu0 %v1481
  %1504 = vmatmul.bf16.gmra.mxu0 %v1481
  %v1505 = vpop.f32.mrf.mxu0
  %v1506 = vadd.f32 0.0, %v1505
  %v1507 = vpop.f32.mrf.mxu0
  %1508 = vdwg.mxu0
  %v1509 = vpack.c.bf16 %v1506, %v1506
  %v1510 = vmul.f32 %v1429, %v1493
  %v1512 = vsel %vm251, %v1509, 0
  %v1515 = vsel %vm255, %v1430, 0
  %1517 = vmatpush.bf16.msra.mxu0 0
  %1518 = vmatpush.bf16.msra.mxu0 0
  %1519 = vmatpush.bf16.msra.mxu0 0
  %1520 = vmatpush.bf16.msra.mxu0 0
  %1521 = vmatpush.bf16.msra.mxu0 0
  %1522 = vmatpush.bf16.msra.mxu0 0
  %1523 = vmatpush.bf16.msra.mxu0 0
  %1524 = vmatpush.bf16.msra.mxu0 %v1515
  %1525 = vmatmul.bf16.gmra.mxu0 %v1512
  %v1526 = vpop.f32.mrf.mxu0
  %v1527 = vadd.f32 1e-06, %v1526
  %v1528 = vpop.f32.mrf.mxu0
  %1529 = vdwg.mxu0
  %v1530 = vrcp.pop %v1527
  %v1531 = vmul.f32 %v1510, %v1530
  %v1532 = vpack.c.bf16 %v1531, %v1531
  %1533 = vmatpush.bf16.xpose.msra.mxu0 0
  %1534 = vmatpush.bf16.xpose.msra.mxu0 0
  %1535 = vmatpush.bf16.xpose.msra.mxu0 0
  %1536 = vmatpush.bf16.xpose.msra.mxu0 0
  %1537 = vmatpush.bf16.xpose.msra.mxu0 0
  %1538 = vmatpush.bf16.xpose.msra.mxu0 0
  %1539 = vmatpush.bf16.xpose.msra.mxu0 %v1050
  %1540 = vmatpush.bf16.xpose.msra.mxu0 %v1049
  %1541 = vmatmul.bf16.gmra.mxu0 %v1532
  %v1542 = vpop.f32.mrf.mxu0
  %v1543 = vadd.f32 0.0, %v1542
  %v1544 = vpop.f32.mrf.mxu0
  %1545 = vdwg.mxu0
  %1546 = vmatpush.bf16.xpose.msra.mxu0 0
  %1547 = vmatpush.bf16.xpose.msra.mxu0 0
  %1548 = vmatpush.bf16.xpose.msra.mxu0 0
  %1549 = vmatpush.bf16.xpose.msra.mxu0 0
  %1550 = vmatpush.bf16.xpose.msra.mxu0 0
  %1551 = vmatpush.bf16.xpose.msra.mxu0 0
  %1552 = vmatpush.bf16.xpose.msra.mxu0 0
  %1553 = vmatpush.bf16.xpose.msra.mxu0 %v1532
  %1554 = vmatmul.bf16.gmra.mxu0 %v1532
  %v1555 = vpop.f32.mrf.mxu0
  %v1556 = vadd.f32 0.0, %v1555
  %v1557 = vpop.f32.mrf.mxu0
  %1558 = vdwg.mxu0
  %v1559 = vpack.c.bf16 %v1556, %v1556
  %v1560 = vmul.f32 %v1478, %v1543
  %v1562 = vsel %vm251, %v1559, 0
  %v1564 = vsel %vm255, %v1479, 0
  %1566 = vmatpush.bf16.msra.mxu0 0
  %1567 = vmatpush.bf16.msra.mxu0 0
  %1568 = vmatpush.bf16.msra.mxu0 0
  %1569 = vmatpush.bf16.msra.mxu0 0
  %1570 = vmatpush.bf16.msra.mxu0 0
  %1571 = vmatpush.bf16.msra.mxu0 0
  %1572 = vmatpush.bf16.msra.mxu0 0
  %1573 = vmatpush.bf16.msra.mxu0 %v1564
  %1574 = vmatmul.bf16.gmra.mxu0 %v1562
  %v1575 = vpop.f32.mrf.mxu0
  %v1576 = vadd.f32 1e-06, %v1575
  %v1577 = vpop.f32.mrf.mxu0
  %1578 = vdwg.mxu0
  %v1579 = vrcp.pop %v1576
  %v1580 = vmul.f32 %v1560, %v1579
  %v1581 = vpack.c.bf16 %v1580, %v1580
  %v1583 = vsel %vm201, %v1581, 0
  %1585 = vmatpush.bf16.msra.mxu0 0
  %1586 = vmatpush.bf16.msra.mxu0 0
  %1587 = vmatpush.bf16.msra.mxu0 0
  %1588 = vmatpush.bf16.msra.mxu0 0
  %1589 = vmatpush.bf16.msra.mxu0 0
  %1590 = vmatpush.bf16.msra.mxu0 0
  %1591 = vmatpush.bf16.msra.mxu0 %v1050
  %1592 = vmatpush.bf16.msra.mxu0 %v1049
  %1593 = vmatmul.bf16.gmra.mxu0 %v1583
  %v1594 = vpop.f32.mrf.mxu0
  %v1595 = vadd.f32 0.0, %v1594
  %v1596 = vpop.f32.mrf.mxu0
  %1597 = vdwg.mxu0
  %1598 = vmatpush.bf16.xpose.msra.mxu0 0
  %1599 = vmatpush.bf16.xpose.msra.mxu0 0
  %1600 = vmatpush.bf16.xpose.msra.mxu0 0
  %1601 = vmatpush.bf16.xpose.msra.mxu0 0
  %1602 = vmatpush.bf16.xpose.msra.mxu0 0
  %1603 = vmatpush.bf16.xpose.msra.mxu0 0
  %1604 = vmatpush.bf16.xpose.msra.mxu0 0
  %1605 = vmatpush.bf16.xpose.msra.mxu0 %v1583
  %1606 = vmatmul.bf16.gmra.mxu0 %v1583
  %v1607 = vpop.f32.mrf.mxu0
  %v1608 = vadd.f32 0.0, %v1607
  %v1609 = vpop.f32.mrf.mxu0
  %1610 = vdwg.mxu0
  %v1611 = vpack.c.bf16 %v1608, %v1608
  %v1612 = vmul.f32 %v1531, %v1595
  %v1614 = vsel %vm251, %v1611, 0
  %v1617 = vsel %vm255, %v1532, 0
  %1619 = vmatpush.bf16.msra.mxu0 0
  %1620 = vmatpush.bf16.msra.mxu0 0
  %1621 = vmatpush.bf16.msra.mxu0 0
  %1622 = vmatpush.bf16.msra.mxu0 0
  %1623 = vmatpush.bf16.msra.mxu0 0
  %1624 = vmatpush.bf16.msra.mxu0 0
  %1625 = vmatpush.bf16.msra.mxu0 0
  %1626 = vmatpush.bf16.msra.mxu0 %v1617
  %1627 = vmatmul.bf16.gmra.mxu0 %v1614
  %v1628 = vpop.f32.mrf.mxu0
  %v1629 = vadd.f32 1e-06, %v1628
  %v1630 = vpop.f32.mrf.mxu0
  %1631 = vdwg.mxu0
  %v1632 = vrcp.pop %v1629
  %v1633 = vmul.f32 %v1612, %v1632
  %v1634 = vpack.c.bf16 %v1633, %v1633
  %1635 = vmatpush.bf16.xpose.msra.mxu0 0
  %1636 = vmatpush.bf16.xpose.msra.mxu0 0
  %1637 = vmatpush.bf16.xpose.msra.mxu0 0
  %1638 = vmatpush.bf16.xpose.msra.mxu0 0
  %1639 = vmatpush.bf16.xpose.msra.mxu0 0
  %1640 = vmatpush.bf16.xpose.msra.mxu0 0
  %1641 = vmatpush.bf16.xpose.msra.mxu0 %v1050
  %1642 = vmatpush.bf16.xpose.msra.mxu0 %v1049
  %1643 = vmatmul.bf16.gmra.mxu0 %v1634
  %v1644 = vpop.f32.mrf.mxu0
  %v1645 = vadd.f32 0.0, %v1644
  %v1646 = vpop.f32.mrf.mxu0
  %1647 = vdwg.mxu0
  %1648 = vmatpush.bf16.xpose.msra.mxu0 0
  %1649 = vmatpush.bf16.xpose.msra.mxu0 0
  %1650 = vmatpush.bf16.xpose.msra.mxu0 0
  %1651 = vmatpush.bf16.xpose.msra.mxu0 0
  %1652 = vmatpush.bf16.xpose.msra.mxu0 0
  %1653 = vmatpush.bf16.xpose.msra.mxu0 0
  %1654 = vmatpush.bf16.xpose.msra.mxu0 0
  %1655 = vmatpush.bf16.xpose.msra.mxu0 %v1634
  %1656 = vmatmul.bf16.gmra.mxu0 %v1634
  %v1657 = vpop.f32.mrf.mxu0
  %v1658 = vadd.f32 0.0, %v1657
  %v1659 = vpop.f32.mrf.mxu0
  %1660 = vdwg.mxu0
  %v1661 = vpack.c.bf16 %v1658, %v1658
  %v1662 = vmul.f32 %v1580, %v1645
  %v1664 = vsel %vm251, %v1661, 0
  %v1666 = vsel %vm255, %v1581, 0
  %1668 = vmatpush.bf16.msra.mxu0 0
  %1669 = vmatpush.bf16.msra.mxu0 0
  %1670 = vmatpush.bf16.msra.mxu0 0
  %1671 = vmatpush.bf16.msra.mxu0 0
  %1672 = vmatpush.bf16.msra.mxu0 0
  %1673 = vmatpush.bf16.msra.mxu0 0
  %1674 = vmatpush.bf16.msra.mxu0 0
  %1675 = vmatpush.bf16.msra.mxu0 %v1666
  %1676 = vmatmul.bf16.gmra.mxu0 %v1664
  %v1677 = vpop.f32.mrf.mxu0
  %v1678 = vadd.f32 1e-06, %v1677
  %v1679 = vpop.f32.mrf.mxu0
  %1680 = vdwg.mxu0
  %v1681 = vrcp.pop %v1678
  %v1682 = vmul.f32 %v1662, %v1681
  %v1683 = vpack.c.bf16 %v1682, %v1682
  %v1685 = vsel %vm201, %v1683, 0
  %1687 = vmatpush.bf16.msra.mxu0 0
  %1688 = vmatpush.bf16.msra.mxu0 0
  %1689 = vmatpush.bf16.msra.mxu0 0
  %1690 = vmatpush.bf16.msra.mxu0 0
  %1691 = vmatpush.bf16.msra.mxu0 0
  %1692 = vmatpush.bf16.msra.mxu0 0
  %1693 = vmatpush.bf16.msra.mxu0 %v1050
  %1694 = vmatpush.bf16.msra.mxu0 %v1049
  %1695 = vmatmul.bf16.gmra.mxu0 %v1685
  %v1696 = vpop.f32.mrf.mxu0
  %v1697 = vadd.f32 0.0, %v1696
  %v1698 = vpop.f32.mrf.mxu0
  %1699 = vdwg.mxu0
  %1700 = vmatpush.bf16.xpose.msra.mxu0 0
  %1701 = vmatpush.bf16.xpose.msra.mxu0 0
  %1702 = vmatpush.bf16.xpose.msra.mxu0 0
  %1703 = vmatpush.bf16.xpose.msra.mxu0 0
  %1704 = vmatpush.bf16.xpose.msra.mxu0 0
  %1705 = vmatpush.bf16.xpose.msra.mxu0 0
  %1706 = vmatpush.bf16.xpose.msra.mxu0 0
  %1707 = vmatpush.bf16.xpose.msra.mxu0 %v1685
  %1708 = vmatmul.bf16.gmra.mxu0 %v1685
  %v1709 = vpop.f32.mrf.mxu0
  %v1710 = vadd.f32 0.0, %v1709
  %v1711 = vpop.f32.mrf.mxu0
  %1712 = vdwg.mxu0
  %v1713 = vpack.c.bf16 %v1710, %v1710
  %v1714 = vmul.f32 %v1633, %v1697
  %v1716 = vsel %vm251, %v1713, 0
  %v1719 = vsel %vm255, %v1634, 0
  %1721 = vmatpush.bf16.msra.mxu0 0
  %1722 = vmatpush.bf16.msra.mxu0 0
  %1723 = vmatpush.bf16.msra.mxu0 0
  %1724 = vmatpush.bf16.msra.mxu0 0
  %1725 = vmatpush.bf16.msra.mxu0 0
  %1726 = vmatpush.bf16.msra.mxu0 0
  %1727 = vmatpush.bf16.msra.mxu0 0
  %1728 = vmatpush.bf16.msra.mxu0 %v1719
  %1729 = vmatmul.bf16.gmra.mxu0 %v1716
  %v1730 = vpop.f32.mrf.mxu0
  %v1731 = vadd.f32 1e-06, %v1730
  %v1732 = vpop.f32.mrf.mxu0
  %1733 = vdwg.mxu0
  %v1734 = vrcp.pop %v1731
  %v1735 = vmul.f32 %v1714, %v1734
  %v1736 = vpack.c.bf16 %v1735, %v1735
  %1737 = vmatpush.bf16.xpose.msra.mxu0 0
  %1738 = vmatpush.bf16.xpose.msra.mxu0 0
  %1739 = vmatpush.bf16.xpose.msra.mxu0 0
  %1740 = vmatpush.bf16.xpose.msra.mxu0 0
  %1741 = vmatpush.bf16.xpose.msra.mxu0 0
  %1742 = vmatpush.bf16.xpose.msra.mxu0 0
  %1743 = vmatpush.bf16.xpose.msra.mxu0 %v1050
  %1744 = vmatpush.bf16.xpose.msra.mxu0 %v1049
  %1745 = vmatmul.bf16.gmra.mxu0 %v1736
  %v1746 = vpop.f32.mrf.mxu0
  %v1747 = vadd.f32 0.0, %v1746
  %v1748 = vpop.f32.mrf.mxu0
  %1749 = vdwg.mxu0
  %1750 = vmatpush.bf16.xpose.msra.mxu0 0
  %1751 = vmatpush.bf16.xpose.msra.mxu0 0
  %1752 = vmatpush.bf16.xpose.msra.mxu0 0
  %1753 = vmatpush.bf16.xpose.msra.mxu0 0
  %1754 = vmatpush.bf16.xpose.msra.mxu0 0
  %1755 = vmatpush.bf16.xpose.msra.mxu0 0
  %1756 = vmatpush.bf16.xpose.msra.mxu0 0
  %1757 = vmatpush.bf16.xpose.msra.mxu0 %v1736
  %1758 = vmatmul.bf16.gmra.mxu0 %v1736
  %v1759 = vpop.f32.mrf.mxu0
  %v1760 = vadd.f32 0.0, %v1759
  %v1761 = vpop.f32.mrf.mxu0
  %1762 = vdwg.mxu0
  %v1763 = vpack.c.bf16 %v1760, %v1760
  %v1764 = vmul.f32 %v1682, %v1747
  %v1766 = vsel %vm251, %v1763, 0
  %v1768 = vsel %vm255, %v1683, 0
  %1770 = vmatpush.bf16.msra.mxu0 0
  %1771 = vmatpush.bf16.msra.mxu0 0
  %1772 = vmatpush.bf16.msra.mxu0 0
  %1773 = vmatpush.bf16.msra.mxu0 0
  %1774 = vmatpush.bf16.msra.mxu0 0
  %1775 = vmatpush.bf16.msra.mxu0 0
  %1776 = vmatpush.bf16.msra.mxu0 0
  %1777 = vmatpush.bf16.msra.mxu0 %v1768
  %1778 = vmatmul.bf16.gmra.mxu0 %v1766
  %v1779 = vpop.f32.mrf.mxu0
  %v1780 = vadd.f32 1e-06, %v1779
  %v1781 = vpop.f32.mrf.mxu0
  %1782 = vdwg.mxu0
  %v1783 = vrcp.pop %v1780
  %v1784 = vmul.f32 %v1764, %v1783
  %v1785 = vpack.c.bf16 %v1784, %v1784
  %v1787 = vsel %vm201, %v1785, 0
  %1789 = vmatpush.bf16.msra.mxu0 0
  %1790 = vmatpush.bf16.msra.mxu0 0
  %1791 = vmatpush.bf16.msra.mxu0 0
  %1792 = vmatpush.bf16.msra.mxu0 0
  %1793 = vmatpush.bf16.msra.mxu0 0
  %1794 = vmatpush.bf16.msra.mxu0 0
  %1795 = vmatpush.bf16.msra.mxu0 %v1050
  %1796 = vmatpush.bf16.msra.mxu0 %v1049
  %1797 = vmatmul.bf16.gmra.mxu0 %v1787
  %v1798 = vpop.f32.mrf.mxu0
  %v1799 = vadd.f32 0.0, %v1798
  %v1800 = vpop.f32.mrf.mxu0
  %1801 = vdwg.mxu0
  %1802 = vmatpush.bf16.xpose.msra.mxu0 0
  %1803 = vmatpush.bf16.xpose.msra.mxu0 0
  %1804 = vmatpush.bf16.xpose.msra.mxu0 0
  %1805 = vmatpush.bf16.xpose.msra.mxu0 0
  %1806 = vmatpush.bf16.xpose.msra.mxu0 0
  %1807 = vmatpush.bf16.xpose.msra.mxu0 0
  %1808 = vmatpush.bf16.xpose.msra.mxu0 0
  %1809 = vmatpush.bf16.xpose.msra.mxu0 %v1787
  %1810 = vmatmul.bf16.gmra.mxu0 %v1787
  %v1811 = vpop.f32.mrf.mxu0
  %v1812 = vadd.f32 0.0, %v1811
  %v1813 = vpop.f32.mrf.mxu0
  %1814 = vdwg.mxu0
  %v1815 = vpack.c.bf16 %v1812, %v1812
  %v1816 = vmul.f32 %v1735, %v1799
  %v1818 = vsel %vm251, %v1815, 0
  %v1821 = vsel %vm255, %v1736, 0
  %1823 = vmatpush.bf16.msra.mxu0 0
  %1824 = vmatpush.bf16.msra.mxu0 0
  %1825 = vmatpush.bf16.msra.mxu0 0
  %1826 = vmatpush.bf16.msra.mxu0 0
  %1827 = vmatpush.bf16.msra.mxu0 0
  %1828 = vmatpush.bf16.msra.mxu0 0
  %1829 = vmatpush.bf16.msra.mxu0 0
  %1830 = vmatpush.bf16.msra.mxu0 %v1821
  %1831 = vmatmul.bf16.gmra.mxu0 %v1818
  %v1832 = vpop.f32.mrf.mxu0
  %v1833 = vadd.f32 1e-06, %v1832
  %v1834 = vpop.f32.mrf.mxu0
  %1835 = vdwg.mxu0
  %v1836 = vrcp.pop %v1833
  %v1837 = vmul.f32 %v1816, %v1836
  %v1838 = vpack.c.bf16 %v1837, %v1837
  %1839 = vxpose.xlu0.c.b16.start [1/8] %v1785, 128
  %1840 = vxpose.xlu0.c.b16.cont [2/8] 0, 128
  %1841 = vxpose.xlu0.c.b16.cont [3/8] 0, 128
  %1842 = vxpose.xlu0.c.b16.cont [4/8] 0, 128
  %1843 = vxpose.xlu0.c.b16.cont [5/8] 0, 128
  %1844 = vxpose.xlu0.c.b16.cont [6/8] 0, 128
  %1845 = vxpose.xlu0.c.b16.cont [7/8] 0, 128
  %1846 = vxpose.xlu0.c.b16.end [8/8] 0, 128
  %v1847 = vpop.trf.xlu0
  %v1848 = vpop.trf.xlu0
  %v1849 = vpop.trf.xlu0
  %v1850 = vpop.trf.xlu0
  %v1851 = vpop.trf.xlu0
  %v1852 = vpop.trf.xlu0
  %v1853 = vpop.trf.xlu0
  %v1854 = vpop.trf.xlu0
  %v1856 = vsel %vm251, %v1847, 0
  %v1859 = vsel %vm251, %v1848, 0
  %v1862 = vsel %vm255, %v1838, 0
  %1864 = vmatpush.bf16.msra.mxu0 0
  %1865 = vmatpush.bf16.msra.mxu0 0
  %1866 = vmatpush.bf16.msra.mxu0 0
  %1867 = vmatpush.bf16.msra.mxu0 0
  %1868 = vmatpush.bf16.msra.mxu0 0
  %1869 = vmatpush.bf16.msra.mxu0 0
  %1870 = vmatpush.bf16.msra.mxu0 0
  %1871 = vmatpush.bf16.msra.mxu0 %v1862
  %1872 = vmatmul.bf16.gmra.mxu0 %v1856
  %v1873 = vpop.f32.mrf.mxu0
  %v1874 = vadd.f32 0.0, %v1873
  %v1875 = vpop.f32.mrf.mxu0
  %v1876 = vadd.f32 0.0, %v1875
  %1877 = vmatmul.bf16.gmra.mxu0 %v1859
  %v1878 = vpop.f32.mrf.mxu0
  %v1879 = vadd.f32 0.0, %v1878
  %v1880 = vpop.f32.mrf.mxu0
  %v1881 = vadd.f32 0.0, %v1880
  %1882 = vdwg.mxu0
  %v1883 = vld [vmem:[%s0 + $0x8] sm:$0xff]
  %v1884 = vld [vmem:[%s0 + $0x28] sm:$0xff]
  %v1885 = vld [vmem:[%s0 + $0x48] sm:$0xff]
  %v1886 = vld [vmem:[%s0 + $0x68] sm:$0xff]
  %v1887 = vadd.f32 %v1883, %v1874
  %v1888 = vadd.f32 %v1884, %v1876
  %v1889 = vadd.f32 %v1885, %v1879
  %v1890 = vadd.f32 %v1886, %v1881
  %v1891 = vmax.f32 %v1887, 0.0
  %v1892 = vmax.f32 %v1888, 0.0
  %v1893 = vmax.f32 %v1889, 0.0
  %v1894 = vmax.f32 %v1890, 0.0
  %1895 = vst [vmem:[%s3 + $0x8] sm:$0xff] %v1891
  %1896 = vst [vmem:[%s3 + $0x28] sm:$0xff] %v1892
  %1897 = vst [vmem:[%s3 + $0x48] sm:$0xff] %v1893
  %1898 = vst [vmem:[%s3 + $0x68] sm:$0xff] %v1894
  %v1899 = vpack.c.bf16 %v187, %v183
  %v1900 = vpack.c.bf16 %v195, %v191
  %s1901 = scalar_lea.vmem %s2, 16
  %v1902 = vld [vmem:[%s1901] sm:$0xff]
  %v1903 = vpack.c.bf16 %v1902, %v1902
  %v1905 = vsel %vm201, %v1903, 0
  %1907 = vmatpush.bf16.msra.mxu0 0
  %1908 = vmatpush.bf16.msra.mxu0 0
  %1909 = vmatpush.bf16.msra.mxu0 0
  %1910 = vmatpush.bf16.msra.mxu0 0
  %1911 = vmatpush.bf16.msra.mxu0 0
  %1912 = vmatpush.bf16.msra.mxu0 0
  %1913 = vmatpush.bf16.msra.mxu0 %v1900
  %1914 = vmatpush.bf16.msra.mxu0 %v1899
  %1915 = vmatmul.bf16.gmra.mxu0 %v1905
  %v1916 = vpop.f32.mrf.mxu0
  %v1917 = vadd.f32 0.0, %v1916
  %v1918 = vpop.f32.mrf.mxu0
  %1919 = vdwg.mxu0
  %v1920 = vrot.slane %v1917, 4
  %v1921 = vmax.f32 %v1917, %v1920
  %v1922 = vrot.slane %v1921, 2
  %v1923 = vmax.f32 %v1921, %v1922
  %v1924 = vrot.slane %v1923, 1
  %v1925 = vmax.f32 %v1923, %v1924
  %v1926 = vsub.f32 %v1917, %v1925
  %v1927 = vmul.f32 %v1926, 1.442695
  %v1928 = vpow.pop %v1927
  %v1929 = vrot.slane %v1928, 4
  %v1930 = vadd.f32 %v1928, %v1929
  %v1931 = vrot.slane %v1930, 2
  %v1932 = vadd.f32 %v1930, %v1931
  %v1933 = vrot.slane %v1932, 1
  %v1934 = vadd.f32 %v1932, %v1933
  %v1935 = vrcp.pop %v1934
  %v1936 = vmul.f32 %v1928, %v1935
  %1937 = vmatpush.bf16.xpose.msra.mxu0 0
  %1938 = vmatpush.bf16.xpose.msra.mxu0 0
  %1939 = vmatpush.bf16.xpose.msra.mxu0 0
  %1940 = vmatpush.bf16.xpose.msra.mxu0 0
  %1941 = vmatpush.bf16.xpose.msra.mxu0 0
  %1942 = vmatpush.bf16.xpose.msra.mxu0 0
  %1943 = vmatpush.bf16.xpose.msra.mxu0 0
  %1944 = vmatpush.bf16.xpose.msra.mxu0 %v1905
  %1945 = vmatmul.bf16.gmra.mxu0 %v1905
  %v1946 = vpop.f32.mrf.mxu0
  %v1947 = vadd.f32 0.0, %v1946
  %v1948 = vpop.f32.mrf.mxu0
  %1949 = vdwg.mxu0
  %v1950 = vpack.c.bf16 %v1947, %v1947
  %v1951 = vpack.c.bf16 %v1936, %v1936
  %v1952 = vmul.f32 %v1936, %v1917
  %v1954 = vsel %vm251, %v1950, 0
  %v1957 = vsel %vm255, %v1951, 0
  %1959 = vmatpush.bf16.msra.mxu0 0
  %1960 = vmatpush.bf16.msra.mxu0 0
  %1961 = vmatpush.bf16.msra.mxu0 0
  %1962 = vmatpush.bf16.msra.mxu0 0
  %1963 = vmatpush.bf16.msra.mxu0 0
  %1964 = vmatpush.bf16.msra.mxu0 0
  %1965 = vmatpush.bf16.msra.mxu0 0
  %1966 = vmatpush.bf16.msra.mxu0 %v1957
  %1967 = vmatmul.bf16.gmra.mxu0 %v1954
  %v1968 = vpop.f32.mrf.mxu0
  %v1969 = vadd.f32 1e-06, %v1968
  %v1970 = vpop.f32.mrf.mxu0
  %1971 = vdwg.mxu0
  %v1972 = vrcp.pop %v1969
  %v1973 = vmul.f32 %v1952, %v1972
  %v1974 = vpack.c.bf16 %v1973, %v1973
  %1975 = vmatpush.bf16.xpose.msra.mxu0 0
  %1976 = vmatpush.bf16.xpose.msra.mxu0 0
  %1977 = vmatpush.bf16.xpose.msra.mxu0 0
  %1978 = vmatpush.bf16.xpose.msra.mxu0 0
  %1979 = vmatpush.bf16.xpose.msra.mxu0 0
  %1980 = vmatpush.bf16.xpose.msra.mxu0 0
  %1981 = vmatpush.bf16.xpose.msra.mxu0 %v1900
  %1982 = vmatpush.bf16.xpose.msra.mxu0 %v1899
  %1983 = vmatmul.bf16.gmra.mxu0 %v1974
  %v1984 = vpop.f32.mrf.mxu0
  %v1985 = vadd.f32 0.0, %v1984
  %v1986 = vpop.f32.mrf.mxu0
  %1987 = vdwg.mxu0
  %1988 = vmatpush.bf16.xpose.msra.mxu0 0
  %1989 = vmatpush.bf16.xpose.msra.mxu0 0
  %1990 = vmatpush.bf16.xpose.msra.mxu0 0
  %1991 = vmatpush.bf16.xpose.msra.mxu0 0
  %1992 = vmatpush.bf16.xpose.msra.mxu0 0
  %1993 = vmatpush.bf16.xpose.msra.mxu0 0
  %1994 = vmatpush.bf16.xpose.msra.mxu0 0
  %1995 = vmatpush.bf16.xpose.msra.mxu0 %v1974
  %1996 = vmatmul.bf16.gmra.mxu0 %v1974
  %v1997 = vpop.f32.mrf.mxu0
  %v1998 = vadd.f32 0.0, %v1997
  %v1999 = vpop.f32.mrf.mxu0
  %2000 = vdwg.mxu0
  %v2001 = vpack.c.bf16 %v1998, %v1998
  %v2002 = vmul.f32 %v1902, %v1985
  %v2004 = vsel %vm251, %v2001, 0
  %v2006 = vsel %vm255, %v1903, 0
  %2008 = vmatpush.bf16.msra.mxu0 0
  %2009 = vmatpush.bf16.msra.mxu0 0
  %2010 = vmatpush.bf16.msra.mxu0 0
  %2011 = vmatpush.bf16.msra.mxu0 0
  %2012 = vmatpush.bf16.msra.mxu0 0
  %2013 = vmatpush.bf16.msra.mxu0 0
  %2014 = vmatpush.bf16.msra.mxu0 0
  %2015 = vmatpush.bf16.msra.mxu0 %v2006
  %2016 = vmatmul.bf16.gmra.mxu0 %v2004
  %v2017 = vpop.f32.mrf.mxu0
  %v2018 = vadd.f32 1e-06, %v2017
  %v2019 = vpop.f32.mrf.mxu0
  %2020 = vdwg.mxu0
  %v2021 = vrcp.pop %v2018
  %v2022 = vmul.f32 %v2002, %v2021
  %v2023 = vpack.c.bf16 %v2022, %v2022
  %v2025 = vsel %vm201, %v2023, 0
  %2027 = vmatpush.bf16.msra.mxu0 0
  %2028 = vmatpush.bf16.msra.mxu0 0
  %2029 = vmatpush.bf16.msra.mxu0 0
  %2030 = vmatpush.bf16.msra.mxu0 0
  %2031 = vmatpush.bf16.msra.mxu0 0
  %2032 = vmatpush.bf16.msra.mxu0 0
  %2033 = vmatpush.bf16.msra.mxu0 %v1900
  %2034 = vmatpush.bf16.msra.mxu0 %v1899
  %2035 = vmatmul.bf16.gmra.mxu0 %v2025
  %v2036 = vpop.f32.mrf.mxu0
  %v2037 = vadd.f32 0.0, %v2036
  %v2038 = vpop.f32.mrf.mxu0
  %2039 = vdwg.mxu0
  %2040 = vmatpush.bf16.xpose.msra.mxu0 0
  %2041 = vmatpush.bf16.xpose.msra.mxu0 0
  %2042 = vmatpush.bf16.xpose.msra.mxu0 0
  %2043 = vmatpush.bf16.xpose.msra.mxu0 0
  %2044 = vmatpush.bf16.xpose.msra.mxu0 0
  %2045 = vmatpush.bf16.xpose.msra.mxu0 0
  %2046 = vmatpush.bf16.xpose.msra.mxu0 0
  %2047 = vmatpush.bf16.xpose.msra.mxu0 %v2025
  %2048 = vmatmul.bf16.gmra.mxu0 %v2025
  %v2049 = vpop.f32.mrf.mxu0
  %v2050 = vadd.f32 0.0, %v2049
  %v2051 = vpop.f32.mrf.mxu0
  %2052 = vdwg.mxu0
  %v2053 = vpack.c.bf16 %v2050, %v2050
  %v2054 = vmul.f32 %v1973, %v2037
  %v2056 = vsel %vm251, %v2053, 0
  %v2059 = vsel %vm255, %v1974, 0
  %2061 = vmatpush.bf16.msra.mxu0 0
  %2062 = vmatpush.bf16.msra.mxu0 0
  %2063 = vmatpush.bf16.msra.mxu0 0
  %2064 = vmatpush.bf16.msra.mxu0 0
  %2065 = vmatpush.bf16.msra.mxu0 0
  %2066 = vmatpush.bf16.msra.mxu0 0
  %2067 = vmatpush.bf16.msra.mxu0 0
  %2068 = vmatpush.bf16.msra.mxu0 %v2059
  %2069 = vmatmul.bf16.gmra.mxu0 %v2056
  %v2070 = vpop.f32.mrf.mxu0
  %v2071 = vadd.f32 1e-06, %v2070
  %v2072 = vpop.f32.mrf.mxu0
  %2073 = vdwg.mxu0
  %v2074 = vrcp.pop %v2071
  %v2075 = vmul.f32 %v2054, %v2074
  %v2076 = vpack.c.bf16 %v2075, %v2075
  %2077 = vmatpush.bf16.xpose.msra.mxu0 0
  %2078 = vmatpush.bf16.xpose.msra.mxu0 0
  %2079 = vmatpush.bf16.xpose.msra.mxu0 0
  %2080 = vmatpush.bf16.xpose.msra.mxu0 0
  %2081 = vmatpush.bf16.xpose.msra.mxu0 0
  %2082 = vmatpush.bf16.xpose.msra.mxu0 0
  %2083 = vmatpush.bf16.xpose.msra.mxu0 %v1900
  %2084 = vmatpush.bf16.xpose.msra.mxu0 %v1899
  %2085 = vmatmul.bf16.gmra.mxu0 %v2076
  %v2086 = vpop.f32.mrf.mxu0
  %v2087 = vadd.f32 0.0, %v2086
  %v2088 = vpop.f32.mrf.mxu0
  %2089 = vdwg.mxu0
  %2090 = vmatpush.bf16.xpose.msra.mxu0 0
  %2091 = vmatpush.bf16.xpose.msra.mxu0 0
  %2092 = vmatpush.bf16.xpose.msra.mxu0 0
  %2093 = vmatpush.bf16.xpose.msra.mxu0 0
  %2094 = vmatpush.bf16.xpose.msra.mxu0 0
  %2095 = vmatpush.bf16.xpose.msra.mxu0 0
  %2096 = vmatpush.bf16.xpose.msra.mxu0 0
  %2097 = vmatpush.bf16.xpose.msra.mxu0 %v2076
  %2098 = vmatmul.bf16.gmra.mxu0 %v2076
  %v2099 = vpop.f32.mrf.mxu0
  %v2100 = vadd.f32 0.0, %v2099
  %v2101 = vpop.f32.mrf.mxu0
  %2102 = vdwg.mxu0
  %v2103 = vpack.c.bf16 %v2100, %v2100
  %v2104 = vmul.f32 %v2022, %v2087
  %v2106 = vsel %vm251, %v2103, 0
  %v2108 = vsel %vm255, %v2023, 0
  %2110 = vmatpush.bf16.msra.mxu0 0
  %2111 = vmatpush.bf16.msra.mxu0 0
  %2112 = vmatpush.bf16.msra.mxu0 0
  %2113 = vmatpush.bf16.msra.mxu0 0
  %2114 = vmatpush.bf16.msra.mxu0 0
  %2115 = vmatpush.bf16.msra.mxu0 0
  %2116 = vmatpush.bf16.msra.mxu0 0
  %2117 = vmatpush.bf16.msra.mxu0 %v2108
  %2118 = vmatmul.bf16.gmra.mxu0 %v2106
  %v2119 = vpop.f32.mrf.mxu0
  %v2120 = vadd.f32 1e-06, %v2119
  %v2121 = vpop.f32.mrf.mxu0
  %2122 = vdwg.mxu0
  %v2123 = vrcp.pop %v2120
  %v2124 = vmul.f32 %v2104, %v2123
  %v2125 = vpack.c.bf16 %v2124, %v2124
  %v2127 = vsel %vm201, %v2125, 0
  %2129 = vmatpush.bf16.msra.mxu0 0
  %2130 = vmatpush.bf16.msra.mxu0 0
  %2131 = vmatpush.bf16.msra.mxu0 0
  %2132 = vmatpush.bf16.msra.mxu0 0
  %2133 = vmatpush.bf16.msra.mxu0 0
  %2134 = vmatpush.bf16.msra.mxu0 0
  %2135 = vmatpush.bf16.msra.mxu0 %v1900
  %2136 = vmatpush.bf16.msra.mxu0 %v1899
  %2137 = vmatmul.bf16.gmra.mxu0 %v2127
  %v2138 = vpop.f32.mrf.mxu0
  %v2139 = vadd.f32 0.0, %v2138
  %v2140 = vpop.f32.mrf.mxu0
  %2141 = vdwg.mxu0
  %2142 = vmatpush.bf16.xpose.msra.mxu0 0
  %2143 = vmatpush.bf16.xpose.msra.mxu0 0
  %2144 = vmatpush.bf16.xpose.msra.mxu0 0
  %2145 = vmatpush.bf16.xpose.msra.mxu0 0
  %2146 = vmatpush.bf16.xpose.msra.mxu0 0
  %2147 = vmatpush.bf16.xpose.msra.mxu0 0
  %2148 = vmatpush.bf16.xpose.msra.mxu0 0
  %2149 = vmatpush.bf16.xpose.msra.mxu0 %v2127
  %2150 = vmatmul.bf16.gmra.mxu0 %v2127
  %v2151 = vpop.f32.mrf.mxu0
  %v2152 = vadd.f32 0.0, %v2151
  %v2153 = vpop.f32.mrf.mxu0
  %2154 = vdwg.mxu0
  %v2155 = vpack.c.bf16 %v2152, %v2152
  %v2156 = vmul.f32 %v2075, %v2139
  %v2158 = vsel %vm251, %v2155, 0
  %v2161 = vsel %vm255, %v2076, 0
  %2163 = vmatpush.bf16.msra.mxu0 0
  %2164 = vmatpush.bf16.msra.mxu0 0
  %2165 = vmatpush.bf16.msra.mxu0 0
  %2166 = vmatpush.bf16.msra.mxu0 0
  %2167 = vmatpush.bf16.msra.mxu0 0
  %2168 = vmatpush.bf16.msra.mxu0 0
  %2169 = vmatpush.bf16.msra.mxu0 0
  %2170 = vmatpush.bf16.msra.mxu0 %v2161
  %2171 = vmatmul.bf16.gmra.mxu0 %v2158
  %v2172 = vpop.f32.mrf.mxu0
  %v2173 = vadd.f32 1e-06, %v2172
  %v2174 = vpop.f32.mrf.mxu0
  %2175 = vdwg.mxu0
  %v2176 = vrcp.pop %v2173
  %v2177 = vmul.f32 %v2156, %v2176
  %v2178 = vpack.c.bf16 %v2177, %v2177
  %2179 = vmatpush.bf16.xpose.msra.mxu0 0
  %2180 = vmatpush.bf16.xpose.msra.mxu0 0
  %2181 = vmatpush.bf16.xpose.msra.mxu0 0
  %2182 = vmatpush.bf16.xpose.msra.mxu0 0
  %2183 = vmatpush.bf16.xpose.msra.mxu0 0
  %2184 = vmatpush.bf16.xpose.msra.mxu0 0
  %2185 = vmatpush.bf16.xpose.msra.mxu0 %v1900
  %2186 = vmatpush.bf16.xpose.msra.mxu0 %v1899
  %2187 = vmatmul.bf16.gmra.mxu0 %v2178
  %v2188 = vpop.f32.mrf.mxu0
  %v2189 = vadd.f32 0.0, %v2188
  %v2190 = vpop.f32.mrf.mxu0
  %2191 = vdwg.mxu0
  %2192 = vmatpush.bf16.xpose.msra.mxu0 0
  %2193 = vmatpush.bf16.xpose.msra.mxu0 0
  %2194 = vmatpush.bf16.xpose.msra.mxu0 0
  %2195 = vmatpush.bf16.xpose.msra.mxu0 0
  %2196 = vmatpush.bf16.xpose.msra.mxu0 0
  %2197 = vmatpush.bf16.xpose.msra.mxu0 0
  %2198 = vmatpush.bf16.xpose.msra.mxu0 0
  %2199 = vmatpush.bf16.xpose.msra.mxu0 %v2178
  %2200 = vmatmul.bf16.gmra.mxu0 %v2178
  %v2201 = vpop.f32.mrf.mxu0
  %v2202 = vadd.f32 0.0, %v2201
  %v2203 = vpop.f32.mrf.mxu0
  %2204 = vdwg.mxu0
  %v2205 = vpack.c.bf16 %v2202, %v2202
  %v2206 = vmul.f32 %v2124, %v2189
  %v2208 = vsel %vm251, %v2205, 0
  %v2210 = vsel %vm255, %v2125, 0
  %2212 = vmatpush.bf16.msra.mxu0 0
  %2213 = vmatpush.bf16.msra.mxu0 0
  %2214 = vmatpush.bf16.msra.mxu0 0
  %2215 = vmatpush.bf16.msra.mxu0 0
  %2216 = vmatpush.bf16.msra.mxu0 0
  %2217 = vmatpush.bf16.msra.mxu0 0
  %2218 = vmatpush.bf16.msra.mxu0 0
  %2219 = vmatpush.bf16.msra.mxu0 %v2210
  %2220 = vmatmul.bf16.gmra.mxu0 %v2208
  %v2221 = vpop.f32.mrf.mxu0
  %v2222 = vadd.f32 1e-06, %v2221
  %v2223 = vpop.f32.mrf.mxu0
  %2224 = vdwg.mxu0
  %v2225 = vrcp.pop %v2222
  %v2226 = vmul.f32 %v2206, %v2225
  %v2227 = vpack.c.bf16 %v2226, %v2226
  %v2229 = vsel %vm201, %v2227, 0
  %2231 = vmatpush.bf16.msra.mxu0 0
  %2232 = vmatpush.bf16.msra.mxu0 0
  %2233 = vmatpush.bf16.msra.mxu0 0
  %2234 = vmatpush.bf16.msra.mxu0 0
  %2235 = vmatpush.bf16.msra.mxu0 0
  %2236 = vmatpush.bf16.msra.mxu0 0
  %2237 = vmatpush.bf16.msra.mxu0 %v1900
  %2238 = vmatpush.bf16.msra.mxu0 %v1899
  %2239 = vmatmul.bf16.gmra.mxu0 %v2229
  %v2240 = vpop.f32.mrf.mxu0
  %v2241 = vadd.f32 0.0, %v2240
  %v2242 = vpop.f32.mrf.mxu0
  %2243 = vdwg.mxu0
  %2244 = vmatpush.bf16.xpose.msra.mxu0 0
  %2245 = vmatpush.bf16.xpose.msra.mxu0 0
  %2246 = vmatpush.bf16.xpose.msra.mxu0 0
  %2247 = vmatpush.bf16.xpose.msra.mxu0 0
  %2248 = vmatpush.bf16.xpose.msra.mxu0 0
  %2249 = vmatpush.bf16.xpose.msra.mxu0 0
  %2250 = vmatpush.bf16.xpose.msra.mxu0 0
  %2251 = vmatpush.bf16.xpose.msra.mxu0 %v2229
  %2252 = vmatmul.bf16.gmra.mxu0 %v2229
  %v2253 = vpop.f32.mrf.mxu0
  %v2254 = vadd.f32 0.0, %v2253
  %v2255 = vpop.f32.mrf.mxu0
  %2256 = vdwg.mxu0
  %v2257 = vpack.c.bf16 %v2254, %v2254
  %v2258 = vmul.f32 %v2177, %v2241
  %v2260 = vsel %vm251, %v2257, 0
  %v2263 = vsel %vm255, %v2178, 0
  %2265 = vmatpush.bf16.msra.mxu0 0
  %2266 = vmatpush.bf16.msra.mxu0 0
  %2267 = vmatpush.bf16.msra.mxu0 0
  %2268 = vmatpush.bf16.msra.mxu0 0
  %2269 = vmatpush.bf16.msra.mxu0 0
  %2270 = vmatpush.bf16.msra.mxu0 0
  %2271 = vmatpush.bf16.msra.mxu0 0
  %2272 = vmatpush.bf16.msra.mxu0 %v2263
  %2273 = vmatmul.bf16.gmra.mxu0 %v2260
  %v2274 = vpop.f32.mrf.mxu0
  %v2275 = vadd.f32 1e-06, %v2274
  %v2276 = vpop.f32.mrf.mxu0
  %2277 = vdwg.mxu0
  %v2278 = vrcp.pop %v2275
  %v2279 = vmul.f32 %v2258, %v2278
  %v2280 = vpack.c.bf16 %v2279, %v2279
  %2281 = vmatpush.bf16.xpose.msra.mxu0 0
  %2282 = vmatpush.bf16.xpose.msra.mxu0 0
  %2283 = vmatpush.bf16.xpose.msra.mxu0 0
  %2284 = vmatpush.bf16.xpose.msra.mxu0 0
  %2285 = vmatpush.bf16.xpose.msra.mxu0 0
  %2286 = vmatpush.bf16.xpose.msra.mxu0 0
  %2287 = vmatpush.bf16.xpose.msra.mxu0 %v1900
  %2288 = vmatpush.bf16.xpose.msra.mxu0 %v1899
  %2289 = vmatmul.bf16.gmra.mxu0 %v2280
  %v2290 = vpop.f32.mrf.mxu0
  %v2291 = vadd.f32 0.0, %v2290
  %v2292 = vpop.f32.mrf.mxu0
  %2293 = vdwg.mxu0
  %2294 = vmatpush.bf16.xpose.msra.mxu0 0
  %2295 = vmatpush.bf16.xpose.msra.mxu0 0
  %2296 = vmatpush.bf16.xpose.msra.mxu0 0
  %2297 = vmatpush.bf16.xpose.msra.mxu0 0
  %2298 = vmatpush.bf16.xpose.msra.mxu0 0
  %2299 = vmatpush.bf16.xpose.msra.mxu0 0
  %2300 = vmatpush.bf16.xpose.msra.mxu0 0
  %2301 = vmatpush.bf16.xpose.msra.mxu0 %v2280
  %2302 = vmatmul.bf16.gmra.mxu0 %v2280
  %v2303 = vpop.f32.mrf.mxu0
  %v2304 = vadd.f32 0.0, %v2303
  %v2305 = vpop.f32.mrf.mxu0
  %2306 = vdwg.mxu0
  %v2307 = vpack.c.bf16 %v2304, %v2304
  %v2308 = vmul.f32 %v2226, %v2291
  %v2310 = vsel %vm251, %v2307, 0
  %v2312 = vsel %vm255, %v2227, 0
  %2314 = vmatpush.bf16.msra.mxu0 0
  %2315 = vmatpush.bf16.msra.mxu0 0
  %2316 = vmatpush.bf16.msra.mxu0 0
  %2317 = vmatpush.bf16.msra.mxu0 0
  %2318 = vmatpush.bf16.msra.mxu0 0
  %2319 = vmatpush.bf16.msra.mxu0 0
  %2320 = vmatpush.bf16.msra.mxu0 0
  %2321 = vmatpush.bf16.msra.mxu0 %v2312
  %2322 = vmatmul.bf16.gmra.mxu0 %v2310
  %v2323 = vpop.f32.mrf.mxu0
  %v2324 = vadd.f32 1e-06, %v2323
  %v2325 = vpop.f32.mrf.mxu0
  %2326 = vdwg.mxu0
  %v2327 = vrcp.pop %v2324
  %v2328 = vmul.f32 %v2308, %v2327
  %v2329 = vpack.c.bf16 %v2328, %v2328
  %v2331 = vsel %vm201, %v2329, 0
  %2333 = vmatpush.bf16.msra.mxu0 0
  %2334 = vmatpush.bf16.msra.mxu0 0
  %2335 = vmatpush.bf16.msra.mxu0 0
  %2336 = vmatpush.bf16.msra.mxu0 0
  %2337 = vmatpush.bf16.msra.mxu0 0
  %2338 = vmatpush.bf16.msra.mxu0 0
  %2339 = vmatpush.bf16.msra.mxu0 %v1900
  %2340 = vmatpush.bf16.msra.mxu0 %v1899
  %2341 = vmatmul.bf16.gmra.mxu0 %v2331
  %v2342 = vpop.f32.mrf.mxu0
  %v2343 = vadd.f32 0.0, %v2342
  %v2344 = vpop.f32.mrf.mxu0
  %2345 = vdwg.mxu0
  %2346 = vmatpush.bf16.xpose.msra.mxu0 0
  %2347 = vmatpush.bf16.xpose.msra.mxu0 0
  %2348 = vmatpush.bf16.xpose.msra.mxu0 0
  %2349 = vmatpush.bf16.xpose.msra.mxu0 0
  %2350 = vmatpush.bf16.xpose.msra.mxu0 0
  %2351 = vmatpush.bf16.xpose.msra.mxu0 0
  %2352 = vmatpush.bf16.xpose.msra.mxu0 0
  %2353 = vmatpush.bf16.xpose.msra.mxu0 %v2331
  %2354 = vmatmul.bf16.gmra.mxu0 %v2331
  %v2355 = vpop.f32.mrf.mxu0
  %v2356 = vadd.f32 0.0, %v2355
  %v2357 = vpop.f32.mrf.mxu0
  %2358 = vdwg.mxu0
  %v2359 = vpack.c.bf16 %v2356, %v2356
  %v2360 = vmul.f32 %v2279, %v2343
  %v2362 = vsel %vm251, %v2359, 0
  %v2365 = vsel %vm255, %v2280, 0
  %2367 = vmatpush.bf16.msra.mxu0 0
  %2368 = vmatpush.bf16.msra.mxu0 0
  %2369 = vmatpush.bf16.msra.mxu0 0
  %2370 = vmatpush.bf16.msra.mxu0 0
  %2371 = vmatpush.bf16.msra.mxu0 0
  %2372 = vmatpush.bf16.msra.mxu0 0
  %2373 = vmatpush.bf16.msra.mxu0 0
  %2374 = vmatpush.bf16.msra.mxu0 %v2365
  %2375 = vmatmul.bf16.gmra.mxu0 %v2362
  %v2376 = vpop.f32.mrf.mxu0
  %v2377 = vadd.f32 1e-06, %v2376
  %v2378 = vpop.f32.mrf.mxu0
  %2379 = vdwg.mxu0
  %v2380 = vrcp.pop %v2377
  %v2381 = vmul.f32 %v2360, %v2380
  %v2382 = vpack.c.bf16 %v2381, %v2381
  %2383 = vmatpush.bf16.xpose.msra.mxu0 0
  %2384 = vmatpush.bf16.xpose.msra.mxu0 0
  %2385 = vmatpush.bf16.xpose.msra.mxu0 0
  %2386 = vmatpush.bf16.xpose.msra.mxu0 0
  %2387 = vmatpush.bf16.xpose.msra.mxu0 0
  %2388 = vmatpush.bf16.xpose.msra.mxu0 0
  %2389 = vmatpush.bf16.xpose.msra.mxu0 %v1900
  %2390 = vmatpush.bf16.xpose.msra.mxu0 %v1899
  %2391 = vmatmul.bf16.gmra.mxu0 %v2382
  %v2392 = vpop.f32.mrf.mxu0
  %v2393 = vadd.f32 0.0, %v2392
  %v2394 = vpop.f32.mrf.mxu0
  %2395 = vdwg.mxu0
  %2396 = vmatpush.bf16.xpose.msra.mxu0 0
  %2397 = vmatpush.bf16.xpose.msra.mxu0 0
  %2398 = vmatpush.bf16.xpose.msra.mxu0 0
  %2399 = vmatpush.bf16.xpose.msra.mxu0 0
  %2400 = vmatpush.bf16.xpose.msra.mxu0 0
  %2401 = vmatpush.bf16.xpose.msra.mxu0 0
  %2402 = vmatpush.bf16.xpose.msra.mxu0 0
  %2403 = vmatpush.bf16.xpose.msra.mxu0 %v2382
  %2404 = vmatmul.bf16.gmra.mxu0 %v2382
  %v2405 = vpop.f32.mrf.mxu0
  %v2406 = vadd.f32 0.0, %v2405
  %v2407 = vpop.f32.mrf.mxu0
  %2408 = vdwg.mxu0
  %v2409 = vpack.c.bf16 %v2406, %v2406
  %v2410 = vmul.f32 %v2328, %v2393
  %v2412 = vsel %vm251, %v2409, 0
  %v2414 = vsel %vm255, %v2329, 0
  %2416 = vmatpush.bf16.msra.mxu0 0
  %2417 = vmatpush.bf16.msra.mxu0 0
  %2418 = vmatpush.bf16.msra.mxu0 0
  %2419 = vmatpush.bf16.msra.mxu0 0
  %2420 = vmatpush.bf16.msra.mxu0 0
  %2421 = vmatpush.bf16.msra.mxu0 0
  %2422 = vmatpush.bf16.msra.mxu0 0
  %2423 = vmatpush.bf16.msra.mxu0 %v2414
  %2424 = vmatmul.bf16.gmra.mxu0 %v2412
  %v2425 = vpop.f32.mrf.mxu0
  %v2426 = vadd.f32 1e-06, %v2425
  %v2427 = vpop.f32.mrf.mxu0
  %2428 = vdwg.mxu0
  %v2429 = vrcp.pop %v2426
  %v2430 = vmul.f32 %v2410, %v2429
  %v2431 = vpack.c.bf16 %v2430, %v2430
  %v2433 = vsel %vm201, %v2431, 0
  %2435 = vmatpush.bf16.msra.mxu0 0
  %2436 = vmatpush.bf16.msra.mxu0 0
  %2437 = vmatpush.bf16.msra.mxu0 0
  %2438 = vmatpush.bf16.msra.mxu0 0
  %2439 = vmatpush.bf16.msra.mxu0 0
  %2440 = vmatpush.bf16.msra.mxu0 0
  %2441 = vmatpush.bf16.msra.mxu0 %v1900
  %2442 = vmatpush.bf16.msra.mxu0 %v1899
  %2443 = vmatmul.bf16.gmra.mxu0 %v2433
  %v2444 = vpop.f32.mrf.mxu0
  %v2445 = vadd.f32 0.0, %v2444
  %v2446 = vpop.f32.mrf.mxu0
  %2447 = vdwg.mxu0
  %2448 = vmatpush.bf16.xpose.msra.mxu0 0
  %2449 = vmatpush.bf16.xpose.msra.mxu0 0
  %2450 = vmatpush.bf16.xpose.msra.mxu0 0
  %2451 = vmatpush.bf16.xpose.msra.mxu0 0
  %2452 = vmatpush.bf16.xpose.msra.mxu0 0
  %2453 = vmatpush.bf16.xpose.msra.mxu0 0
  %2454 = vmatpush.bf16.xpose.msra.mxu0 0
  %2455 = vmatpush.bf16.xpose.msra.mxu0 %v2433
  %2456 = vmatmul.bf16.gmra.mxu0 %v2433
  %v2457 = vpop.f32.mrf.mxu0
  %v2458 = vadd.f32 0.0, %v2457
  %v2459 = vpop.f32.mrf.mxu0
  %2460 = vdwg.mxu0
  %v2461 = vpack.c.bf16 %v2458, %v2458
  %v2462 = vmul.f32 %v2381, %v2445
  %v2464 = vsel %vm251, %v2461, 0
  %v2467 = vsel %vm255, %v2382, 0
  %2469 = vmatpush.bf16.msra.mxu0 0
  %2470 = vmatpush.bf16.msra.mxu0 0
  %2471 = vmatpush.bf16.msra.mxu0 0
  %2472 = vmatpush.bf16.msra.mxu0 0
  %2473 = vmatpush.bf16.msra.mxu0 0
  %2474 = vmatpush.bf16.msra.mxu0 0
  %2475 = vmatpush.bf16.msra.mxu0 0
  %2476 = vmatpush.bf16.msra.mxu0 %v2467
  %2477 = vmatmul.bf16.gmra.mxu0 %v2464
  %v2478 = vpop.f32.mrf.mxu0
  %v2479 = vadd.f32 1e-06, %v2478
  %v2480 = vpop.f32.mrf.mxu0
  %2481 = vdwg.mxu0
  %v2482 = vrcp.pop %v2479
  %v2483 = vmul.f32 %v2462, %v2482
  %v2484 = vpack.c.bf16 %v2483, %v2483
  %2485 = vmatpush.bf16.xpose.msra.mxu0 0
  %2486 = vmatpush.bf16.xpose.msra.mxu0 0
  %2487 = vmatpush.bf16.xpose.msra.mxu0 0
  %2488 = vmatpush.bf16.xpose.msra.mxu0 0
  %2489 = vmatpush.bf16.xpose.msra.mxu0 0
  %2490 = vmatpush.bf16.xpose.msra.mxu0 0
  %2491 = vmatpush.bf16.xpose.msra.mxu0 %v1900
  %2492 = vmatpush.bf16.xpose.msra.mxu0 %v1899
  %2493 = vmatmul.bf16.gmra.mxu0 %v2484
  %v2494 = vpop.f32.mrf.mxu0
  %v2495 = vadd.f32 0.0, %v2494
  %v2496 = vpop.f32.mrf.mxu0
  %2497 = vdwg.mxu0
  %2498 = vmatpush.bf16.xpose.msra.mxu0 0
  %2499 = vmatpush.bf16.xpose.msra.mxu0 0
  %2500 = vmatpush.bf16.xpose.msra.mxu0 0
  %2501 = vmatpush.bf16.xpose.msra.mxu0 0
  %2502 = vmatpush.bf16.xpose.msra.mxu0 0
  %2503 = vmatpush.bf16.xpose.msra.mxu0 0
  %2504 = vmatpush.bf16.xpose.msra.mxu0 0
  %2505 = vmatpush.bf16.xpose.msra.mxu0 %v2484
  %2506 = vmatmul.bf16.gmra.mxu0 %v2484
  %v2507 = vpop.f32.mrf.mxu0
  %v2508 = vadd.f32 0.0, %v2507
  %v2509 = vpop.f32.mrf.mxu0
  %2510 = vdwg.mxu0
  %v2511 = vpack.c.bf16 %v2508, %v2508
  %v2512 = vmul.f32 %v2430, %v2495
  %v2514 = vsel %vm251, %v2511, 0
  %v2516 = vsel %vm255, %v2431, 0
  %2518 = vmatpush.bf16.msra.mxu0 0
  %2519 = vmatpush.bf16.msra.mxu0 0
  %2520 = vmatpush.bf16.msra.mxu0 0
  %2521 = vmatpush.bf16.msra.mxu0 0
  %2522 = vmatpush.bf16.msra.mxu0 0
  %2523 = vmatpush.bf16.msra.mxu0 0
  %2524 = vmatpush.bf16.msra.mxu0 0
  %2525 = vmatpush.bf16.msra.mxu0 %v2516
  %2526 = vmatmul.bf16.gmra.mxu0 %v2514
  %v2527 = vpop.f32.mrf.mxu0
  %v2528 = vadd.f32 1e-06, %v2527
  %v2529 = vpop.f32.mrf.mxu0
  %2530 = vdwg.mxu0
  %v2531 = vrcp.pop %v2528
  %v2532 = vmul.f32 %v2512, %v2531
  %v2533 = vpack.c.bf16 %v2532, %v2532
  %v2535 = vsel %vm201, %v2533, 0
  %2537 = vmatpush.bf16.msra.mxu0 0
  %2538 = vmatpush.bf16.msra.mxu0 0
  %2539 = vmatpush.bf16.msra.mxu0 0
  %2540 = vmatpush.bf16.msra.mxu0 0
  %2541 = vmatpush.bf16.msra.mxu0 0
  %2542 = vmatpush.bf16.msra.mxu0 0
  %2543 = vmatpush.bf16.msra.mxu0 %v1900
  %2544 = vmatpush.bf16.msra.mxu0 %v1899
  %2545 = vmatmul.bf16.gmra.mxu0 %v2535
  %v2546 = vpop.f32.mrf.mxu0
  %v2547 = vadd.f32 0.0, %v2546
  %v2548 = vpop.f32.mrf.mxu0
  %2549 = vdwg.mxu0
  %2550 = vmatpush.bf16.xpose.msra.mxu0 0
  %2551 = vmatpush.bf16.xpose.msra.mxu0 0
  %2552 = vmatpush.bf16.xpose.msra.mxu0 0
  %2553 = vmatpush.bf16.xpose.msra.mxu0 0
  %2554 = vmatpush.bf16.xpose.msra.mxu0 0
  %2555 = vmatpush.bf16.xpose.msra.mxu0 0
  %2556 = vmatpush.bf16.xpose.msra.mxu0 0
  %2557 = vmatpush.bf16.xpose.msra.mxu0 %v2535
  %2558 = vmatmul.bf16.gmra.mxu0 %v2535
  %v2559 = vpop.f32.mrf.mxu0
  %v2560 = vadd.f32 0.0, %v2559
  %v2561 = vpop.f32.mrf.mxu0
  %2562 = vdwg.mxu0
  %v2563 = vpack.c.bf16 %v2560, %v2560
  %v2564 = vmul.f32 %v2483, %v2547
  %v2566 = vsel %vm251, %v2563, 0
  %v2569 = vsel %vm255, %v2484, 0
  %2571 = vmatpush.bf16.msra.mxu0 0
  %2572 = vmatpush.bf16.msra.mxu0 0
  %2573 = vmatpush.bf16.msra.mxu0 0
  %2574 = vmatpush.bf16.msra.mxu0 0
  %2575 = vmatpush.bf16.msra.mxu0 0
  %2576 = vmatpush.bf16.msra.mxu0 0
  %2577 = vmatpush.bf16.msra.mxu0 0
  %2578 = vmatpush.bf16.msra.mxu0 %v2569
  %2579 = vmatmul.bf16.gmra.mxu0 %v2566
  %v2580 = vpop.f32.mrf.mxu0
  %v2581 = vadd.f32 1e-06, %v2580
  %v2582 = vpop.f32.mrf.mxu0
  %2583 = vdwg.mxu0
  %v2584 = vrcp.pop %v2581
  %v2585 = vmul.f32 %v2564, %v2584
  %v2586 = vpack.c.bf16 %v2585, %v2585
  %2587 = vmatpush.bf16.xpose.msra.mxu0 0
  %2588 = vmatpush.bf16.xpose.msra.mxu0 0
  %2589 = vmatpush.bf16.xpose.msra.mxu0 0
  %2590 = vmatpush.bf16.xpose.msra.mxu0 0
  %2591 = vmatpush.bf16.xpose.msra.mxu0 0
  %2592 = vmatpush.bf16.xpose.msra.mxu0 0
  %2593 = vmatpush.bf16.xpose.msra.mxu0 %v1900
  %2594 = vmatpush.bf16.xpose.msra.mxu0 %v1899
  %2595 = vmatmul.bf16.gmra.mxu0 %v2586
  %v2596 = vpop.f32.mrf.mxu0
  %v2597 = vadd.f32 0.0, %v2596
  %v2598 = vpop.f32.mrf.mxu0
  %2599 = vdwg.mxu0
  %2600 = vmatpush.bf16.xpose.msra.mxu0 0
  %2601 = vmatpush.bf16.xpose.msra.mxu0 0
  %2602 = vmatpush.bf16.xpose.msra.mxu0 0
  %2603 = vmatpush.bf16.xpose.msra.mxu0 0
  %2604 = vmatpush.bf16.xpose.msra.mxu0 0
  %2605 = vmatpush.bf16.xpose.msra.mxu0 0
  %2606 = vmatpush.bf16.xpose.msra.mxu0 0
  %2607 = vmatpush.bf16.xpose.msra.mxu0 %v2586
  %2608 = vmatmul.bf16.gmra.mxu0 %v2586
  %v2609 = vpop.f32.mrf.mxu0
  %v2610 = vadd.f32 0.0, %v2609
  %v2611 = vpop.f32.mrf.mxu0
  %2612 = vdwg.mxu0
  %v2613 = vpack.c.bf16 %v2610, %v2610
  %v2614 = vmul.f32 %v2532, %v2597
  %v2616 = vsel %vm251, %v2613, 0
  %v2618 = vsel %vm255, %v2533, 0
  %2620 = vmatpush.bf16.msra.mxu0 0
  %2621 = vmatpush.bf16.msra.mxu0 0
  %2622 = vmatpush.bf16.msra.mxu0 0
  %2623 = vmatpush.bf16.msra.mxu0 0
  %2624 = vmatpush.bf16.msra.mxu0 0
  %2625 = vmatpush.bf16.msra.mxu0 0
  %2626 = vmatpush.bf16.msra.mxu0 0
  %2627 = vmatpush.bf16.msra.mxu0 %v2618
  %2628 = vmatmul.bf16.gmra.mxu0 %v2616
  %v2629 = vpop.f32.mrf.mxu0
  %v2630 = vadd.f32 1e-06, %v2629
  %v2631 = vpop.f32.mrf.mxu0
  %2632 = vdwg.mxu0
  %v2633 = vrcp.pop %v2630
  %v2634 = vmul.f32 %v2614, %v2633
  %v2635 = vpack.c.bf16 %v2634, %v2634
  %v2637 = vsel %vm201, %v2635, 0
  %2639 = vmatpush.bf16.msra.mxu0 0
  %2640 = vmatpush.bf16.msra.mxu0 0
  %2641 = vmatpush.bf16.msra.mxu0 0
  %2642 = vmatpush.bf16.msra.mxu0 0
  %2643 = vmatpush.bf16.msra.mxu0 0
  %2644 = vmatpush.bf16.msra.mxu0 0
  %2645 = vmatpush.bf16.msra.mxu0 %v1900
  %2646 = vmatpush.bf16.msra.mxu0 %v1899
  %2647 = vmatmul.bf16.gmra.mxu0 %v2637
  %v2648 = vpop.f32.mrf.mxu0
  %v2649 = vadd.f32 0.0, %v2648
  %v2650 = vpop.f32.mrf.mxu0
  %2651 = vdwg.mxu0
  %2652 = vmatpush.bf16.xpose.msra.mxu0 0
  %2653 = vmatpush.bf16.xpose.msra.mxu0 0
  %2654 = vmatpush.bf16.xpose.msra.mxu0 0
  %2655 = vmatpush.bf16.xpose.msra.mxu0 0
  %2656 = vmatpush.bf16.xpose.msra.mxu0 0
  %2657 = vmatpush.bf16.xpose.msra.mxu0 0
  %2658 = vmatpush.bf16.xpose.msra.mxu0 0
  %2659 = vmatpush.bf16.xpose.msra.mxu0 %v2637
  %2660 = vmatmul.bf16.gmra.mxu0 %v2637
  %v2661 = vpop.f32.mrf.mxu0
  %v2662 = vadd.f32 0.0, %v2661
  %v2663 = vpop.f32.mrf.mxu0
  %2664 = vdwg.mxu0
  %v2665 = vpack.c.bf16 %v2662, %v2662
  %v2666 = vmul.f32 %v2585, %v2649
  %v2668 = vsel %vm251, %v2665, 0
  %v2671 = vsel %vm255, %v2586, 0
  %2673 = vmatpush.bf16.msra.mxu0 0
  %2674 = vmatpush.bf16.msra.mxu0 0
  %2675 = vmatpush.bf16.msra.mxu0 0
  %2676 = vmatpush.bf16.msra.mxu0 0
  %2677 = vmatpush.bf16.msra.mxu0 0
  %2678 = vmatpush.bf16.msra.mxu0 0
  %2679 = vmatpush.bf16.msra.mxu0 0
  %2680 = vmatpush.bf16.msra.mxu0 %v2671
  %2681 = vmatmul.bf16.gmra.mxu0 %v2668
  %v2682 = vpop.f32.mrf.mxu0
  %v2683 = vadd.f32 1e-06, %v2682
  %v2684 = vpop.f32.mrf.mxu0
  %2685 = vdwg.mxu0
  %v2686 = vrcp.pop %v2683
  %v2687 = vmul.f32 %v2666, %v2686
  %v2688 = vpack.c.bf16 %v2687, %v2687
  %2689 = vxpose.xlu0.c.b16.start [1/8] %v2635, 128
  %2690 = vxpose.xlu0.c.b16.cont [2/8] 0, 128
  %2691 = vxpose.xlu0.c.b16.cont [3/8] 0, 128
  %2692 = vxpose.xlu0.c.b16.cont [4/8] 0, 128
  %2693 = vxpose.xlu0.c.b16.cont [5/8] 0, 128
  %2694 = vxpose.xlu0.c.b16.cont [6/8] 0, 128
  %2695 = vxpose.xlu0.c.b16.cont [7/8] 0, 128
  %2696 = vxpose.xlu0.c.b16.end [8/8] 0, 128
  %v2697 = vpop.trf.xlu0
  %v2698 = vpop.trf.xlu0
  %v2699 = vpop.trf.xlu0
  %v2700 = vpop.trf.xlu0
  %v2701 = vpop.trf.xlu0
  %v2702 = vpop.trf.xlu0
  %v2703 = vpop.trf.xlu0
  %v2704 = vpop.trf.xlu0
  %v2706 = vsel %vm251, %v2697, 0
  %v2709 = vsel %vm251, %v2698, 0
  %v2712 = vsel %vm255, %v2688, 0
  %2714 = vmatpush.bf16.msra.mxu0 0
  %2715 = vmatpush.bf16.msra.mxu0 0
  %2716 = vmatpush.bf16.msra.mxu0 0
  %2717 = vmatpush.bf16.msra.mxu0 0
  %2718 = vmatpush.bf16.msra.mxu0 0
  %2719 = vmatpush.bf16.msra.mxu0 0
  %2720 = vmatpush.bf16.msra.mxu0 0
  %2721 = vmatpush.bf16.msra.mxu0 %v2712
  %2722 = vmatmul.bf16.gmra.mxu0 %v2706
  %v2723 = vpop.f32.mrf.mxu0
  %v2724 = vadd.f32 0.0, %v2723
  %v2725 = vpop.f32.mrf.mxu0
  %v2726 = vadd.f32 0.0, %v2725
  %2727 = vmatmul.bf16.gmra.mxu0 %v2709
  %v2728 = vpop.f32.mrf.mxu0
  %v2729 = vadd.f32 0.0, %v2728
  %v2730 = vpop.f32.mrf.mxu0
  %v2731 = vadd.f32 0.0, %v2730
  %2732 = vdwg.mxu0
  %v2733 = vld [vmem:[%s0 + $0x10] sm:$0xff]
  %v2734 = vld [vmem:[%s0 + $0x30] sm:$0xff]
  %v2735 = vld [vmem:[%s0 + $0x50] sm:$0xff]
  %v2736 = vld [vmem:[%s0 + $0x70] sm:$0xff]
  %v2737 = vadd.f32 %v2733, %v2724
  %v2738 = vadd.f32 %v2734, %v2726
  %v2739 = vadd.f32 %v2735, %v2729
  %v2740 = vadd.f32 %v2736, %v2731
  %v2741 = vmax.f32 %v2737, 0.0
  %v2742 = vmax.f32 %v2738, 0.0
  %v2743 = vmax.f32 %v2739, 0.0
  %v2744 = vmax.f32 %v2740, 0.0
  %2745 = vst [vmem:[%s3 + $0x10] sm:$0xff] %v2741
  %2746 = vst [vmem:[%s3 + $0x30] sm:$0xff] %v2742
  %2747 = vst [vmem:[%s3 + $0x50] sm:$0xff] %v2743
  %2748 = vst [vmem:[%s3 + $0x70] sm:$0xff] %v2744
  %v2749 = vpack.c.bf16 %v188, %v184
  %v2750 = vpack.c.bf16 %v196, %v192
  %s2751 = scalar_lea.vmem %s2, 24
  %v2752 = vld [vmem:[%s2751] sm:$0xff]
  %v2753 = vpack.c.bf16 %v2752, %v2752
  %v2755 = vsel %vm201, %v2753, 0
  %2757 = vmatpush.bf16.msra.mxu0 0
  %2758 = vmatpush.bf16.msra.mxu0 0
  %2759 = vmatpush.bf16.msra.mxu0 0
  %2760 = vmatpush.bf16.msra.mxu0 0
  %2761 = vmatpush.bf16.msra.mxu0 0
  %2762 = vmatpush.bf16.msra.mxu0 0
  %2763 = vmatpush.bf16.msra.mxu0 %v2750
  %2764 = vmatpush.bf16.msra.mxu0 %v2749
  %2765 = vmatmul.bf16.gmra.mxu0 %v2755
  %v2766 = vpop.f32.mrf.mxu0
  %v2767 = vadd.f32 0.0, %v2766
  %v2768 = vpop.f32.mrf.mxu0
  %2769 = vdwg.mxu0
  %v2770 = vrot.slane %v2767, 4
  %v2771 = vmax.f32 %v2767, %v2770
  %v2772 = vrot.slane %v2771, 2
  %v2773 = vmax.f32 %v2771, %v2772
  %v2774 = vrot.slane %v2773, 1
  %v2775 = vmax.f32 %v2773, %v2774
  %v2776 = vsub.f32 %v2767, %v2775
  %v2777 = vmul.f32 %v2776, 1.442695
  %v2778 = vpow.pop %v2777
  %v2779 = vrot.slane %v2778, 4
  %v2780 = vadd.f32 %v2778, %v2779
  %v2781 = vrot.slane %v2780, 2
  %v2782 = vadd.f32 %v2780, %v2781
  %v2783 = vrot.slane %v2782, 1
  %v2784 = vadd.f32 %v2782, %v2783
  %v2785 = vrcp.pop %v2784
  %v2786 = vmul.f32 %v2778, %v2785
  %2787 = vmatpush.bf16.xpose.msra.mxu0 0
  %2788 = vmatpush.bf16.xpose.msra.mxu0 0
  %2789 = vmatpush.bf16.xpose.msra.mxu0 0
  %2790 = vmatpush.bf16.xpose.msra.mxu0 0
  %2791 = vmatpush.bf16.xpose.msra.mxu0 0
  %2792 = vmatpush.bf16.xpose.msra.mxu0 0
  %2793 = vmatpush.bf16.xpose.msra.mxu0 0
  %2794 = vmatpush.bf16.xpose.msra.mxu0 %v2755
  %2795 = vmatmul.bf16.gmra.mxu0 %v2755
  %v2796 = vpop.f32.mrf.mxu0
  %v2797 = vadd.f32 0.0, %v2796
  %v2798 = vpop.f32.mrf.mxu0
  %2799 = vdwg.mxu0
  %v2800 = vpack.c.bf16 %v2797, %v2797
  %v2801 = vpack.c.bf16 %v2786, %v2786
  %v2802 = vmul.f32 %v2786, %v2767
  %v2804 = vsel %vm251, %v2800, 0
  %v2807 = vsel %vm255, %v2801, 0
  %2809 = vmatpush.bf16.msra.mxu0 0
  %2810 = vmatpush.bf16.msra.mxu0 0
  %2811 = vmatpush.bf16.msra.mxu0 0
  %2812 = vmatpush.bf16.msra.mxu0 0
  %2813 = vmatpush.bf16.msra.mxu0 0
  %2814 = vmatpush.bf16.msra.mxu0 0
  %2815 = vmatpush.bf16.msra.mxu0 0
  %2816 = vmatpush.bf16.msra.mxu0 %v2807
  %2817 = vmatmul.bf16.gmra.mxu0 %v2804
  %v2818 = vpop.f32.mrf.mxu0
  %v2819 = vadd.f32 1e-06, %v2818
  %v2820 = vpop.f32.mrf.mxu0
  %2821 = vdwg.mxu0
  %v2822 = vrcp.pop %v2819
  %v2823 = vmul.f32 %v2802, %v2822
  %v2824 = vpack.c.bf16 %v2823, %v2823
  %2825 = vmatpush.bf16.xpose.msra.mxu0 0
  %2826 = vmatpush.bf16.xpose.msra.mxu0 0
  %2827 = vmatpush.bf16.xpose.msra.mxu0 0
  %2828 = vmatpush.bf16.xpose.msra.mxu0 0
  %2829 = vmatpush.bf16.xpose.msra.mxu0 0
  %2830 = vmatpush.bf16.xpose.msra.mxu0 0
  %2831 = vmatpush.bf16.xpose.msra.mxu0 %v2750
  %2832 = vmatpush.bf16.xpose.msra.mxu0 %v2749
  %2833 = vmatmul.bf16.gmra.mxu0 %v2824
  %v2834 = vpop.f32.mrf.mxu0
  %v2835 = vadd.f32 0.0, %v2834
  %v2836 = vpop.f32.mrf.mxu0
  %2837 = vdwg.mxu0
  %2838 = vmatpush.bf16.xpose.msra.mxu0 0
  %2839 = vmatpush.bf16.xpose.msra.mxu0 0
  %2840 = vmatpush.bf16.xpose.msra.mxu0 0
  %2841 = vmatpush.bf16.xpose.msra.mxu0 0
  %2842 = vmatpush.bf16.xpose.msra.mxu0 0
  %2843 = vmatpush.bf16.xpose.msra.mxu0 0
  %2844 = vmatpush.bf16.xpose.msra.mxu0 0
  %2845 = vmatpush.bf16.xpose.msra.mxu0 %v2824
  %2846 = vmatmul.bf16.gmra.mxu0 %v2824
  %v2847 = vpop.f32.mrf.mxu0
  %v2848 = vadd.f32 0.0, %v2847
  %v2849 = vpop.f32.mrf.mxu0
  %2850 = vdwg.mxu0
  %v2851 = vpack.c.bf16 %v2848, %v2848
  %v2852 = vmul.f32 %v2752, %v2835
  %v2854 = vsel %vm251, %v2851, 0
  %v2856 = vsel %vm255, %v2753, 0
  %2858 = vmatpush.bf16.msra.mxu0 0
  %2859 = vmatpush.bf16.msra.mxu0 0
  %2860 = vmatpush.bf16.msra.mxu0 0
  %2861 = vmatpush.bf16.msra.mxu0 0
  %2862 = vmatpush.bf16.msra.mxu0 0
  %2863 = vmatpush.bf16.msra.mxu0 0
  %2864 = vmatpush.bf16.msra.mxu0 0
  %2865 = vmatpush.bf16.msra.mxu0 %v2856
  %2866 = vmatmul.bf16.gmra.mxu0 %v2854
  %v2867 = vpop.f32.mrf.mxu0
  %v2868 = vadd.f32 1e-06, %v2867
  %v2869 = vpop.f32.mrf.mxu0
  %2870 = vdwg.mxu0
  %v2871 = vrcp.pop %v2868
  %v2872 = vmul.f32 %v2852, %v2871
  %v2873 = vpack.c.bf16 %v2872, %v2872
  %v2875 = vsel %vm201, %v2873, 0
  %2877 = vmatpush.bf16.msra.mxu0 0
  %2878 = vmatpush.bf16.msra.mxu0 0
  %2879 = vmatpush.bf16.msra.mxu0 0
  %2880 = vmatpush.bf16.msra.mxu0 0
  %2881 = vmatpush.bf16.msra.mxu0 0
  %2882 = vmatpush.bf16.msra.mxu0 0
  %2883 = vmatpush.bf16.msra.mxu0 %v2750
  %2884 = vmatpush.bf16.msra.mxu0 %v2749
  %2885 = vmatmul.bf16.gmra.mxu0 %v2875
  %v2886 = vpop.f32.mrf.mxu0
  %v2887 = vadd.f32 0.0, %v2886
  %v2888 = vpop.f32.mrf.mxu0
  %2889 = vdwg.mxu0
  %2890 = vmatpush.bf16.xpose.msra.mxu0 0
  %2891 = vmatpush.bf16.xpose.msra.mxu0 0
  %2892 = vmatpush.bf16.xpose.msra.mxu0 0
  %2893 = vmatpush.bf16.xpose.msra.mxu0 0
  %2894 = vmatpush.bf16.xpose.msra.mxu0 0
  %2895 = vmatpush.bf16.xpose.msra.mxu0 0
  %2896 = vmatpush.bf16.xpose.msra.mxu0 0
  %2897 = vmatpush.bf16.xpose.msra.mxu0 %v2875
  %2898 = vmatmul.bf16.gmra.mxu0 %v2875
  %v2899 = vpop.f32.mrf.mxu0
  %v2900 = vadd.f32 0.0, %v2899
  %v2901 = vpop.f32.mrf.mxu0
  %2902 = vdwg.mxu0
  %v2903 = vpack.c.bf16 %v2900, %v2900
  %v2904 = vmul.f32 %v2823, %v2887
  %v2906 = vsel %vm251, %v2903, 0
  %v2909 = vsel %vm255, %v2824, 0
  %2911 = vmatpush.bf16.msra.mxu0 0
  %2912 = vmatpush.bf16.msra.mxu0 0
  %2913 = vmatpush.bf16.msra.mxu0 0
  %2914 = vmatpush.bf16.msra.mxu0 0
  %2915 = vmatpush.bf16.msra.mxu0 0
  %2916 = vmatpush.bf16.msra.mxu0 0
  %2917 = vmatpush.bf16.msra.mxu0 0
  %2918 = vmatpush.bf16.msra.mxu0 %v2909
  %2919 = vmatmul.bf16.gmra.mxu0 %v2906
  %v2920 = vpop.f32.mrf.mxu0
  %v2921 = vadd.f32 1e-06, %v2920
  %v2922 = vpop.f32.mrf.mxu0
  %2923 = vdwg.mxu0
  %v2924 = vrcp.pop %v2921
  %v2925 = vmul.f32 %v2904, %v2924
  %v2926 = vpack.c.bf16 %v2925, %v2925
  %2927 = vmatpush.bf16.xpose.msra.mxu0 0
  %2928 = vmatpush.bf16.xpose.msra.mxu0 0
  %2929 = vmatpush.bf16.xpose.msra.mxu0 0
  %2930 = vmatpush.bf16.xpose.msra.mxu0 0
  %2931 = vmatpush.bf16.xpose.msra.mxu0 0
  %2932 = vmatpush.bf16.xpose.msra.mxu0 0
  %2933 = vmatpush.bf16.xpose.msra.mxu0 %v2750
  %2934 = vmatpush.bf16.xpose.msra.mxu0 %v2749
  %2935 = vmatmul.bf16.gmra.mxu0 %v2926
  %v2936 = vpop.f32.mrf.mxu0
  %v2937 = vadd.f32 0.0, %v2936
  %v2938 = vpop.f32.mrf.mxu0
  %2939 = vdwg.mxu0
  %2940 = vmatpush.bf16.xpose.msra.mxu0 0
  %2941 = vmatpush.bf16.xpose.msra.mxu0 0
  %2942 = vmatpush.bf16.xpose.msra.mxu0 0
  %2943 = vmatpush.bf16.xpose.msra.mxu0 0
  %2944 = vmatpush.bf16.xpose.msra.mxu0 0
  %2945 = vmatpush.bf16.xpose.msra.mxu0 0
  %2946 = vmatpush.bf16.xpose.msra.mxu0 0
  %2947 = vmatpush.bf16.xpose.msra.mxu0 %v2926
  %2948 = vmatmul.bf16.gmra.mxu0 %v2926
  %v2949 = vpop.f32.mrf.mxu0
  %v2950 = vadd.f32 0.0, %v2949
  %v2951 = vpop.f32.mrf.mxu0
  %2952 = vdwg.mxu0
  %v2953 = vpack.c.bf16 %v2950, %v2950
  %v2954 = vmul.f32 %v2872, %v2937
  %v2956 = vsel %vm251, %v2953, 0
  %v2958 = vsel %vm255, %v2873, 0
  %2960 = vmatpush.bf16.msra.mxu0 0
  %2961 = vmatpush.bf16.msra.mxu0 0
  %2962 = vmatpush.bf16.msra.mxu0 0
  %2963 = vmatpush.bf16.msra.mxu0 0
  %2964 = vmatpush.bf16.msra.mxu0 0
  %2965 = vmatpush.bf16.msra.mxu0 0
  %2966 = vmatpush.bf16.msra.mxu0 0
  %2967 = vmatpush.bf16.msra.mxu0 %v2958
  %2968 = vmatmul.bf16.gmra.mxu0 %v2956
  %v2969 = vpop.f32.mrf.mxu0
  %v2970 = vadd.f32 1e-06, %v2969
  %v2971 = vpop.f32.mrf.mxu0
  %2972 = vdwg.mxu0
  %v2973 = vrcp.pop %v2970
  %v2974 = vmul.f32 %v2954, %v2973
  %v2975 = vpack.c.bf16 %v2974, %v2974
  %v2977 = vsel %vm201, %v2975, 0
  %2979 = vmatpush.bf16.msra.mxu0 0
  %2980 = vmatpush.bf16.msra.mxu0 0
  %2981 = vmatpush.bf16.msra.mxu0 0
  %2982 = vmatpush.bf16.msra.mxu0 0
  %2983 = vmatpush.bf16.msra.mxu0 0
  %2984 = vmatpush.bf16.msra.mxu0 0
  %2985 = vmatpush.bf16.msra.mxu0 %v2750
  %2986 = vmatpush.bf16.msra.mxu0 %v2749
  %2987 = vmatmul.bf16.gmra.mxu0 %v2977
  %v2988 = vpop.f32.mrf.mxu0
  %v2989 = vadd.f32 0.0, %v2988
  %v2990 = vpop.f32.mrf.mxu0
  %2991 = vdwg.mxu0
  %2992 = vmatpush.bf16.xpose.msra.mxu0 0
  %2993 = vmatpush.bf16.xpose.msra.mxu0 0
  %2994 = vmatpush.bf16.xpose.msra.mxu0 0
  %2995 = vmatpush.bf16.xpose.msra.mxu0 0
  %2996 = vmatpush.bf16.xpose.msra.mxu0 0
  %2997 = vmatpush.bf16.xpose.msra.mxu0 0
  %2998 = vmatpush.bf16.xpose.msra.mxu0 0
  %2999 = vmatpush.bf16.xpose.msra.mxu0 %v2977
  %3000 = vmatmul.bf16.gmra.mxu0 %v2977
  %v3001 = vpop.f32.mrf.mxu0
  %v3002 = vadd.f32 0.0, %v3001
  %v3003 = vpop.f32.mrf.mxu0
  %3004 = vdwg.mxu0
  %v3005 = vpack.c.bf16 %v3002, %v3002
  %v3006 = vmul.f32 %v2925, %v2989
  %v3008 = vsel %vm251, %v3005, 0
  %v3011 = vsel %vm255, %v2926, 0
  %3013 = vmatpush.bf16.msra.mxu0 0
  %3014 = vmatpush.bf16.msra.mxu0 0
  %3015 = vmatpush.bf16.msra.mxu0 0
  %3016 = vmatpush.bf16.msra.mxu0 0
  %3017 = vmatpush.bf16.msra.mxu0 0
  %3018 = vmatpush.bf16.msra.mxu0 0
  %3019 = vmatpush.bf16.msra.mxu0 0
  %3020 = vmatpush.bf16.msra.mxu0 %v3011
  %3021 = vmatmul.bf16.gmra.mxu0 %v3008
  %v3022 = vpop.f32.mrf.mxu0
  %v3023 = vadd.f32 1e-06, %v3022
  %v3024 = vpop.f32.mrf.mxu0
  %3025 = vdwg.mxu0
  %v3026 = vrcp.pop %v3023
  %v3027 = vmul.f32 %v3006, %v3026
  %v3028 = vpack.c.bf16 %v3027, %v3027
  %3029 = vmatpush.bf16.xpose.msra.mxu0 0
  %3030 = vmatpush.bf16.xpose.msra.mxu0 0
  %3031 = vmatpush.bf16.xpose.msra.mxu0 0
  %3032 = vmatpush.bf16.xpose.msra.mxu0 0
  %3033 = vmatpush.bf16.xpose.msra.mxu0 0
  %3034 = vmatpush.bf16.xpose.msra.mxu0 0
  %3035 = vmatpush.bf16.xpose.msra.mxu0 %v2750
  %3036 = vmatpush.bf16.xpose.msra.mxu0 %v2749
  %3037 = vmatmul.bf16.gmra.mxu0 %v3028
  %v3038 = vpop.f32.mrf.mxu0
  %v3039 = vadd.f32 0.0, %v3038
  %v3040 = vpop.f32.mrf.mxu0
  %3041 = vdwg.mxu0
  %3042 = vmatpush.bf16.xpose.msra.mxu0 0
  %3043 = vmatpush.bf16.xpose.msra.mxu0 0
  %3044 = vmatpush.bf16.xpose.msra.mxu0 0
  %3045 = vmatpush.bf16.xpose.msra.mxu0 0
  %3046 = vmatpush.bf16.xpose.msra.mxu0 0
  %3047 = vmatpush.bf16.xpose.msra.mxu0 0
  %3048 = vmatpush.bf16.xpose.msra.mxu0 0
  %3049 = vmatpush.bf16.xpose.msra.mxu0 %v3028
  %3050 = vmatmul.bf16.gmra.mxu0 %v3028
  %v3051 = vpop.f32.mrf.mxu0
  %v3052 = vadd.f32 0.0, %v3051
  %v3053 = vpop.f32.mrf.mxu0
  %3054 = vdwg.mxu0
  %v3055 = vpack.c.bf16 %v3052, %v3052
  %v3056 = vmul.f32 %v2974, %v3039
  %v3058 = vsel %vm251, %v3055, 0
  %v3060 = vsel %vm255, %v2975, 0
  %3062 = vmatpush.bf16.msra.mxu0 0
  %3063 = vmatpush.bf16.msra.mxu0 0
  %3064 = vmatpush.bf16.msra.mxu0 0
  %3065 = vmatpush.bf16.msra.mxu0 0
  %3066 = vmatpush.bf16.msra.mxu0 0
  %3067 = vmatpush.bf16.msra.mxu0 0
  %3068 = vmatpush.bf16.msra.mxu0 0
  %3069 = vmatpush.bf16.msra.mxu0 %v3060
  %3070 = vmatmul.bf16.gmra.mxu0 %v3058
  %v3071 = vpop.f32.mrf.mxu0
  %v3072 = vadd.f32 1e-06, %v3071
  %v3073 = vpop.f32.mrf.mxu0
  %3074 = vdwg.mxu0
  %v3075 = vrcp.pop %v3072
  %v3076 = vmul.f32 %v3056, %v3075
  %v3077 = vpack.c.bf16 %v3076, %v3076
  %v3079 = vsel %vm201, %v3077, 0
  %3081 = vmatpush.bf16.msra.mxu0 0
  %3082 = vmatpush.bf16.msra.mxu0 0
  %3083 = vmatpush.bf16.msra.mxu0 0
  %3084 = vmatpush.bf16.msra.mxu0 0
  %3085 = vmatpush.bf16.msra.mxu0 0
  %3086 = vmatpush.bf16.msra.mxu0 0
  %3087 = vmatpush.bf16.msra.mxu0 %v2750
  %3088 = vmatpush.bf16.msra.mxu0 %v2749
  %3089 = vmatmul.bf16.gmra.mxu0 %v3079
  %v3090 = vpop.f32.mrf.mxu0
  %v3091 = vadd.f32 0.0, %v3090
  %v3092 = vpop.f32.mrf.mxu0
  %3093 = vdwg.mxu0
  %3094 = vmatpush.bf16.xpose.msra.mxu0 0
  %3095 = vmatpush.bf16.xpose.msra.mxu0 0
  %3096 = vmatpush.bf16.xpose.msra.mxu0 0
  %3097 = vmatpush.bf16.xpose.msra.mxu0 0
  %3098 = vmatpush.bf16.xpose.msra.mxu0 0
  %3099 = vmatpush.bf16.xpose.msra.mxu0 0
  %3100 = vmatpush.bf16.xpose.msra.mxu0 0
  %3101 = vmatpush.bf16.xpose.msra.mxu0 %v3079
  %3102 = vmatmul.bf16.gmra.mxu0 %v3079
  %v3103 = vpop.f32.mrf.mxu0
  %v3104 = vadd.f32 0.0, %v3103
  %v3105 = vpop.f32.mrf.mxu0
  %3106 = vdwg.mxu0
  %v3107 = vpack.c.bf16 %v3104, %v3104
  %v3108 = vmul.f32 %v3027, %v3091
  %v3110 = vsel %vm251, %v3107, 0
  %v3113 = vsel %vm255, %v3028, 0
  %3115 = vmatpush.bf16.msra.mxu0 0
  %3116 = vmatpush.bf16.msra.mxu0 0
  %3117 = vmatpush.bf16.msra.mxu0 0
  %3118 = vmatpush.bf16.msra.mxu0 0
  %3119 = vmatpush.bf16.msra.mxu0 0
  %3120 = vmatpush.bf16.msra.mxu0 0
  %3121 = vmatpush.bf16.msra.mxu0 0
  %3122 = vmatpush.bf16.msra.mxu0 %v3113
  %3123 = vmatmul.bf16.gmra.mxu0 %v3110
  %v3124 = vpop.f32.mrf.mxu0
  %v3125 = vadd.f32 1e-06, %v3124
  %v3126 = vpop.f32.mrf.mxu0
  %3127 = vdwg.mxu0
  %v3128 = vrcp.pop %v3125
  %v3129 = vmul.f32 %v3108, %v3128
  %v3130 = vpack.c.bf16 %v3129, %v3129
  %3131 = vmatpush.bf16.xpose.msra.mxu0 0
  %3132 = vmatpush.bf16.xpose.msra.mxu0 0
  %3133 = vmatpush.bf16.xpose.msra.mxu0 0
  %3134 = vmatpush.bf16.xpose.msra.mxu0 0
  %3135 = vmatpush.bf16.xpose.msra.mxu0 0
  %3136 = vmatpush.bf16.xpose.msra.mxu0 0
  %3137 = vmatpush.bf16.xpose.msra.mxu0 %v2750
  %3138 = vmatpush.bf16.xpose.msra.mxu0 %v2749
  %3139 = vmatmul.bf16.gmra.mxu0 %v3130
  %v3140 = vpop.f32.mrf.mxu0
  %v3141 = vadd.f32 0.0, %v3140
  %v3142 = vpop.f32.mrf.mxu0
  %3143 = vdwg.mxu0
  %3144 = vmatpush.bf16.xpose.msra.mxu0 0
  %3145 = vmatpush.bf16.xpose.msra.mxu0 0
  %3146 = vmatpush.bf16.xpose.msra.mxu0 0
  %3147 = vmatpush.bf16.xpose.msra.mxu0 0
  %3148 = vmatpush.bf16.xpose.msra.mxu0 0
  %3149 = vmatpush.bf16.xpose.msra.mxu0 0
  %3150 = vmatpush.bf16.xpose.msra.mxu0 0
  %3151 = vmatpush.bf16.xpose.msra.mxu0 %v3130
  %3152 = vmatmul.bf16.gmra.mxu0 %v3130
  %v3153 = vpop.f32.mrf.mxu0
  %v3154 = vadd.f32 0.0, %v3153
  %v3155 = vpop.f32.mrf.mxu0
  %3156 = vdwg.mxu0
  %v3157 = vpack.c.bf16 %v3154, %v3154
  %v3158 = vmul.f32 %v3076, %v3141
  %v3160 = vsel %vm251, %v3157, 0
  %v3162 = vsel %vm255, %v3077, 0
  %3164 = vmatpush.bf16.msra.mxu0 0
  %3165 = vmatpush.bf16.msra.mxu0 0
  %3166 = vmatpush.bf16.msra.mxu0 0
  %3167 = vmatpush.bf16.msra.mxu0 0
  %3168 = vmatpush.bf16.msra.mxu0 0
  %3169 = vmatpush.bf16.msra.mxu0 0
  %3170 = vmatpush.bf16.msra.mxu0 0
  %3171 = vmatpush.bf16.msra.mxu0 %v3162
  %3172 = vmatmul.bf16.gmra.mxu0 %v3160
  %v3173 = vpop.f32.mrf.mxu0
  %v3174 = vadd.f32 1e-06, %v3173
  %v3175 = vpop.f32.mrf.mxu0
  %3176 = vdwg.mxu0
  %v3177 = vrcp.pop %v3174
  %v3178 = vmul.f32 %v3158, %v3177
  %v3179 = vpack.c.bf16 %v3178, %v3178
  %v3181 = vsel %vm201, %v3179, 0
  %3183 = vmatpush.bf16.msra.mxu0 0
  %3184 = vmatpush.bf16.msra.mxu0 0
  %3185 = vmatpush.bf16.msra.mxu0 0
  %3186 = vmatpush.bf16.msra.mxu0 0
  %3187 = vmatpush.bf16.msra.mxu0 0
  %3188 = vmatpush.bf16.msra.mxu0 0
  %3189 = vmatpush.bf16.msra.mxu0 %v2750
  %3190 = vmatpush.bf16.msra.mxu0 %v2749
  %3191 = vmatmul.bf16.gmra.mxu0 %v3181
  %v3192 = vpop.f32.mrf.mxu0
  %v3193 = vadd.f32 0.0, %v3192
  %v3194 = vpop.f32.mrf.mxu0
  %3195 = vdwg.mxu0
  %3196 = vmatpush.bf16.xpose.msra.mxu0 0
  %3197 = vmatpush.bf16.xpose.msra.mxu0 0
  %3198 = vmatpush.bf16.xpose.msra.mxu0 0
  %3199 = vmatpush.bf16.xpose.msra.mxu0 0
  %3200 = vmatpush.bf16.xpose.msra.mxu0 0
  %3201 = vmatpush.bf16.xpose.msra.mxu0 0
  %3202 = vmatpush.bf16.xpose.msra.mxu0 0
  %3203 = vmatpush.bf16.xpose.msra.mxu0 %v3181
  %3204 = vmatmul.bf16.gmra.mxu0 %v3181
  %v3205 = vpop.f32.mrf.mxu0
  %v3206 = vadd.f32 0.0, %v3205
  %v3207 = vpop.f32.mrf.mxu0
  %3208 = vdwg.mxu0
  %v3209 = vpack.c.bf16 %v3206, %v3206
  %v3210 = vmul.f32 %v3129, %v3193
  %v3212 = vsel %vm251, %v3209, 0
  %v3215 = vsel %vm255, %v3130, 0
  %3217 = vmatpush.bf16.msra.mxu0 0
  %3218 = vmatpush.bf16.msra.mxu0 0
  %3219 = vmatpush.bf16.msra.mxu0 0
  %3220 = vmatpush.bf16.msra.mxu0 0
  %3221 = vmatpush.bf16.msra.mxu0 0
  %3222 = vmatpush.bf16.msra.mxu0 0
  %3223 = vmatpush.bf16.msra.mxu0 0
  %3224 = vmatpush.bf16.msra.mxu0 %v3215
  %3225 = vmatmul.bf16.gmra.mxu0 %v3212
  %v3226 = vpop.f32.mrf.mxu0
  %v3227 = vadd.f32 1e-06, %v3226
  %v3228 = vpop.f32.mrf.mxu0
  %3229 = vdwg.mxu0
  %v3230 = vrcp.pop %v3227
  %v3231 = vmul.f32 %v3210, %v3230
  %v3232 = vpack.c.bf16 %v3231, %v3231
  %3233 = vmatpush.bf16.xpose.msra.mxu0 0
  %3234 = vmatpush.bf16.xpose.msra.mxu0 0
  %3235 = vmatpush.bf16.xpose.msra.mxu0 0
  %3236 = vmatpush.bf16.xpose.msra.mxu0 0
  %3237 = vmatpush.bf16.xpose.msra.mxu0 0
  %3238 = vmatpush.bf16.xpose.msra.mxu0 0
  %3239 = vmatpush.bf16.xpose.msra.mxu0 %v2750
  %3240 = vmatpush.bf16.xpose.msra.mxu0 %v2749
  %3241 = vmatmul.bf16.gmra.mxu0 %v3232
  %v3242 = vpop.f32.mrf.mxu0
  %v3243 = vadd.f32 0.0, %v3242
  %v3244 = vpop.f32.mrf.mxu0
  %3245 = vdwg.mxu0
  %3246 = vmatpush.bf16.xpose.msra.mxu0 0
  %3247 = vmatpush.bf16.xpose.msra.mxu0 0
  %3248 = vmatpush.bf16.xpose.msra.mxu0 0
  %3249 = vmatpush.bf16.xpose.msra.mxu0 0
  %3250 = vmatpush.bf16.xpose.msra.mxu0 0
  %3251 = vmatpush.bf16.xpose.msra.mxu0 0
  %3252 = vmatpush.bf16.xpose.msra.mxu0 0
  %3253 = vmatpush.bf16.xpose.msra.mxu0 %v3232
  %3254 = vmatmul.bf16.gmra.mxu0 %v3232
  %v3255 = vpop.f32.mrf.mxu0
  %v3256 = vadd.f32 0.0, %v3255
  %v3257 = vpop.f32.mrf.mxu0
  %3258 = vdwg.mxu0
  %v3259 = vpack.c.bf16 %v3256, %v3256
  %v3260 = vmul.f32 %v3178, %v3243
  %v3262 = vsel %vm251, %v3259, 0
  %v3264 = vsel %vm255, %v3179, 0
  %3266 = vmatpush.bf16.msra.mxu0 0
  %3267 = vmatpush.bf16.msra.mxu0 0
  %3268 = vmatpush.bf16.msra.mxu0 0
  %3269 = vmatpush.bf16.msra.mxu0 0
  %3270 = vmatpush.bf16.msra.mxu0 0
  %3271 = vmatpush.bf16.msra.mxu0 0
  %3272 = vmatpush.bf16.msra.mxu0 0
  %3273 = vmatpush.bf16.msra.mxu0 %v3264
  %3274 = vmatmul.bf16.gmra.mxu0 %v3262
  %v3275 = vpop.f32.mrf.mxu0
  %v3276 = vadd.f32 1e-06, %v3275
  %v3277 = vpop.f32.mrf.mxu0
  %3278 = vdwg.mxu0
  %v3279 = vrcp.pop %v3276
  %v3280 = vmul.f32 %v3260, %v3279
  %v3281 = vpack.c.bf16 %v3280, %v3280
  %v3283 = vsel %vm201, %v3281, 0
  %3285 = vmatpush.bf16.msra.mxu0 0
  %3286 = vmatpush.bf16.msra.mxu0 0
  %3287 = vmatpush.bf16.msra.mxu0 0
  %3288 = vmatpush.bf16.msra.mxu0 0
  %3289 = vmatpush.bf16.msra.mxu0 0
  %3290 = vmatpush.bf16.msra.mxu0 0
  %3291 = vmatpush.bf16.msra.mxu0 %v2750
  %3292 = vmatpush.bf16.msra.mxu0 %v2749
  %3293 = vmatmul.bf16.gmra.mxu0 %v3283
  %v3294 = vpop.f32.mrf.mxu0
  %v3295 = vadd.f32 0.0, %v3294
  %v3296 = vpop.f32.mrf.mxu0
  %3297 = vdwg.mxu0
  %3298 = vmatpush.bf16.xpose.msra.mxu0 0
  %3299 = vmatpush.bf16.xpose.msra.mxu0 0
  %3300 = vmatpush.bf16.xpose.msra.mxu0 0
  %3301 = vmatpush.bf16.xpose.msra.mxu0 0
  %3302 = vmatpush.bf16.xpose.msra.mxu0 0
  %3303 = vmatpush.bf16.xpose.msra.mxu0 0
  %3304 = vmatpush.bf16.xpose.msra.mxu0 0
  %3305 = vmatpush.bf16.xpose.msra.mxu0 %v3283
  %3306 = vmatmul.bf16.gmra.mxu0 %v3283
  %v3307 = vpop.f32.mrf.mxu0
  %v3308 = vadd.f32 0.0, %v3307
  %v3309 = vpop.f32.mrf.mxu0
  %3310 = vdwg.mxu0
  %v3311 = vpack.c.bf16 %v3308, %v3308
  %v3312 = vmul.f32 %v3231, %v3295
  %v3314 = vsel %vm251, %v3311, 0
  %v3317 = vsel %vm255, %v3232, 0
  %3319 = vmatpush.bf16.msra.mxu0 0
  %3320 = vmatpush.bf16.msra.mxu0 0
  %3321 = vmatpush.bf16.msra.mxu0 0
  %3322 = vmatpush.bf16.msra.mxu0 0
  %3323 = vmatpush.bf16.msra.mxu0 0
  %3324 = vmatpush.bf16.msra.mxu0 0
  %3325 = vmatpush.bf16.msra.mxu0 0
  %3326 = vmatpush.bf16.msra.mxu0 %v3317
  %3327 = vmatmul.bf16.gmra.mxu0 %v3314
  %v3328 = vpop.f32.mrf.mxu0
  %v3329 = vadd.f32 1e-06, %v3328
  %v3330 = vpop.f32.mrf.mxu0
  %3331 = vdwg.mxu0
  %v3332 = vrcp.pop %v3329
  %v3333 = vmul.f32 %v3312, %v3332
  %v3334 = vpack.c.bf16 %v3333, %v3333
  %3335 = vmatpush.bf16.xpose.msra.mxu0 0
  %3336 = vmatpush.bf16.xpose.msra.mxu0 0
  %3337 = vmatpush.bf16.xpose.msra.mxu0 0
  %3338 = vmatpush.bf16.xpose.msra.mxu0 0
  %3339 = vmatpush.bf16.xpose.msra.mxu0 0
  %3340 = vmatpush.bf16.xpose.msra.mxu0 0
  %3341 = vmatpush.bf16.xpose.msra.mxu0 %v2750
  %3342 = vmatpush.bf16.xpose.msra.mxu0 %v2749
  %3343 = vmatmul.bf16.gmra.mxu0 %v3334
  %v3344 = vpop.f32.mrf.mxu0
  %v3345 = vadd.f32 0.0, %v3344
  %v3346 = vpop.f32.mrf.mxu0
  %3347 = vdwg.mxu0
  %3348 = vmatpush.bf16.xpose.msra.mxu0 0
  %3349 = vmatpush.bf16.xpose.msra.mxu0 0
  %3350 = vmatpush.bf16.xpose.msra.mxu0 0
  %3351 = vmatpush.bf16.xpose.msra.mxu0 0
  %3352 = vmatpush.bf16.xpose.msra.mxu0 0
  %3353 = vmatpush.bf16.xpose.msra.mxu0 0
  %3354 = vmatpush.bf16.xpose.msra.mxu0 0
  %3355 = vmatpush.bf16.xpose.msra.mxu0 %v3334
  %3356 = vmatmul.bf16.gmra.mxu0 %v3334
  %v3357 = vpop.f32.mrf.mxu0
  %v3358 = vadd.f32 0.0, %v3357
  %v3359 = vpop.f32.mrf.mxu0
  %3360 = vdwg.mxu0
  %v3361 = vpack.c.bf16 %v3358, %v3358
  %v3362 = vmul.f32 %v3280, %v3345
  %v3364 = vsel %vm251, %v3361, 0
  %v3366 = vsel %vm255, %v3281, 0
  %3368 = vmatpush.bf16.msra.mxu0 0
  %3369 = vmatpush.bf16.msra.mxu0 0
  %3370 = vmatpush.bf16.msra.mxu0 0
  %3371 = vmatpush.bf16.msra.mxu0 0
  %3372 = vmatpush.bf16.msra.mxu0 0
  %3373 = vmatpush.bf16.msra.mxu0 0
  %3374 = vmatpush.bf16.msra.mxu0 0
  %3375 = vmatpush.bf16.msra.mxu0 %v3366
  %3376 = vmatmul.bf16.gmra.mxu0 %v3364
  %v3377 = vpop.f32.mrf.mxu0
  %v3378 = vadd.f32 1e-06, %v3377
  %v3379 = vpop.f32.mrf.mxu0
  %3380 = vdwg.mxu0
  %v3381 = vrcp.pop %v3378
  %v3382 = vmul.f32 %v3362, %v3381
  %v3383 = vpack.c.bf16 %v3382, %v3382
  %v3385 = vsel %vm201, %v3383, 0
  %3387 = vmatpush.bf16.msra.mxu0 0
  %3388 = vmatpush.bf16.msra.mxu0 0
  %3389 = vmatpush.bf16.msra.mxu0 0
  %3390 = vmatpush.bf16.msra.mxu0 0
  %3391 = vmatpush.bf16.msra.mxu0 0
  %3392 = vmatpush.bf16.msra.mxu0 0
  %3393 = vmatpush.bf16.msra.mxu0 %v2750
  %3394 = vmatpush.bf16.msra.mxu0 %v2749
  %3395 = vmatmul.bf16.gmra.mxu0 %v3385
  %v3396 = vpop.f32.mrf.mxu0
  %v3397 = vadd.f32 0.0, %v3396
  %v3398 = vpop.f32.mrf.mxu0
  %3399 = vdwg.mxu0
  %3400 = vmatpush.bf16.xpose.msra.mxu0 0
  %3401 = vmatpush.bf16.xpose.msra.mxu0 0
  %3402 = vmatpush.bf16.xpose.msra.mxu0 0
  %3403 = vmatpush.bf16.xpose.msra.mxu0 0
  %3404 = vmatpush.bf16.xpose.msra.mxu0 0
  %3405 = vmatpush.bf16.xpose.msra.mxu0 0
  %3406 = vmatpush.bf16.xpose.msra.mxu0 0
  %3407 = vmatpush.bf16.xpose.msra.mxu0 %v3385
  %3408 = vmatmul.bf16.gmra.mxu0 %v3385
  %v3409 = vpop.f32.mrf.mxu0
  %v3410 = vadd.f32 0.0, %v3409
  %v3411 = vpop.f32.mrf.mxu0
  %3412 = vdwg.mxu0
  %v3413 = vpack.c.bf16 %v3410, %v3410
  %v3414 = vmul.f32 %v3333, %v3397
  %v3416 = vsel %vm251, %v3413, 0
  %v3419 = vsel %vm255, %v3334, 0
  %3421 = vmatpush.bf16.msra.mxu0 0
  %3422 = vmatpush.bf16.msra.mxu0 0
  %3423 = vmatpush.bf16.msra.mxu0 0
  %3424 = vmatpush.bf16.msra.mxu0 0
  %3425 = vmatpush.bf16.msra.mxu0 0
  %3426 = vmatpush.bf16.msra.mxu0 0
  %3427 = vmatpush.bf16.msra.mxu0 0
  %3428 = vmatpush.bf16.msra.mxu0 %v3419
  %3429 = vmatmul.bf16.gmra.mxu0 %v3416
  %v3430 = vpop.f32.mrf.mxu0
  %v3431 = vadd.f32 1e-06, %v3430
  %v3432 = vpop.f32.mrf.mxu0
  %3433 = vdwg.mxu0
  %v3434 = vrcp.pop %v3431
  %v3435 = vmul.f32 %v3414, %v3434
  %v3436 = vpack.c.bf16 %v3435, %v3435
  %3437 = vmatpush.bf16.xpose.msra.mxu0 0
  %3438 = vmatpush.bf16.xpose.msra.mxu0 0
  %3439 = vmatpush.bf16.xpose.msra.mxu0 0
  %3440 = vmatpush.bf16.xpose.msra.mxu0 0
  %3441 = vmatpush.bf16.xpose.msra.mxu0 0
  %3442 = vmatpush.bf16.xpose.msra.mxu0 0
  %3443 = vmatpush.bf16.xpose.msra.mxu0 %v2750
  %3444 = vmatpush.bf16.xpose.msra.mxu0 %v2749
  %3445 = vmatmul.bf16.gmra.mxu0 %v3436
  %v3446 = vpop.f32.mrf.mxu0
  %v3447 = vadd.f32 0.0, %v3446
  %v3448 = vpop.f32.mrf.mxu0
  %3449 = vdwg.mxu0
  %3450 = vmatpush.bf16.xpose.msra.mxu0 0
  %3451 = vmatpush.bf16.xpose.msra.mxu0 0
  %3452 = vmatpush.bf16.xpose.msra.mxu0 0
  %3453 = vmatpush.bf16.xpose.msra.mxu0 0
  %3454 = vmatpush.bf16.xpose.msra.mxu0 0
  %3455 = vmatpush.bf16.xpose.msra.mxu0 0
  %3456 = vmatpush.bf16.xpose.msra.mxu0 0
  %3457 = vmatpush.bf16.xpose.msra.mxu0 %v3436
  %3458 = vmatmul.bf16.gmra.mxu0 %v3436
  %v3459 = vpop.f32.mrf.mxu0
  %v3460 = vadd.f32 0.0, %v3459
  %v3461 = vpop.f32.mrf.mxu0
  %3462 = vdwg.mxu0
  %v3463 = vpack.c.bf16 %v3460, %v3460
  %v3464 = vmul.f32 %v3382, %v3447
  %v3466 = vsel %vm251, %v3463, 0
  %v3468 = vsel %vm255, %v3383, 0
  %3470 = vmatpush.bf16.msra.mxu0 0
  %3471 = vmatpush.bf16.msra.mxu0 0
  %3472 = vmatpush.bf16.msra.mxu0 0
  %3473 = vmatpush.bf16.msra.mxu0 0
  %3474 = vmatpush.bf16.msra.mxu0 0
  %3475 = vmatpush.bf16.msra.mxu0 0
  %3476 = vmatpush.bf16.msra.mxu0 0
  %3477 = vmatpush.bf16.msra.mxu0 %v3468
  %3478 = vmatmul.bf16.gmra.mxu0 %v3466
  %v3479 = vpop.f32.mrf.mxu0
  %v3480 = vadd.f32 1e-06, %v3479
  %v3481 = vpop.f32.mrf.mxu0
  %3482 = vdwg.mxu0
  %v3483 = vrcp.pop %v3480
  %v3484 = vmul.f32 %v3464, %v3483
  %v3485 = vpack.c.bf16 %v3484, %v3484
  %v3487 = vsel %vm201, %v3485, 0
  %3489 = vmatpush.bf16.msra.mxu0 0
  %3490 = vmatpush.bf16.msra.mxu0 0
  %3491 = vmatpush.bf16.msra.mxu0 0
  %3492 = vmatpush.bf16.msra.mxu0 0
  %3493 = vmatpush.bf16.msra.mxu0 0
  %3494 = vmatpush.bf16.msra.mxu0 0
  %3495 = vmatpush.bf16.msra.mxu0 %v2750
  %3496 = vmatpush.bf16.msra.mxu0 %v2749
  %3497 = vmatmul.bf16.gmra.mxu0 %v3487
  %v3498 = vpop.f32.mrf.mxu0
  %v3499 = vadd.f32 0.0, %v3498
  %v3500 = vpop.f32.mrf.mxu0
  %3501 = vdwg.mxu0
  %3502 = vmatpush.bf16.xpose.msra.mxu0 0
  %3503 = vmatpush.bf16.xpose.msra.mxu0 0
  %3504 = vmatpush.bf16.xpose.msra.mxu0 0
  %3505 = vmatpush.bf16.xpose.msra.mxu0 0
  %3506 = vmatpush.bf16.xpose.msra.mxu0 0
  %3507 = vmatpush.bf16.xpose.msra.mxu0 0
  %3508 = vmatpush.bf16.xpose.msra.mxu0 0
  %3509 = vmatpush.bf16.xpose.msra.mxu0 %v3487
  %3510 = vmatmul.bf16.gmra.mxu0 %v3487
  %v3511 = vpop.f32.mrf.mxu0
  %v3512 = vadd.f32 0.0, %v3511
  %v3513 = vpop.f32.mrf.mxu0
  %3514 = vdwg.mxu0
  %v3515 = vpack.c.bf16 %v3512, %v3512
  %v3516 = vmul.f32 %v3435, %v3499
  %v3518 = vsel %vm251, %v3515, 0
  %v3521 = vsel %vm255, %v3436, 0
  %3523 = vmatpush.bf16.msra.mxu0 0
  %3524 = vmatpush.bf16.msra.mxu0 0
  %3525 = vmatpush.bf16.msra.mxu0 0
  %3526 = vmatpush.bf16.msra.mxu0 0
  %3527 = vmatpush.bf16.msra.mxu0 0
  %3528 = vmatpush.bf16.msra.mxu0 0
  %3529 = vmatpush.bf16.msra.mxu0 0
  %3530 = vmatpush.bf16.msra.mxu0 %v3521
  %3531 = vmatmul.bf16.gmra.mxu0 %v3518
  %v3532 = vpop.f32.mrf.mxu0
  %v3533 = vadd.f32 1e-06, %v3532
  %v3534 = vpop.f32.mrf.mxu0
  %3535 = vdwg.mxu0
  %v3536 = vrcp.pop %v3533
  %v3537 = vmul.f32 %v3516, %v3536
  %v3538 = vpack.c.bf16 %v3537, %v3537
  %3539 = vxpose.xlu0.c.b16.start [1/8] %v3485, 128
  %3540 = vxpose.xlu0.c.b16.cont [2/8] 0, 128
  %3541 = vxpose.xlu0.c.b16.cont [3/8] 0, 128
  %3542 = vxpose.xlu0.c.b16.cont [4/8] 0, 128
  %3543 = vxpose.xlu0.c.b16.cont [5/8] 0, 128
  %3544 = vxpose.xlu0.c.b16.cont [6/8] 0, 128
  %3545 = vxpose.xlu0.c.b16.cont [7/8] 0, 128
  %3546 = vxpose.xlu0.c.b16.end [8/8] 0, 128
  %v3547 = vpop.trf.xlu0
  %v3548 = vpop.trf.xlu0
  %v3549 = vpop.trf.xlu0
  %v3550 = vpop.trf.xlu0
  %v3551 = vpop.trf.xlu0
  %v3552 = vpop.trf.xlu0
  %v3553 = vpop.trf.xlu0
  %v3554 = vpop.trf.xlu0
  %v3556 = vsel %vm251, %v3547, 0
  %v3559 = vsel %vm251, %v3548, 0
  %v3562 = vsel %vm255, %v3538, 0
  %3564 = vmatpush.bf16.msra.mxu0 0
  %3565 = vmatpush.bf16.msra.mxu0 0
  %3566 = vmatpush.bf16.msra.mxu0 0
  %3567 = vmatpush.bf16.msra.mxu0 0
  %3568 = vmatpush.bf16.msra.mxu0 0
  %3569 = vmatpush.bf16.msra.mxu0 0
  %3570 = vmatpush.bf16.msra.mxu0 0
  %3571 = vmatpush.bf16.msra.mxu0 %v3562
  %3572 = vmatmul.bf16.gmra.mxu0 %v3556
  %v3573 = vpop.f32.mrf.mxu0
  %v3574 = vadd.f32 0.0, %v3573
  %v3575 = vpop.f32.mrf.mxu0
  %v3576 = vadd.f32 0.0, %v3575
  %3577 = vmatmul.bf16.gmra.mxu0 %v3559
  %v3578 = vpop.f32.mrf.mxu0
  %v3579 = vadd.f32 0.0, %v3578
  %v3580 = vpop.f32.mrf.mxu0
  %v3581 = vadd.f32 0.0, %v3580
  %3582 = vdwg.mxu0
  %v3583 = vld [vmem:[%s0 + $0x18] sm:$0xff]
  %v3584 = vld [vmem:[%s0 + $0x38] sm:$0xff]
  %v3585 = vld [vmem:[%s0 + $0x58] sm:$0xff]
  %v3586 = vld [vmem:[%s0 + $0x78] sm:$0xff]
  %v3587 = vadd.f32 %v3583, %v3574
  %v3588 = vadd.f32 %v3584, %v3576
  %v3589 = vadd.f32 %v3585, %v3579
  %v3590 = vadd.f32 %v3586, %v3581
  %v3591 = vmax.f32 %v3587, 0.0
  %v3592 = vmax.f32 %v3588, 0.0
  %v3593 = vmax.f32 %v3589, 0.0
  %v3594 = vmax.f32 %v3590, 0.0
  %3595 = vst [vmem:[%s3 + $0x18] sm:$0xff] %v3591
  %3596 = vst [vmem:[%s3 + $0x38] sm:$0xff] %v3592
  %3597 = vst [vmem:[%s3 + $0x58] sm:$0xff] %v3593
  %3598 = vst [vmem:[%s3 + $0x78] sm:$0xff] %v3594
  // Predicated region
  $region14: #{_hamburger_forward_jit.1} parent=0 // pred_check
    _
  $region15: #{_hamburger_forward_jit.1} parent=0 // pred_check_branch
    %3600 = sbr.rel (0) target = $region17
  $region16: #{_hamburger_forward_jit.1} parent=0 // pred_region
    _
  $region17: #{_hamburger_forward_jit.1} parent=0 // pred_fallthru
    _
  // Predicated region
  $region18: #{_hamburger_forward_jit.1} parent=0 // pred_check
    _
  $region19: #{_hamburger_forward_jit.1} parent=0 // pred_check_branch
    %3602 = sbr.rel (0) target = $region21
  $region20: #{_hamburger_forward_jit.1} parent=0 // pred_region
    _
  $region21: #{_hamburger_forward_jit.1} parent=0 // pred_fallthru
    _

</llo_original>
